<compile_context>
chip_gen: v7x
topology: tpu7x:2x2x1
jax: 0.10.0
libtpu: 0.0.40
codegen_flags: <defaults>
</compile_context>

<pallas_src>
import math
import functools

import jax
import jax.numpy as jnp
from jax.experimental import pallas as pl
from jax.experimental.pallas import tpu as pltpu


# ----------------------------- shared math helpers ---------------------------

def _gelu_tanh(x):
    # TODO(synk): ModifiedAct's wrapped activation is not shown; BERT's default
    # "gelu" is the exact erf form -- using the tanh approximation here (EUP
    # friendly); switch to the erf form if exact HF-weight matching is needed.
    c = 0.7978845608028654  # sqrt(2/pi)
    return 0.5 * x * (1.0 + jnp.tanh(c * (x + 0.044715 * x * x * x)))


def _layernorm(y, gamma, beta, eps):
    mean = jnp.mean(y, axis=-1, keepdims=True)
    var = jnp.mean((y - mean) ** 2, axis=-1, keepdims=True)
    return (y - mean) * jax.lax.rsqrt(var + eps) * gamma + beta


# ----------------------------- fused BERT layer kernel ------------------------

def _layer_kernel(
    x_ref, wqkv_ref, bqkv_ref,
    wo3_ref, bo_ref, g1_ref, be1_ref,
    wi_ref, bi_ref, wo2_ref, bo2_ref, g2_ref, be2_ref,
    o_ref,
    *, num_heads, head_size, ln_eps,
):
    """One full BertLayer for one batch element (full sequence resident)."""
    S = x_ref.shape[1]
    nh, hd = num_heads, head_size
    H = nh * hd

    x_bf = x_ref[0]                                   # (S, H) bf16
    x32 = x_bf.astype(jnp.float32)                    # residual kept in f32

    # ---- fused QKV projection (softmax scale pre-folded into Q weights) ----
    qkv = jnp.dot(x_bf, wqkv_ref[...], preferred_element_type=jnp.float32)
    qkv = qkv + bqkv_ref[...]                         # (S, 3H) f32

    # Head-major relayout done ONCE per (batch, layer) -- grid is per-batch,
    # so there is no per-q-tile redundancy.
    def to_heads(t):                                  # (S, H) -> (nh, S, hd)
        return jnp.transpose(t.reshape(S, nh, hd), (1, 0, 2))

    q3 = to_heads(qkv[:, 0 * H:1 * H].astype(jnp.bfloat16))
    k3 = to_heads(qkv[:, 1 * H:2 * H].astype(jnp.bfloat16))
    v3 = to_heads(qkv[:, 2 * H:3 * H].astype(jnp.bfloat16))

    # ---- attention scores + softmax (f32 statistics) ------------------------
    scores = jnp.einsum("hqd,hkd->hqk", q3, k3,
                        preferred_element_type=jnp.float32)   # (nh, S, S)
    smax = jnp.max(scores, axis=-1, keepdims=True)
    p = jnp.exp(scores - smax)
    inv = pl.reciprocal(jnp.sum(p, axis=-1, keepdims=True), approx=True)
    probs = (p * inv).astype(jnp.bfloat16)                    # softmax(-1)

    ctx = jnp.einsum("hqk,hkd->hqd", probs, v3,
                     preferred_element_type=jnp.float32)      # (nh, S, hd)

    # ---- attention output dense: head-batched against wo3 (nh, hd, H) ------
    # (no (S,H) relayout of ctx; reduce over heads with cheap vector adds;
    #  sum_h ctx[h] @ wo[h*hd:(h+1)*hd, :] == ctx2d @ wo)
    attn_h = jnp.einsum("hqd,hdk->hqk", ctx.astype(jnp.bfloat16), wo3_ref[...],
                        preferred_element_type=jnp.float32)   # (nh, S, H)
    attn = jnp.sum(attn_h, axis=0) + bo_ref[...]              # (S, H) f32

    y1 = _layernorm(attn + x32, g1_ref[...], be1_ref[...], ln_eps)

    # ---- FFN: dense -> GELU -> dense + residual + LayerNorm -----------------
    inter = jnp.dot(y1.astype(jnp.bfloat16), wi_ref[...],
                    preferred_element_type=jnp.float32) + bi_ref[...]
    inter = _gelu_tanh(inter)                                  # (S, I) f32

    ffn = jnp.dot(inter.astype(jnp.bfloat16), wo2_ref[...],
                  preferred_element_type=jnp.float32) + bo2_ref[...]
    y2 = _layernorm(ffn + y1, g2_ref[...], be2_ref[...], ln_eps)

    o_ref[0] = y2.astype(jnp.bfloat16)                         # bf16 hidden stream


# ----------------------------- VMEM budgeting ---------------------------------

def _layer_vmem_bytes(S, H, I, nh, hd):
    bf, f32 = 2, 4
    weights = (H * 3 * H + nh * hd * H + H * I + I * H) * bf
    params = (3 * H + 5 * H + I) * f32                 # biases + LN gamma/beta
    io = 2 * S * H * bf                                # x block + out block
    resident = 2 * (weights + params + io)             # pipeline double-buffering
    temps = ((S * 3 * H) + (nh * S * H) + 4 * (S * H) + 2 * (S * I)) * f32 \
        + (3 * nh * S * hd + nh * S * S) * bf + 2 * (nh * S * S) * f32
    return resident + temps


def _layer_vmem_limit(S, H, I, nh, hd):
    est = int(_layer_vmem_bytes(S, H, I, nh, hd) * 1.5)   # ~33% headroom
    # Keep within v7x's 64 MiB physical VMEM; demo sizes land on the 32 MiB floor.
    return max(32 * 1024 * 1024, min(est, 64 * 1024 * 1024))


# ----------------------------- pallas_call wrapper -----------------------------

def _bert_layer(x, p, *, num_heads, head_size, ln_eps):
    B, S, H = x.shape
    I = p["wi"].shape[1]
    nh, hd = num_heads, head_size

    blk_x = pl.BlockSpec((1, S, H), lambda b: (b, 0, 0))
    full2 = lambda shape: pl.BlockSpec(shape, lambda b: (0, 0))
    full3 = lambda shape: pl.BlockSpec(shape, lambda b: (0, 0, 0))

    return pl.pallas_call(
        functools.partial(_layer_kernel, num_heads=nh, head_size=hd,
                          ln_eps=ln_eps),
        out_shape=jax.ShapeDtypeStruct((B, S, H), jnp.bfloat16),
        grid_spec=pltpu.PrefetchScalarGridSpec(
            num_scalar_prefetch=0,
            grid=(B,),
            in_specs=[
                blk_x,                                   # x (bf16 residual)
                full2((H, 3 * H)), full2((1, 3 * H)),    # wqkv, bqkv
                full3((nh, hd, H)), full2((1, H)),       # wo3, bo
                full2((1, H)), full2((1, H)),            # gamma1, beta1
                full2((H, I)), full2((1, I)),            # wi, bi
                full2((I, H)), full2((1, H)),            # wo2, bo2
                full2((1, H)), full2((1, H)),            # gamma2, beta2
            ],
            out_specs=blk_x,
        ),
        compiler_params=pltpu.CompilerParams(
            dimension_semantics=("parallel",),           # shard batches across cores
            vmem_limit_bytes=_layer_vmem_limit(S, H, I, nh, hd),
        ),
    )(x, p["wqkv"], p["bqkv"], p["wo3"], p["bo"], p["g1"], p["be1"],
      p["wi"], p["bi"], p["wo2"], p["bo2"], p["g2"], p["be2"])


def modified_bert_model(x, layer_params, pooler_params, *, num_heads, head_size,
                        ln_eps=1e-12):
    """x: (B, S, H) hidden states. Returns (sequence_output[bf16], pooled[f32])."""
    B, S, H = x.shape
    assert num_heads * head_size == H

    h = x.astype(jnp.bfloat16)                        # bf16 inter-layer stream
    for p in layer_params:
        h = _bert_layer(h, p, num_heads=num_heads, head_size=head_size,
                        ln_eps=ln_eps)

    # Pooler: tiny (B,H) x (H,H) matmul + tanh -- a dedicated pallas_call is
    # pure launch/DMA overhead, so let XLA handle it.
    pooled = jnp.tanh(h[:, 0, :].astype(jnp.float32) @ pooler_params["w"]
                      + pooler_params["b"])
    return h, pooled


# ----------------------------- pure-JAX reference ------------------------------

def _reference(x, layer_params_f32, pooler_params_f32, *, num_heads, head_size,
               ln_eps=1e-12):
    B, S, H = x.shape
    h = x

    def lin(t, w, b):
        return jnp.einsum("bsh,hd->bsd", t, w) + b

    for p in layer_params_f32:
        q = lin(h, p["wq"], p["bq"]).reshape(B, S, num_heads, head_size).transpose(0, 2, 1, 3)
        k = lin(h, p["wk"], p["bk"]).reshape(B, S, num_heads, head_size).transpose(0, 2, 1, 3)
        v = lin(h, p["wv"], p["bv"]).reshape(B, S, num_heads, head_size).transpose(0, 2, 1, 3)
        scores = jnp.einsum("bhqd,bhkd->bhqk", q, k) / math.sqrt(head_size)
        probs = jax.nn.softmax(scores, axis=-1)
        ctx = jnp.einsum("bhqk,bhkd->bhqd", probs, v).transpose(0, 2, 1, 3).reshape(B, S, H)
        attn = lin(ctx, p["wo"], p["bo"]) + h
        y1 = _layernorm(attn, p["g1"], p["be1"], ln_eps)
        inter = _gelu_tanh(lin(y1, p["wi"], p["bi"]))
        ffn = lin(inter, p["wo2"], p["bo2"]) + y1
        h = _layernorm(ffn, p["g2"], p["be2"], ln_eps)

    pooled = jnp.tanh(h[:, 0, :] @ pooler_params_f32["w"] + pooler_params_f32["b"])
    return h, pooled


# ----------------------------- demo / self-check --------------------------------

if __name__ == "__main__":
    # Small BERT-like config (H multiple of 128 for lane-dense stores):
    # batch=2, seq=8, hidden=128, 2 heads of size 64, intermediate=512, 2 layers.
    B, S, H = 2, 8, 128
    NUM_HEADS, HEAD_SIZE = 2, 64
    INTERMEDIATE = 4 * H
    NUM_LAYERS = 2

    key = jax.random.PRNGKey(0)

    def make_layer_params(k):
        ks = jax.random.split(k, 16)
        w = lambda kk, shp: jax.random.normal(kk, shp, jnp.float32) * 0.05
        b = lambda kk, shp: jax.random.normal(kk, shp, jnp.float32) * 0.01
        return {
            "wq": w(ks[0], (H, H)), "bq": b(ks[1], (1, H)),
            "wk": w(ks[2], (H, H)), "bk": b(ks[3], (1, H)),
            "wv": w(ks[4], (H, H)), "bv": b(ks[5], (1, H)),
            "wo": w(ks[6], (H, H)), "bo": b(ks[7], (1, H)),
            "g1": 1.0 + 0.1 * jax.random.normal(ks[8], (1, H), jnp.float32),
            "be1": b(ks[9], (1, H)),
            "wi": w(ks[10], (H, INTERMEDIATE)), "bi": b(ks[11], (1, INTERMEDIATE)),
            "wo2": w(ks[12], (INTERMEDIATE, H)), "bo2": b(ks[13], (1, H)),
            "g2": 1.0 + 0.1 * jax.random.normal(ks[14], (1, H), jnp.float32),
            "be2": b(ks[15], (1, H)),
        }

    def to_device_params(p, head_size):
        """Fuse QKV (softmax scale folded into Q), head-major wo, bf16 weights."""
        scale = 1.0 / math.sqrt(head_size)
        Hh = p["wq"].shape[0]
        nh = Hh // head_size
        return {
            "wqkv": jnp.concatenate(
                [p["wq"] * scale, p["wk"], p["wv"]], axis=1).astype(jnp.bfloat16),
            "bqkv": jnp.concatenate([p["bq"] * scale, p["bk"], p["bv"]], axis=1),
            "wo3": p["wo"].reshape(nh, head_size, Hh).astype(jnp.bfloat16),
            "bo": p["bo"],
            "g1": p["g1"], "be1": p["be1"],
            "wi": p["wi"].astype(jnp.bfloat16), "bi": p["bi"],
            "wo2": p["wo2"].astype(jnp.bfloat16), "bo2": p["bo2"],
            "g2": p["g2"], "be2": p["be2"],
        }

    keys = jax.random.split(key, NUM_LAYERS + 3)
    layer_params_f32 = [make_layer_params(keys[i]) for i in range(NUM_LAYERS)]
    layer_params_dev = [to_device_params(p, HEAD_SIZE) for p in layer_params_f32]

    pooler_f32 = {
        "w": jax.random.normal(keys[NUM_LAYERS], (H, H), jnp.float32) * 0.05,
        "b": jax.random.normal(keys[NUM_LAYERS + 1], (1, H), jnp.float32) * 0.01,
    }

    hidden_states = jax.random.normal(keys[NUM_LAYERS + 2], (B, S, H), jnp.float32)

    run = jax.jit(functools.partial(modified_bert_model,
                                    num_heads=NUM_HEADS, head_size=HEAD_SIZE))
    seq_out, pooled = run(hidden_states, layer_params_dev, pooler_f32)
    pooled = jax.block_until_ready(pooled)

    ref_seq, ref_pooled = _reference(hidden_states, layer_params_f32, pooler_f32,
                                     num_heads=NUM_HEADS, head_size=HEAD_SIZE)

    assert seq_out.shape == (B, S, H) and pooled.shape == (B, H)
    # bf16 hidden stream + bf16 MXU inputs (f32 accumulation) vs f32 reference.
    assert jnp.allclose(seq_out.astype(jnp.float32), ref_seq,
                        atol=4e-2, rtol=4e-2), "encoder mismatch"
    assert jnp.allclose(pooled, ref_pooled, atol=4e-2, rtol=4e-2), "pooler mismatch"

    print("KERNEL_OK")
</pallas_src>

<mosaic_0001>
module attributes {stable_mosaic.version = 11 : i64} {
  func.func @_layer_kernel(%arg0: i32, %arg1: memref<1x8x128xbf16, #tpu.memory_space<vmem>>, %arg2: memref<128x384xbf16, #tpu.memory_space<vmem>>, %arg3: memref<1x384xf32, #tpu.memory_space<vmem>>, %arg4: memref<2x64x128xbf16, #tpu.memory_space<vmem>>, %arg5: memref<1x128xf32, #tpu.memory_space<vmem>>, %arg6: memref<1x128xf32, #tpu.memory_space<vmem>>, %arg7: memref<1x128xf32, #tpu.memory_space<vmem>>, %arg8: memref<128x512xbf16, #tpu.memory_space<vmem>>, %arg9: memref<1x512xf32, #tpu.memory_space<vmem>>, %arg10: memref<512x128xbf16, #tpu.memory_space<vmem>>, %arg11: memref<1x128xf32, #tpu.memory_space<vmem>>, %arg12: memref<1x128xf32, #tpu.memory_space<vmem>>, %arg13: memref<1x128xf32, #tpu.memory_space<vmem>>, %arg14: memref<1x8x128xbf16, #tpu.memory_space<vmem>>) attributes {dimension_semantics = [#tpu.dimension_semantics<parallel>], iteration_bounds = array<i64: 2>, scalar_prefetch = 0 : i64, scratch_operands = 0 : i64, tpu.core_type = #tpu.core_type<tc>, window_params = [{transform_indices = @transform_0, window_bounds = array<i64: 1, 8, 128>}, {pipeline_mode = #tpu.pipeline_mode<synchronous>, transform_indices = @transform_1, window_bounds = array<i64: 128, 384>}, {pipeline_mode = #tpu.pipeline_mode<synchronous>, transform_indices = @transform_2, window_bounds = array<i64: 1, 384>}, {pipeline_mode = #tpu.pipeline_mode<synchronous>, transform_indices = @transform_3, window_bounds = array<i64: 2, 64, 128>}, {pipeline_mode = #tpu.pipeline_mode<synchronous>, transform_indices = @transform_4, window_bounds = array<i64: 1, 128>}, {pipeline_mode = #tpu.pipeline_mode<synchronous>, transform_indices = @transform_5, window_bounds = array<i64: 1, 128>}, {pipeline_mode = #tpu.pipeline_mode<synchronous>, transform_indices = @transform_6, window_bounds = array<i64: 1, 128>}, {pipeline_mode = #tpu.pipeline_mode<synchronous>, transform_indices = @transform_7, window_bounds = array<i64: 128, 512>}, {pipeline_mode = #tpu.pipeline_mode<synchronous>, transform_indices = @transform_8, window_bounds = array<i64: 1, 512>}, {pipeline_mode = #tpu.pipeline_mode<synchronous>, transform_indices = @transform_9, window_bounds = array<i64: 512, 128>}, {pipeline_mode = #tpu.pipeline_mode<synchronous>, transform_indices = @transform_10, window_bounds = array<i64: 1, 128>}, {pipeline_mode = #tpu.pipeline_mode<synchronous>, transform_indices = @transform_11, window_bounds = array<i64: 1, 128>}, {pipeline_mode = #tpu.pipeline_mode<synchronous>, transform_indices = @transform_12, window_bounds = array<i64: 1, 128>}, {transform_indices = @transform_13, window_bounds = array<i64: 1, 8, 128>}]} {
    %c0 = arith.constant 0 : index
    %c0_0 = arith.constant 0 : index
    %c0_1 = arith.constant 0 : index
    %0 = vector.load %arg1[%c0, %c0_0, %c0_1] : memref<1x8x128xbf16, #tpu.memory_space<vmem>>, vector<1x8x128xbf16>
    %1 = vector.shape_cast %0 : vector<1x8x128xbf16> to vector<8x128xbf16>
    %2 = arith.extf %1 : vector<8x128xbf16> to vector<8x128xf32>
    %c0_2 = arith.constant 0 : index
    %c0_3 = arith.constant 0 : index
    %3 = vector.load %arg2[%c0_2, %c0_3] : memref<128x384xbf16, #tpu.memory_space<vmem>>, vector<128x384xbf16>
    %cst = arith.constant dense<0.000000e+00> : vector<8x384xf32>
    %4 = tpu.matmul %1, %3, %cst {dimension_numbers = #tpu.dot_dimension_numbers<[1], [0], [0], [1], [0, 0, 1, 1], [], []>} : vector<8x128xbf16>, vector<128x384xbf16>, vector<8x384xf32> -> vector<8x384xf32>
    %c0_4 = arith.constant 0 : index
    %c0_5 = arith.constant 0 : index
    %5 = vector.load %arg3[%c0_4, %c0_5] : memref<1x384xf32, #tpu.memory_space<vmem>>, vector<1x384xf32>
    %6 = vector.broadcast %5 : vector<1x384xf32> to vector<8x384xf32>
    %7 = arith.addf %4, %6 : vector<8x384xf32>
    %8 = vector.extract_strided_slice %7 {offsets = [0, 0], sizes = [8, 128], strides = [1, 1]} : vector<8x384xf32> to vector<8x128xf32>
    %9 = arith.truncf %8 : vector<8x128xf32> to vector<8x128xbf16>
    %10 = vector.shape_cast %9 : vector<8x128xbf16> to vector<8x2x64xbf16>
    %11 = tpu.transpose %10, [1, 0, 2] : vector<8x2x64xbf16> -> vector<2x8x64xbf16>
    %12 = vector.extract_strided_slice %7 {offsets = [0, 128], sizes = [8, 128], strides = [1, 1]} : vector<8x384xf32> to vector<8x128xf32>
    %13 = arith.truncf %12 : vector<8x128xf32> to vector<8x128xbf16>
    %14 = vector.shape_cast %13 : vector<8x128xbf16> to vector<8x2x64xbf16>
    %15 = tpu.transpose %14, [1, 0, 2] : vector<8x2x64xbf16> -> vector<2x8x64xbf16>
    %16 = vector.extract_strided_slice %7 {offsets = [0, 256], sizes = [8, 128], strides = [1, 1]} : vector<8x384xf32> to vector<8x128xf32>
    %17 = arith.truncf %16 : vector<8x128xf32> to vector<8x128xbf16>
    %18 = vector.shape_cast %17 : vector<8x128xbf16> to vector<8x2x64xbf16>
    %19 = tpu.transpose %18, [1, 0, 2] : vector<8x2x64xbf16> -> vector<2x8x64xbf16>
    "tpu.trace_start"() <{level = 10 : i32, message = "hqd,hkd->hqk"}> : () -> ()
    %cst_6 = arith.constant dense<0.000000e+00> : vector<2x8x8xf32>
    %20 = tpu.matmul %11, %15, %cst_6 {dimension_numbers = #tpu.dot_dimension_numbers<[2], [2], [1], [1], [0, 0, 0, 1, 1, 1], [0], [0]>} : vector<2x8x64xbf16>, vector<2x8x64xbf16>, vector<2x8x8xf32> -> vector<2x8x8xf32>
    "tpu.trace_stop"() : () -> ()
    %cst_7 = arith.constant dense<0xFF800000> : vector<2x8xf32>
    %21 = vector.multi_reduction <maximumf>, %20, %cst_7 [2] : vector<2x8x8xf32> to vector<2x8xf32>
    %22 = vector.shape_cast %21 : vector<2x8xf32> to vector<2x8x1xf32>
    %23 = vector.broadcast %22 : vector<2x8x1xf32> to vector<2x8x8xf32>
    %24 = arith.subf %20, %23 : vector<2x8x8xf32>
    %25 = math.exp %24 : vector<2x8x8xf32>
    %cst_8 = arith.constant dense<0.000000e+00> : vector<2x8xf32>
    %26 = vector.multi_reduction <add>, %25, %cst_8 [2] : vector<2x8x8xf32> to vector<2x8xf32>
    %27 = vector.shape_cast %26 : vector<2x8xf32> to vector<2x8x1xf32>
    %28 = tpu.reciprocal %27 {approx = true} : vector<2x8x1xf32> -> vector<2x8x1xf32>
    %29 = vector.broadcast %28 : vector<2x8x1xf32> to vector<2x8x8xf32>
    %30 = arith.mulf %25, %29 : vector<2x8x8xf32>
    %31 = arith.truncf %30 : vector<2x8x8xf32> to vector<2x8x8xbf16>
    "tpu.trace_start"() <{level = 10 : i32, message = "hqk,hkd->hqd"}> : () -> ()
    %cst_9 = arith.constant dense<0.000000e+00> : vector<2x8x64xf32>
    %32 = tpu.matmul %31, %19, %cst_9 {dimension_numbers = #tpu.dot_dimension_numbers<[2], [1], [1], [2], [0, 0, 0, 1, 1, 2], [0], [0]>} : vector<2x8x8xbf16>, vector<2x8x64xbf16>, vector<2x8x64xf32> -> vector<2x8x64xf32>
    "tpu.trace_stop"() : () -> ()
    %33 = arith.truncf %32 : vector<2x8x64xf32> to vector<2x8x64xbf16>
    %c0_10 = arith.constant 0 : index
    %c0_11 = arith.constant 0 : index
    %c0_12 = arith.constant 0 : index
    %34 = vector.load %arg4[%c0_10, %c0_11, %c0_12] : memref<2x64x128xbf16, #tpu.memory_space<vmem>>, vector<2x64x128xbf16>
    "tpu.trace_start"() <{level = 10 : i32, message = "hqd,hdk->hqk"}> : () -> ()
    %cst_13 = arith.constant dense<0.000000e+00> : vector<2x8x128xf32>
    %35 = tpu.matmul %33, %34, %cst_13 {dimension_numbers = #tpu.dot_dimension_numbers<[2], [1], [1], [2], [0, 0, 0, 1, 1, 2], [0], [0]>} : vector<2x8x64xbf16>, vector<2x64x128xbf16>, vector<2x8x128xf32> -> vector<2x8x128xf32>
    "tpu.trace_stop"() : () -> ()
    %cst_14 = arith.constant dense<0.000000e+00> : vector<8x128xf32>
    %36 = vector.multi_reduction <add>, %35, %cst_14 [0] : vector<2x8x128xf32> to vector<8x128xf32>
    %c0_15 = arith.constant 0 : index
    %c0_16 = arith.constant 0 : index
    %37 = vector.load %arg5[%c0_15, %c0_16] : memref<1x128xf32, #tpu.memory_space<vmem>>, vector<1x128xf32>
    %38 = vector.broadcast %37 : vector<1x128xf32> to vector<8x128xf32>
    %39 = arith.addf %36, %38 : vector<8x128xf32>
    %40 = arith.addf %39, %2 : vector<8x128xf32>
    %c0_17 = arith.constant 0 : index
    %c0_18 = arith.constant 0 : index
    %41 = vector.load %arg6[%c0_17, %c0_18] : memref<1x128xf32, #tpu.memory_space<vmem>>, vector<1x128xf32>
    %c0_19 = arith.constant 0 : index
    %c0_20 = arith.constant 0 : index
    %42 = vector.load %arg7[%c0_19, %c0_20] : memref<1x128xf32, #tpu.memory_space<vmem>>, vector<1x128xf32>
    %cst_21 = arith.constant dense<0.000000e+00> : vector<8xf32>
    %43 = vector.multi_reduction <add>, %40, %cst_21 [1] : vector<8x128xf32> to vector<8xf32>
    %44 = vector.shape_cast %43 : vector<8xf32> to vector<8x1xf32>
    %cst_22 = arith.constant 1.280000e+02 : f32
    %45 = vector.broadcast %cst_22 : f32 to vector<8x1xf32>
    %46 = arith.divf %44, %45 : vector<8x1xf32>
    %47 = vector.broadcast %46 : vector<8x1xf32> to vector<8x128xf32>
    %48 = arith.subf %40, %47 : vector<8x128xf32>
    %49 = arith.mulf %48, %48 : vector<8x128xf32>
    %cst_23 = arith.constant dense<0.000000e+00> : vector<8xf32>
    %50 = vector.multi_reduction <add>, %49, %cst_23 [1] : vector<8x128xf32> to vector<8xf32>
    %51 = vector.shape_cast %50 : vector<8xf32> to vector<8x1xf32>
    %cst_24 = arith.constant 1.280000e+02 : f32
    %52 = vector.broadcast %cst_24 : f32 to vector<8x1xf32>
    %53 = arith.divf %51, %52 : vector<8x1xf32>
    %54 = vector.broadcast %46 : vector<8x1xf32> to vector<8x128xf32>
    %55 = arith.subf %40, %54 : vector<8x128xf32>
    %cst_25 = arith.constant 9.99999996E-13 : f32
    %56 = vector.broadcast %cst_25 : f32 to vector<8x1xf32>
    %57 = arith.addf %53, %56 : vector<8x1xf32>
    %58 = math.rsqrt %57 : vector<8x1xf32>
    %59 = vector.broadcast %58 : vector<8x1xf32> to vector<8x128xf32>
    %60 = arith.mulf %55, %59 : vector<8x128xf32>
    %61 = vector.broadcast %41 : vector<1x128xf32> to vector<8x128xf32>
    %62 = arith.mulf %60, %61 : vector<8x128xf32>
    %63 = vector.broadcast %42 : vector<1x128xf32> to vector<8x128xf32>
    %64 = arith.addf %62, %63 : vector<8x128xf32>
    %65 = arith.truncf %64 : vector<8x128xf32> to vector<8x128xbf16>
    %c0_26 = arith.constant 0 : index
    %c0_27 = arith.constant 0 : index
    %66 = vector.load %arg8[%c0_26, %c0_27] : memref<128x512xbf16, #tpu.memory_space<vmem>>, vector<128x512xbf16>
    %cst_28 = arith.constant dense<0.000000e+00> : vector<8x512xf32>
    %67 = tpu.matmul %65, %66, %cst_28 {dimension_numbers = #tpu.dot_dimension_numbers<[1], [0], [0], [1], [0, 0, 1, 1], [], []>} : vector<8x128xbf16>, vector<128x512xbf16>, vector<8x512xf32> -> vector<8x512xf32>
    %c0_29 = arith.constant 0 : index
    %c0_30 = arith.constant 0 : index
    %68 = vector.load %arg9[%c0_29, %c0_30] : memref<1x512xf32, #tpu.memory_space<vmem>>, vector<1x512xf32>
    %69 = vector.broadcast %68 : vector<1x512xf32> to vector<8x512xf32>
    %70 = arith.addf %67, %69 : vector<8x512xf32>
    %cst_31 = arith.constant 5.000000e-01 : f32
    %71 = vector.broadcast %cst_31 : f32 to vector<8x512xf32>
    %72 = arith.mulf %71, %70 : vector<8x512xf32>
    %cst_32 = arith.constant 4.471500e-02 : f32
    %73 = vector.broadcast %cst_32 : f32 to vector<8x512xf32>
    %74 = arith.mulf %73, %70 : vector<8x512xf32>
    %75 = arith.mulf %74, %70 : vector<8x512xf32>
    %76 = arith.mulf %75, %70 : vector<8x512xf32>
    %77 = arith.addf %70, %76 : vector<8x512xf32>
    %cst_33 = arith.constant 0.797884583 : f32
    %78 = vector.broadcast %cst_33 : f32 to vector<8x512xf32>
    %79 = arith.mulf %78, %77 : vector<8x512xf32>
    %80 = math.tanh %79 : vector<8x512xf32>
    %cst_34 = arith.constant 1.000000e+00 : f32
    %81 = vector.broadcast %cst_34 : f32 to vector<8x512xf32>
    %82 = arith.addf %81, %80 : vector<8x512xf32>
    %83 = arith.mulf %72, %82 : vector<8x512xf32>
    %84 = arith.truncf %83 : vector<8x512xf32> to vector<8x512xbf16>
    %c0_35 = arith.constant 0 : index
    %c0_36 = arith.constant 0 : index
    %85 = vector.load %arg10[%c0_35, %c0_36] : memref<512x128xbf16, #tpu.memory_space<vmem>>, vector<512x128xbf16>
    %cst_37 = arith.constant dense<0.000000e+00> : vector<8x128xf32>
    %86 = tpu.matmul %84, %85, %cst_37 {dimension_numbers = #tpu.dot_dimension_numbers<[1], [0], [0], [1], [0, 0, 1, 1], [], []>} : vector<8x512xbf16>, vector<512x128xbf16>, vector<8x128xf32> -> vector<8x128xf32>
    %c0_38 = arith.constant 0 : index
    %c0_39 = arith.constant 0 : index
    %87 = vector.load %arg11[%c0_38, %c0_39] : memref<1x128xf32, #tpu.memory_space<vmem>>, vector<1x128xf32>
    %88 = vector.broadcast %87 : vector<1x128xf32> to vector<8x128xf32>
    %89 = arith.addf %86, %88 : vector<8x128xf32>
    %90 = arith.addf %89, %64 : vector<8x128xf32>
    %c0_40 = arith.constant 0 : index
    %c0_41 = arith.constant 0 : index
    %91 = vector.load %arg12[%c0_40, %c0_41] : memref<1x128xf32, #tpu.memory_space<vmem>>, vector<1x128xf32>
    %c0_42 = arith.constant 0 : index
    %c0_43 = arith.constant 0 : index
    %92 = vector.load %arg13[%c0_42, %c0_43] : memref<1x128xf32, #tpu.memory_space<vmem>>, vector<1x128xf32>
    %cst_44 = arith.constant dense<0.000000e+00> : vector<8xf32>
    %93 = vector.multi_reduction <add>, %90, %cst_44 [1] : vector<8x128xf32> to vector<8xf32>
    %94 = vector.shape_cast %93 : vector<8xf32> to vector<8x1xf32>
    %cst_45 = arith.constant 1.280000e+02 : f32
    %95 = vector.broadcast %cst_45 : f32 to vector<8x1xf32>
    %96 = arith.divf %94, %95 : vector<8x1xf32>
    %97 = vector.broadcast %96 : vector<8x1xf32> to vector<8x128xf32>
    %98 = arith.subf %90, %97 : vector<8x128xf32>
    %99 = arith.mulf %98, %98 : vector<8x128xf32>
    %cst_46 = arith.constant dense<0.000000e+00> : vector<8xf32>
    %100 = vector.multi_reduction <add>, %99, %cst_46 [1] : vector<8x128xf32> to vector<8xf32>
    %101 = vector.shape_cast %100 : vector<8xf32> to vector<8x1xf32>
    %cst_47 = arith.constant 1.280000e+02 : f32
    %102 = vector.broadcast %cst_47 : f32 to vector<8x1xf32>
    %103 = arith.divf %101, %102 : vector<8x1xf32>
    %104 = vector.broadcast %96 : vector<8x1xf32> to vector<8x128xf32>
    %105 = arith.subf %90, %104 : vector<8x128xf32>
    %cst_48 = arith.constant 9.99999996E-13 : f32
    %106 = vector.broadcast %cst_48 : f32 to vector<8x1xf32>
    %107 = arith.addf %103, %106 : vector<8x1xf32>
    %108 = math.rsqrt %107 : vector<8x1xf32>
    %109 = vector.broadcast %108 : vector<8x1xf32> to vector<8x128xf32>
    %110 = arith.mulf %105, %109 : vector<8x128xf32>
    %111 = vector.broadcast %91 : vector<1x128xf32> to vector<8x128xf32>
    %112 = arith.mulf %110, %111 : vector<8x128xf32>
    %113 = vector.broadcast %92 : vector<1x128xf32> to vector<8x128xf32>
    %114 = arith.addf %112, %113 : vector<8x128xf32>
    %115 = arith.truncf %114 : vector<8x128xf32> to vector<8x128xbf16>
    %c0_49 = arith.constant 0 : index
    %c0_50 = arith.constant 0 : index
    %c0_51 = arith.constant 0 : index
    %116 = vector.load %arg14[%c0_49, %c0_50, %c0_51] : memref<1x8x128xbf16, #tpu.memory_space<vmem>>, vector<1x8x128xbf16>
    %117 = vector.shape_cast %116 : vector<1x8x128xbf16> to vector<8x128xbf16>
    %118 = vector.shape_cast %115 : vector<8x128xbf16> to vector<1x8x128xbf16>
    tpu.vector_store %arg14[%c0_49, %c0_50, %c0_51], %118 {strides = array<i32>} : memref<1x8x128xbf16, #tpu.memory_space<vmem>>, vector<1x8x128xbf16>,
    return
  }
  func.func @transform_0(%arg0: i32) -> (i32, i32, i32) {
    %c0_i32 = arith.constant 0 : i32
    %c0_i32_0 = arith.constant 0 : i32
    %c0_i32_1 = arith.constant 0 : i32
    return %arg0, %c0_i32, %c0_i32_0 : i32, i32, i32
  }
  func.func @transform_1(%arg0: i32) -> (i32, i32) {
    %c0_i32 = arith.constant 0 : i32
    %c0_i32_0 = arith.constant 0 : i32
    %c0_i32_1 = arith.constant 0 : i32
    return %c0_i32, %c0_i32_0 : i32, i32
  }
  func.func @transform_2(%arg0: i32) -> (i32, i32) {
    %c0_i32 = arith.constant 0 : i32
    %c0_i32_0 = arith.constant 0 : i32
    %c0_i32_1 = arith.constant 0 : i32
    return %c0_i32, %c0_i32_0 : i32, i32
  }
  func.func @transform_3(%arg0: i32) -> (i32, i32, i32) {
    %c0_i32 = arith.constant 0 : i32
    %c0_i32_0 = arith.constant 0 : i32
    %c0_i32_1 = arith.constant 0 : i32
    %c0_i32_2 = arith.constant 0 : i32
    return %c0_i32, %c0_i32_0, %c0_i32_1 : i32, i32, i32
  }
  func.func @transform_4(%arg0: i32) -> (i32, i32) {
    %c0_i32 = arith.constant 0 : i32
    %c0_i32_0 = arith.constant 0 : i32
    %c0_i32_1 = arith.constant 0 : i32
    return %c0_i32, %c0_i32_0 : i32, i32
  }
  func.func @transform_5(%arg0: i32) -> (i32, i32) {
    %c0_i32 = arith.constant 0 : i32
    %c0_i32_0 = arith.constant 0 : i32
    %c0_i32_1 = arith.constant 0 : i32
    return %c0_i32, %c0_i32_0 : i32, i32
  }
  func.func @transform_6(%arg0: i32) -> (i32, i32) {
    %c0_i32 = arith.constant 0 : i32
    %c0_i32_0 = arith.constant 0 : i32
    %c0_i32_1 = arith.constant 0 : i32
    return %c0_i32, %c0_i32_0 : i32, i32
  }
  func.func @transform_7(%arg0: i32) -> (i32, i32) {
    %c0_i32 = arith.constant 0 : i32
    %c0_i32_0 = arith.constant 0 : i32
    %c0_i32_1 = arith.constant 0 : i32
    return %c0_i32, %c0_i32_0 : i32, i32
  }
  func.func @transform_8(%arg0: i32) -> (i32, i32) {
    %c0_i32 = arith.constant 0 : i32
    %c0_i32_0 = arith.constant 0 : i32
    %c0_i32_1 = arith.constant 0 : i32
    return %c0_i32, %c0_i32_0 : i32, i32
  }
  func.func @transform_9(%arg0: i32) -> (i32, i32) {
    %c0_i32 = arith.constant 0 : i32
    %c0_i32_0 = arith.constant 0 : i32
    %c0_i32_1 = arith.constant 0 : i32
    return %c0_i32, %c0_i32_0 : i32, i32
  }
  func.func @transform_10(%arg0: i32) -> (i32, i32) {
    %c0_i32 = arith.constant 0 : i32
    %c0_i32_0 = arith.constant 0 : i32
    %c0_i32_1 = arith.constant 0 : i32
    return %c0_i32, %c0_i32_0 : i32, i32
  }
  func.func @transform_11(%arg0: i32) -> (i32, i32) {
    %c0_i32 = arith.constant 0 : i32
    %c0_i32_0 = arith.constant 0 : i32
    %c0_i32_1 = arith.constant 0 : i32
    return %c0_i32, %c0_i32_0 : i32, i32
  }
  func.func @transform_12(%arg0: i32) -> (i32, i32) {
    %c0_i32 = arith.constant 0 : i32
    %c0_i32_0 = arith.constant 0 : i32
    %c0_i32_1 = arith.constant 0 : i32
    return %c0_i32, %c0_i32_0 : i32, i32
  }
  func.func @transform_13(%arg0: i32) -> (i32, i32, i32) {
    %c0_i32 = arith.constant 0 : i32
    %c0_i32_0 = arith.constant 0 : i32
    %c0_i32_1 = arith.constant 0 : i32
    return %arg0, %c0_i32, %c0_i32_0 : i32, i32, i32
  }
}

module attributes {stable_mosaic.version = 11 : i64} {
  func.func @_layer_kernel(%arg0: i32, %arg1: memref<1x8x128xbf16, #tpu.memory_space<vmem>>, %arg2: memref<128x384xbf16, #tpu.memory_space<vmem>>, %arg3: memref<1x384xf32, #tpu.memory_space<vmem>>, %arg4: memref<2x64x128xbf16, #tpu.memory_space<vmem>>, %arg5: memref<1x128xf32, #tpu.memory_space<vmem>>, %arg6: memref<1x128xf32, #tpu.memory_space<vmem>>, %arg7: memref<1x128xf32, #tpu.memory_space<vmem>>, %arg8: memref<128x512xbf16, #tpu.memory_space<vmem>>, %arg9: memref<1x512xf32, #tpu.memory_space<vmem>>, %arg10: memref<512x128xbf16, #tpu.memory_space<vmem>>, %arg11: memref<1x128xf32, #tpu.memory_space<vmem>>, %arg12: memref<1x128xf32, #tpu.memory_space<vmem>>, %arg13: memref<1x128xf32, #tpu.memory_space<vmem>>, %arg14: memref<1x8x128xbf16, #tpu.memory_space<vmem>>) attributes {dimension_semantics = [#tpu.dimension_semantics<parallel>], iteration_bounds = array<i64: 2>, scalar_prefetch = 0 : i64, scratch_operands = 0 : i64, tpu.core_type = #tpu.core_type<tc>, window_params = [{transform_indices = @transform_0, window_bounds = array<i64: 1, 8, 128>}, {pipeline_mode = #tpu.pipeline_mode<synchronous>, transform_indices = @transform_1, window_bounds = array<i64: 128, 384>}, {pipeline_mode = #tpu.pipeline_mode<synchronous>, transform_indices = @transform_2, window_bounds = array<i64: 1, 384>}, {pipeline_mode = #tpu.pipeline_mode<synchronous>, transform_indices = @transform_3, window_bounds = array<i64: 2, 64, 128>}, {pipeline_mode = #tpu.pipeline_mode<synchronous>, transform_indices = @transform_4, window_bounds = array<i64: 1, 128>}, {pipeline_mode = #tpu.pipeline_mode<synchronous>, transform_indices = @transform_5, window_bounds = array<i64: 1, 128>}, {pipeline_mode = #tpu.pipeline_mode<synchronous>, transform_indices = @transform_6, window_bounds = array<i64: 1, 128>}, {pipeline_mode = #tpu.pipeline_mode<synchronous>, transform_indices = @transform_7, window_bounds = array<i64: 128, 512>}, {pipeline_mode = #tpu.pipeline_mode<synchronous>, transform_indices = @transform_8, window_bounds = array<i64: 1, 512>}, {pipeline_mode = #tpu.pipeline_mode<synchronous>, transform_indices = @transform_9, window_bounds = array<i64: 512, 128>}, {pipeline_mode = #tpu.pipeline_mode<synchronous>, transform_indices = @transform_10, window_bounds = array<i64: 1, 128>}, {pipeline_mode = #tpu.pipeline_mode<synchronous>, transform_indices = @transform_11, window_bounds = array<i64: 1, 128>}, {pipeline_mode = #tpu.pipeline_mode<synchronous>, transform_indices = @transform_12, window_bounds = array<i64: 1, 128>}, {transform_indices = @transform_13, window_bounds = array<i64: 1, 8, 128>}]} {
    %c0 = arith.constant 0 : index
    %c0_0 = arith.constant 0 : index
    %c0_1 = arith.constant 0 : index
    %0 = vector.load %arg1[%c0, %c0_0, %c0_1] : memref<1x8x128xbf16, #tpu.memory_space<vmem>>, vector<1x8x128xbf16>
    %1 = vector.shape_cast %0 : vector<1x8x128xbf16> to vector<8x128xbf16>
    %2 = arith.extf %1 : vector<8x128xbf16> to vector<8x128xf32>
    %c0_2 = arith.constant 0 : index
    %c0_3 = arith.constant 0 : index
    %3 = vector.load %arg2[%c0_2, %c0_3] : memref<128x384xbf16, #tpu.memory_space<vmem>>, vector<128x384xbf16>
    %cst = arith.constant dense<0.000000e+00> : vector<8x384xf32>
    %4 = tpu.matmul %1, %3, %cst {dimension_numbers = #tpu.dot_dimension_numbers<[1], [0], [0], [1], [0, 0, 1, 1], [], []>} : vector<8x128xbf16>, vector<128x384xbf16>, vector<8x384xf32> -> vector<8x384xf32>
    %c0_4 = arith.constant 0 : index
    %c0_5 = arith.constant 0 : index
    %5 = vector.load %arg3[%c0_4, %c0_5] : memref<1x384xf32, #tpu.memory_space<vmem>>, vector<1x384xf32>
    %6 = vector.broadcast %5 : vector<1x384xf32> to vector<8x384xf32>
    %7 = arith.addf %4, %6 : vector<8x384xf32>
    %8 = vector.extract_strided_slice %7 {offsets = [0, 0], sizes = [8, 128], strides = [1, 1]} : vector<8x384xf32> to vector<8x128xf32>
    %9 = arith.truncf %8 : vector<8x128xf32> to vector<8x128xbf16>
    %10 = vector.shape_cast %9 : vector<8x128xbf16> to vector<8x2x64xbf16>
    %11 = tpu.transpose %10, [1, 0, 2] : vector<8x2x64xbf16> -> vector<2x8x64xbf16>
    %12 = vector.extract_strided_slice %7 {offsets = [0, 128], sizes = [8, 128], strides = [1, 1]} : vector<8x384xf32> to vector<8x128xf32>
    %13 = arith.truncf %12 : vector<8x128xf32> to vector<8x128xbf16>
    %14 = vector.shape_cast %13 : vector<8x128xbf16> to vector<8x2x64xbf16>
    %15 = tpu.transpose %14, [1, 0, 2] : vector<8x2x64xbf16> -> vector<2x8x64xbf16>
    %16 = vector.extract_strided_slice %7 {offsets = [0, 256], sizes = [8, 128], strides = [1, 1]} : vector<8x384xf32> to vector<8x128xf32>
    %17 = arith.truncf %16 : vector<8x128xf32> to vector<8x128xbf16>
    %18 = vector.shape_cast %17 : vector<8x128xbf16> to vector<8x2x64xbf16>
    %19 = tpu.transpose %18, [1, 0, 2] : vector<8x2x64xbf16> -> vector<2x8x64xbf16>
    "tpu.trace_start"() <{level = 10 : i32, message = "hqd,hkd->hqk"}> : () -> ()
    %cst_6 = arith.constant dense<0.000000e+00> : vector<2x8x8xf32>
    %20 = tpu.matmul %11, %15, %cst_6 {dimension_numbers = #tpu.dot_dimension_numbers<[2], [2], [1], [1], [0, 0, 0, 1, 1, 1], [0], [0]>} : vector<2x8x64xbf16>, vector<2x8x64xbf16>, vector<2x8x8xf32> -> vector<2x8x8xf32>
    "tpu.trace_stop"() : () -> ()
    %cst_7 = arith.constant dense<0xFF800000> : vector<2x8xf32>
    %21 = vector.multi_reduction <maximumf>, %20, %cst_7 [2] : vector<2x8x8xf32> to vector<2x8xf32>
    %22 = vector.shape_cast %21 : vector<2x8xf32> to vector<2x8x1xf32>
    %23 = vector.broadcast %22 : vector<2x8x1xf32> to vector<2x8x8xf32>
    %24 = arith.subf %20, %23 : vector<2x8x8xf32>
    %25 = math.exp %24 : vector<2x8x8xf32>
    %cst_8 = arith.constant dense<0.000000e+00> : vector<2x8xf32>
    %26 = vector.multi_reduction <add>, %25, %cst_8 [2] : vector<2x8x8xf32> to vector<2x8xf32>
    %27 = vector.shape_cast %26 : vector<2x8xf32> to vector<2x8x1xf32>
    %28 = tpu.reciprocal %27 {approx = true} : vector<2x8x1xf32> -> vector<2x8x1xf32>
    %29 = vector.broadcast %28 : vector<2x8x1xf32> to vector<2x8x8xf32>
    %30 = arith.mulf %25, %29 : vector<2x8x8xf32>
    %31 = arith.truncf %30 : vector<2x8x8xf32> to vector<2x8x8xbf16>
    "tpu.trace_start"() <{level = 10 : i32, message = "hqk,hkd->hqd"}> : () -> ()
    %cst_9 = arith.constant dense<0.000000e+00> : vector<2x8x64xf32>
    %32 = tpu.matmul %31, %19, %cst_9 {dimension_numbers = #tpu.dot_dimension_numbers<[2], [1], [1], [2], [0, 0, 0, 1, 1, 2], [0], [0]>} : vector<2x8x8xbf16>, vector<2x8x64xbf16>, vector<2x8x64xf32> -> vector<2x8x64xf32>
    "tpu.trace_stop"() : () -> ()
    %33 = arith.truncf %32 : vector<2x8x64xf32> to vector<2x8x64xbf16>
    %c0_10 = arith.constant 0 : index
    %c0_11 = arith.constant 0 : index
    %c0_12 = arith.constant 0 : index
    %34 = vector.load %arg4[%c0_10, %c0_11, %c0_12] : memref<2x64x128xbf16, #tpu.memory_space<vmem>>, vector<2x64x128xbf16>
    "tpu.trace_start"() <{level = 10 : i32, message = "hqd,hdk->hqk"}> : () -> ()
    %cst_13 = arith.constant dense<0.000000e+00> : vector<2x8x128xf32>
    %35 = tpu.matmul %33, %34, %cst_13 {dimension_numbers = #tpu.dot_dimension_numbers<[2], [1], [1], [2], [0, 0, 0, 1, 1, 2], [0], [0]>} : vector<2x8x64xbf16>, vector<2x64x128xbf16>, vector<2x8x128xf32> -> vector<2x8x128xf32>
    "tpu.trace_stop"() : () -> ()
    %cst_14 = arith.constant dense<0.000000e+00> : vector<8x128xf32>
    %36 = vector.multi_reduction <add>, %35, %cst_14 [0] : vector<2x8x128xf32> to vector<8x128xf32>
    %c0_15 = arith.constant 0 : index
    %c0_16 = arith.constant 0 : index
    %37 = vector.load %arg5[%c0_15, %c0_16] : memref<1x128xf32, #tpu.memory_space<vmem>>, vector<1x128xf32>
    %38 = vector.broadcast %37 : vector<1x128xf32> to vector<8x128xf32>
    %39 = arith.addf %36, %38 : vector<8x128xf32>
    %40 = arith.addf %39, %2 : vector<8x128xf32>
    %c0_17 = arith.constant 0 : index
    %c0_18 = arith.constant 0 : index
    %41 = vector.load %arg6[%c0_17, %c0_18] : memref<1x128xf32, #tpu.memory_space<vmem>>, vector<1x128xf32>
    %c0_19 = arith.constant 0 : index
    %c0_20 = arith.constant 0 : index
    %42 = vector.load %arg7[%c0_19, %c0_20] : memref<1x128xf32, #tpu.memory_space<vmem>>, vector<1x128xf32>
    %cst_21 = arith.constant dense<0.000000e+00> : vector<8xf32>
    %43 = vector.multi_reduction <add>, %40, %cst_21 [1] : vector<8x128xf32> to vector<8xf32>
    %44 = vector.shape_cast %43 : vector<8xf32> to vector<8x1xf32>
    %cst_22 = arith.constant 1.280000e+02 : f32
    %45 = vector.broadcast %cst_22 : f32 to vector<8x1xf32>
    %46 = arith.divf %44, %45 : vector<8x1xf32>
    %47 = vector.broadcast %46 : vector<8x1xf32> to vector<8x128xf32>
    %48 = arith.subf %40, %47 : vector<8x128xf32>
    %49 = arith.mulf %48, %48 : vector<8x128xf32>
    %cst_23 = arith.constant dense<0.000000e+00> : vector<8xf32>
    %50 = vector.multi_reduction <add>, %49, %cst_23 [1] : vector<8x128xf32> to vector<8xf32>
    %51 = vector.shape_cast %50 : vector<8xf32> to vector<8x1xf32>
    %cst_24 = arith.constant 1.280000e+02 : f32
    %52 = vector.broadcast %cst_24 : f32 to vector<8x1xf32>
    %53 = arith.divf %51, %52 : vector<8x1xf32>
    %54 = vector.broadcast %46 : vector<8x1xf32> to vector<8x128xf32>
    %55 = arith.subf %40, %54 : vector<8x128xf32>
    %cst_25 = arith.constant 9.99999996E-13 : f32
    %56 = vector.broadcast %cst_25 : f32 to vector<8x1xf32>
    %57 = arith.addf %53, %56 : vector<8x1xf32>
    %58 = math.rsqrt %57 : vector<8x1xf32>
    %59 = vector.broadcast %58 : vector<8x1xf32> to vector<8x128xf32>
    %60 = arith.mulf %55, %59 : vector<8x128xf32>
    %61 = vector.broadcast %41 : vector<1x128xf32> to vector<8x128xf32>
    %62 = arith.mulf %60, %61 : vector<8x128xf32>
    %63 = vector.broadcast %42 : vector<1x128xf32> to vector<8x128xf32>
    %64 = arith.addf %62, %63 : vector<8x128xf32>
    %65 = arith.truncf %64 : vector<8x128xf32> to vector<8x128xbf16>
    %c0_26 = arith.constant 0 : index
    %c0_27 = arith.constant 0 : index
    %66 = vector.load %arg8[%c0_26, %c0_27] : memref<128x512xbf16, #tpu.memory_space<vmem>>, vector<128x512xbf16>
    %cst_28 = arith.constant dense<0.000000e+00> : vector<8x512xf32>
    %67 = tpu.matmul %65, %66, %cst_28 {dimension_numbers = #tpu.dot_dimension_numbers<[1], [0], [0], [1], [0, 0, 1, 1], [], []>} : vector<8x128xbf16>, vector<128x512xbf16>, vector<8x512xf32> -> vector<8x512xf32>
    %c0_29 = arith.constant 0 : index
    %c0_30 = arith.constant 0 : index
    %68 = vector.load %arg9[%c0_29, %c0_30] : memref<1x512xf32, #tpu.memory_space<vmem>>, vector<1x512xf32>
    %69 = vector.broadcast %68 : vector<1x512xf32> to vector<8x512xf32>
    %70 = arith.addf %67, %69 : vector<8x512xf32>
    %cst_31 = arith.constant 5.000000e-01 : f32
    %71 = vector.broadcast %cst_31 : f32 to vector<8x512xf32>
    %72 = arith.mulf %71, %70 : vector<8x512xf32>
    %cst_32 = arith.constant 4.471500e-02 : f32
    %73 = vector.broadcast %cst_32 : f32 to vector<8x512xf32>
    %74 = arith.mulf %73, %70 : vector<8x512xf32>
    %75 = arith.mulf %74, %70 : vector<8x512xf32>
    %76 = arith.mulf %75, %70 : vector<8x512xf32>
    %77 = arith.addf %70, %76 : vector<8x512xf32>
    %cst_33 = arith.constant 0.797884583 : f32
    %78 = vector.broadcast %cst_33 : f32 to vector<8x512xf32>
    %79 = arith.mulf %78, %77 : vector<8x512xf32>
    %80 = math.tanh %79 : vector<8x512xf32>
    %cst_34 = arith.constant 1.000000e+00 : f32
    %81 = vector.broadcast %cst_34 : f32 to vector<8x512xf32>
    %82 = arith.addf %81, %80 : vector<8x512xf32>
    %83 = arith.mulf %72, %82 : vector<8x512xf32>
    %84 = arith.truncf %83 : vector<8x512xf32> to vector<8x512xbf16>
    %c0_35 = arith.constant 0 : index
    %c0_36 = arith.constant 0 : index
    %85 = vector.load %arg10[%c0_35, %c0_36] : memref<512x128xbf16, #tpu.memory_space<vmem>>, vector<512x128xbf16>
    %cst_37 = arith.constant dense<0.000000e+00> : vector<8x128xf32>
    %86 = tpu.matmul %84, %85, %cst_37 {dimension_numbers = #tpu.dot_dimension_numbers<[1], [0], [0], [1], [0, 0, 1, 1], [], []>} : vector<8x512xbf16>, vector<512x128xbf16>, vector<8x128xf32> -> vector<8x128xf32>
    %c0_38 = arith.constant 0 : index
    %c0_39 = arith.constant 0 : index
    %87 = vector.load %arg11[%c0_38, %c0_39] : memref<1x128xf32, #tpu.memory_space<vmem>>, vector<1x128xf32>
    %88 = vector.broadcast %87 : vector<1x128xf32> to vector<8x128xf32>
    %89 = arith.addf %86, %88 : vector<8x128xf32>
    %90 = arith.addf %89, %64 : vector<8x128xf32>
    %c0_40 = arith.constant 0 : index
    %c0_41 = arith.constant 0 : index
    %91 = vector.load %arg12[%c0_40, %c0_41] : memref<1x128xf32, #tpu.memory_space<vmem>>, vector<1x128xf32>
    %c0_42 = arith.constant 0 : index
    %c0_43 = arith.constant 0 : index
    %92 = vector.load %arg13[%c0_42, %c0_43] : memref<1x128xf32, #tpu.memory_space<vmem>>, vector<1x128xf32>
    %cst_44 = arith.constant dense<0.000000e+00> : vector<8xf32>
    %93 = vector.multi_reduction <add>, %90, %cst_44 [1] : vector<8x128xf32> to vector<8xf32>
    %94 = vector.shape_cast %93 : vector<8xf32> to vector<8x1xf32>
    %cst_45 = arith.constant 1.280000e+02 : f32
    %95 = vector.broadcast %cst_45 : f32 to vector<8x1xf32>
    %96 = arith.divf %94, %95 : vector<8x1xf32>
    %97 = vector.broadcast %96 : vector<8x1xf32> to vector<8x128xf32>
    %98 = arith.subf %90, %97 : vector<8x128xf32>
    %99 = arith.mulf %98, %98 : vector<8x128xf32>
    %cst_46 = arith.constant dense<0.000000e+00> : vector<8xf32>
    %100 = vector.multi_reduction <add>, %99, %cst_46 [1] : vector<8x128xf32> to vector<8xf32>
    %101 = vector.shape_cast %100 : vector<8xf32> to vector<8x1xf32>
    %cst_47 = arith.constant 1.280000e+02 : f32
    %102 = vector.broadcast %cst_47 : f32 to vector<8x1xf32>
    %103 = arith.divf %101, %102 : vector<8x1xf32>
    %104 = vector.broadcast %96 : vector<8x1xf32> to vector<8x128xf32>
    %105 = arith.subf %90, %104 : vector<8x128xf32>
    %cst_48 = arith.constant 9.99999996E-13 : f32
    %106 = vector.broadcast %cst_48 : f32 to vector<8x1xf32>
    %107 = arith.addf %103, %106 : vector<8x1xf32>
    %108 = math.rsqrt %107 : vector<8x1xf32>
    %109 = vector.broadcast %108 : vector<8x1xf32> to vector<8x128xf32>
    %110 = arith.mulf %105, %109 : vector<8x128xf32>
    %111 = vector.broadcast %91 : vector<1x128xf32> to vector<8x128xf32>
    %112 = arith.mulf %110, %111 : vector<8x128xf32>
    %113 = vector.broadcast %92 : vector<1x128xf32> to vector<8x128xf32>
    %114 = arith.addf %112, %113 : vector<8x128xf32>
    %115 = arith.truncf %114 : vector<8x128xf32> to vector<8x128xbf16>
    %c0_49 = arith.constant 0 : index
    %c0_50 = arith.constant 0 : index
    %c0_51 = arith.constant 0 : index
    %116 = vector.load %arg14[%c0_49, %c0_50, %c0_51] : memref<1x8x128xbf16, #tpu.memory_space<vmem>>, vector<1x8x128xbf16>
    %117 = vector.shape_cast %116 : vector<1x8x128xbf16> to vector<8x128xbf16>
    %118 = vector.shape_cast %115 : vector<8x128xbf16> to vector<1x8x128xbf16>
    tpu.vector_store %arg14[%c0_49, %c0_50, %c0_51], %118 {strides = array<i32>} : memref<1x8x128xbf16, #tpu.memory_space<vmem>>, vector<1x8x128xbf16>,
    return
  }
  func.func @transform_0(%arg0: i32) -> (i32, i32, i32) {
    %c0_i32 = arith.constant 0 : i32
    %c0_i32_0 = arith.constant 0 : i32
    %c0_i32_1 = arith.constant 0 : i32
    return %arg0, %c0_i32, %c0_i32_0 : i32, i32, i32
  }
  func.func @transform_1(%arg0: i32) -> (i32, i32) {
    %c0_i32 = arith.constant 0 : i32
    %c0_i32_0 = arith.constant 0 : i32
    %c0_i32_1 = arith.constant 0 : i32
    return %c0_i32, %c0_i32_0 : i32, i32
  }
  func.func @transform_2(%arg0: i32) -> (i32, i32) {
    %c0_i32 = arith.constant 0 : i32
    %c0_i32_0 = arith.constant 0 : i32
    %c0_i32_1 = arith.constant 0 : i32
    return %c0_i32, %c0_i32_0 : i32, i32
  }
  func.func @transform_3(%arg0: i32) -> (i32, i32, i32) {
    %c0_i32 = arith.constant 0 : i32
    %c0_i32_0 = arith.constant 0 : i32
    %c0_i32_1 = arith.constant 0 : i32
    %c0_i32_2 = arith.constant 0 : i32
    return %c0_i32, %c0_i32_0, %c0_i32_1 : i32, i32, i32
  }
  func.func @transform_4(%arg0: i32) -> (i32, i32) {
    %c0_i32 = arith.constant 0 : i32
    %c0_i32_0 = arith.constant 0 : i32
    %c0_i32_1 = arith.constant 0 : i32
    return %c0_i32, %c0_i32_0 : i32, i32
  }
  func.func @transform_5(%arg0: i32) -> (i32, i32) {
    %c0_i32 = arith.constant 0 : i32
    %c0_i32_0 = arith.constant 0 : i32
    %c0_i32_1 = arith.constant 0 : i32
    return %c0_i32, %c0_i32_0 : i32, i32
  }
  func.func @transform_6(%arg0: i32) -> (i32, i32) {
    %c0_i32 = arith.constant 0 : i32
    %c0_i32_0 = arith.constant 0 : i32
    %c0_i32_1 = arith.constant 0 : i32
    return %c0_i32, %c0_i32_0 : i32, i32
  }
  func.func @transform_7(%arg0: i32) -> (i32, i32) {
    %c0_i32 = arith.constant 0 : i32
    %c0_i32_0 = arith.constant 0 : i32
    %c0_i32_1 = arith.constant 0 : i32
    return %c0_i32, %c0_i32_0 : i32, i32
  }
  func.func @transform_8(%arg0: i32) -> (i32, i32) {
    %c0_i32 = arith.constant 0 : i32
    %c0_i32_0 = arith.constant 0 : i32
    %c0_i32_1 = arith.constant 0 : i32
    return %c0_i32, %c0_i32_0 : i32, i32
  }
  func.func @transform_9(%arg0: i32) -> (i32, i32) {
    %c0_i32 = arith.constant 0 : i32
    %c0_i32_0 = arith.constant 0 : i32
    %c0_i32_1 = arith.constant 0 : i32
    return %c0_i32, %c0_i32_0 : i32, i32
  }
  func.func @transform_10(%arg0: i32) -> (i32, i32) {
    %c0_i32 = arith.constant 0 : i32
    %c0_i32_0 = arith.constant 0 : i32
    %c0_i32_1 = arith.constant 0 : i32
    return %c0_i32, %c0_i32_0 : i32, i32
  }
  func.func @transform_11(%arg0: i32) -> (i32, i32) {
    %c0_i32 = arith.constant 0 : i32
    %c0_i32_0 = arith.constant 0 : i32
    %c0_i32_1 = arith.constant 0 : i32
    return %c0_i32, %c0_i32_0 : i32, i32
  }
  func.func @transform_12(%arg0: i32) -> (i32, i32) {
    %c0_i32 = arith.constant 0 : i32
    %c0_i32_0 = arith.constant 0 : i32
    %c0_i32_1 = arith.constant 0 : i32
    return %c0_i32, %c0_i32_0 : i32, i32
  }
  func.func @transform_13(%arg0: i32) -> (i32, i32, i32) {
    %c0_i32 = arith.constant 0 : i32
    %c0_i32_0 = arith.constant 0 : i32
    %c0_i32_1 = arith.constant 0 : i32
    return %arg0, %c0_i32, %c0_i32_0 : i32, i32, i32
  }
}

</mosaic_0001>

<llo_original>
// kernel: modified_bert_model.3
$region0: #{modified_bert_model.3}
  #allocation0 [shape = 'u32[]', space=smem, size = 0x4, offset = 0x4, fixed_abs, tag = 'smem constant byte address 0x4 - core index']
  #allocation1 [shape = 'u32[144,128]{1,0:T(1,128)}', space=vmem, size = 0x12000, scoped, tag = 'internal scratch']
  %s0 = inlined_call_operand.vmem [shape: bf16[2,8,128], index: 0, kind: input, shape index: {}]
  %s1 = inlined_call_operand.vmem [shape: bf16[128,384], index: 1, kind: input, shape index: {}]
  %s2 = inlined_call_operand.vmem [shape: f32[1,384], index: 2, kind: input, shape index: {}]
  %s3 = inlined_call_operand.vmem [shape: bf16[2,64,128], index: 3, kind: input, shape index: {}]
  %s4 = inlined_call_operand.vmem [shape: f32[1,128], index: 4, kind: input, shape index: {}]
  %s5 = inlined_call_operand.vmem [shape: f32[1,128], index: 5, kind: input, shape index: {}]
  %s6 = inlined_call_operand.vmem [shape: f32[1,128], index: 6, kind: input, shape index: {}]
  %s7 = inlined_call_operand.vmem [shape: bf16[128,512], index: 7, kind: input, shape index: {}]
  %s8 = inlined_call_operand.vmem [shape: f32[1,512], index: 8, kind: input, shape index: {}]
  %s9 = inlined_call_operand.vmem [shape: bf16[512,128], index: 9, kind: input, shape index: {}]
  %s10 = inlined_call_operand.vmem [shape: f32[1,128], index: 10, kind: input, shape index: {}]
  %s11 = inlined_call_operand.vmem [shape: f32[1,128], index: 11, kind: input, shape index: {}]
  %s12 = inlined_call_operand.vmem [shape: f32[1,128], index: 12, kind: input, shape index: {}]
  %s13 = inlined_call_operand.vmem [shape: bf16[2,8,128], index: 13, kind: output, shape index: {}]
  %s14 = sld [smem:[#allocation0]]
  $region85: #{modified_bert_model.3} parent=0
    _
  %s16 = ssub.s32 1, %s14
  %s17 = scalar_select 0, %s16, %s14
  loop: start=0, step=1, limit=4
  $region2: #{modified_bert_model.3} parent=0 // loop_pre_header
    _
  $region3: #{modified_bert_model.3} parent=0 // loop_header
    %s19 = sphi 0, %s23
    %p20 = scmp.ge.s32.totalorder %s19, 4
    %s29 = sphi 0, %s31
    %s32 = sphi 0, %s29
    %s33 = sphi 0, %s32
    %s49 = sphi 0, %s33
    %s53 = sphi 0, %s53
    %s55 = sphi 0, %s53
    %s56 = sphi 0, %s55
    %s70 = sphi 0, %s56
    %s74 = sphi 0, %s74
    %s76 = sphi 0, %s74
    %s77 = sphi 0, %s76
    %s91 = sphi 0, %s77
    %s95 = sphi 0, %s95
    %s97 = sphi 0, %s95
    %s98 = sphi 0, %s97
    %s112 = sphi 0, %s98
    %s116 = sphi 0, %s116
    %s118 = sphi 0, %s116
    %s119 = sphi 0, %s118
    %s133 = sphi 0, %s119
    %s137 = sphi 0, %s137
    %s139 = sphi 0, %s137
    %s140 = sphi 0, %s139
    %s154 = sphi 0, %s140
    %s158 = sphi 0, %s158
    %s160 = sphi 0, %s158
    %s161 = sphi 0, %s160
    %s175 = sphi 0, %s161
    %s179 = sphi 0, %s179
    %s181 = sphi 0, %s179
    %s182 = sphi 0, %s181
    %s196 = sphi 0, %s182
    %s200 = sphi 0, %s200
    %s202 = sphi 0, %s200
    %s203 = sphi 0, %s202
    %s217 = sphi 0, %s203
    %s221 = sphi 0, %s221
    %s223 = sphi 0, %s221
    %s224 = sphi 0, %s223
    %s238 = sphi 0, %s224
    %s242 = sphi 0, %s242
    %s244 = sphi 0, %s242
    %s245 = sphi 0, %s244
    %s259 = sphi 0, %s245
    %s263 = sphi 0, %s263
    %s265 = sphi 0, %s263
    %s266 = sphi 0, %s265
    %s280 = sphi 0, %s266
    %s284 = sphi 0, %s284
    %s286 = sphi 0, %s284
    %s287 = sphi 0, %s286
    %s301 = sphi 0, %s287
    %s307 = sphi 0, %s309
    %s310 = sphi 0, %s307
    %s311 = sphi 0, %s310
    %s327 = sphi 0, %s311
  $region4: #{modified_bert_model.3} parent=0 // loop_header_branch
    %22 = sbr.rel (%p20) target = $region8
  $region5: #{modified_bert_model.3} parent=0 // loop_body
    %s24 = ssub.s32 %s19, 1
    %s25 = ssub.s32 %s19, 2
    %s26 = sadd.s32 %s19, 1
    %s27 = ssub.s32 %s19, %s26
    %p28 = scmp.eq.s32.totalorder %s27, 0
    %s30 = sadd.s32 %s29, 1
    %s31 = scalar_select %p28, %s29, %s30
    %p34 = pneg %p28
    %p35 = scmp.eq.s32.totalorder %s19, 1
    %p36 = por %p34, %p35
    %p37 = scmp.ne.s32.totalorder %s29, %s32
    %p38 = scmp.eq.s32.totalorder %s19, 0
    %p39 = por %p37, %p38
    %p40 = scmp.ne.s32.totalorder %s29, %s32
    %p41 = scmp.eq.s32.totalorder %s24, 1
    %p42 = por %p40, %p41
    %p43 = scmp.ne.s32.totalorder %s32, %s33
    %p44 = scmp.eq.s32.totalorder %s24, 0
    %p45 = por %p43, %p44
    %p46 = scmp.ne.s32.totalorder %s32, %s33
    %p47 = scmp.eq.s32.totalorder %s25, 1
    %p48 = por %p46, %p47
    %p50 = scmp.ne.s32.totalorder %s33, %s49
    %p51 = scmp.eq.s32.totalorder %s25, 0
    %p52 = por %p50, %p51
    %s54 = sadd.s32 %s53, 1
    %p57 = scmp.eq.s32.totalorder %s19, 1
    %p58 = scmp.ne.s32.totalorder %s53, %s55
    %p59 = scmp.eq.s32.totalorder %s19, 0
    %p60 = por %p58, %p59
    %p61 = scmp.ne.s32.totalorder %s53, %s55
    %p62 = scmp.eq.s32.totalorder %s24, 1
    %p63 = por %p61, %p62
    %p64 = scmp.ne.s32.totalorder %s55, %s56
    %p65 = scmp.eq.s32.totalorder %s24, 0
    %p66 = por %p64, %p65
    %p67 = scmp.ne.s32.totalorder %s55, %s56
    %p68 = scmp.eq.s32.totalorder %s25, 1
    %p69 = por %p67, %p68
    %p71 = scmp.ne.s32.totalorder %s56, %s70
    %p72 = scmp.eq.s32.totalorder %s25, 0
    %p73 = por %p71, %p72
    %s75 = sadd.s32 %s74, 1
    %p78 = scmp.eq.s32.totalorder %s19, 1
    %p79 = scmp.ne.s32.totalorder %s74, %s76
    %p80 = scmp.eq.s32.totalorder %s19, 0
    %p81 = por %p79, %p80
    %p82 = scmp.ne.s32.totalorder %s74, %s76
    %p83 = scmp.eq.s32.totalorder %s24, 1
    %p84 = por %p82, %p83
    %p85 = scmp.ne.s32.totalorder %s76, %s77
    %p86 = scmp.eq.s32.totalorder %s24, 0
    %p87 = por %p85, %p86
    %p88 = scmp.ne.s32.totalorder %s76, %s77
    %p89 = scmp.eq.s32.totalorder %s25, 1
    %p90 = por %p88, %p89
    %p92 = scmp.ne.s32.totalorder %s77, %s91
    %p93 = scmp.eq.s32.totalorder %s25, 0
    %p94 = por %p92, %p93
    %s96 = sadd.s32 %s95, 1
    %p99 = scmp.eq.s32.totalorder %s19, 1
    %p100 = scmp.ne.s32.totalorder %s95, %s97
    %p101 = scmp.eq.s32.totalorder %s19, 0
    %p102 = por %p100, %p101
    %p103 = scmp.ne.s32.totalorder %s95, %s97
    %p104 = scmp.eq.s32.totalorder %s24, 1
    %p105 = por %p103, %p104
    %p106 = scmp.ne.s32.totalorder %s97, %s98
    %p107 = scmp.eq.s32.totalorder %s24, 0
    %p108 = por %p106, %p107
    %p109 = scmp.ne.s32.totalorder %s97, %s98
    %p110 = scmp.eq.s32.totalorder %s25, 1
    %p111 = por %p109, %p110
    %p113 = scmp.ne.s32.totalorder %s98, %s112
    %p114 = scmp.eq.s32.totalorder %s25, 0
    %p115 = por %p113, %p114
    %s117 = sadd.s32 %s116, 1
    %p120 = scmp.eq.s32.totalorder %s19, 1
    %p121 = scmp.ne.s32.totalorder %s116, %s118
    %p122 = scmp.eq.s32.totalorder %s19, 0
    %p123 = por %p121, %p122
    %p124 = scmp.ne.s32.totalorder %s116, %s118
    %p125 = scmp.eq.s32.totalorder %s24, 1
    %p126 = por %p124, %p125
    %p127 = scmp.ne.s32.totalorder %s118, %s119
    %p128 = scmp.eq.s32.totalorder %s24, 0
    %p129 = por %p127, %p128
    %p130 = scmp.ne.s32.totalorder %s118, %s119
    %p131 = scmp.eq.s32.totalorder %s25, 1
    %p132 = por %p130, %p131
    %p134 = scmp.ne.s32.totalorder %s119, %s133
    %p135 = scmp.eq.s32.totalorder %s25, 0
    %p136 = por %p134, %p135
    %s138 = sadd.s32 %s137, 1
    %p141 = scmp.eq.s32.totalorder %s19, 1
    %p142 = scmp.ne.s32.totalorder %s137, %s139
    %p143 = scmp.eq.s32.totalorder %s19, 0
    %p144 = por %p142, %p143
    %p145 = scmp.ne.s32.totalorder %s137, %s139
    %p146 = scmp.eq.s32.totalorder %s24, 1
    %p147 = por %p145, %p146
    %p148 = scmp.ne.s32.totalorder %s139, %s140
    %p149 = scmp.eq.s32.totalorder %s24, 0
    %p150 = por %p148, %p149
    %p151 = scmp.ne.s32.totalorder %s139, %s140
    %p152 = scmp.eq.s32.totalorder %s25, 1
    %p153 = por %p151, %p152
    %p155 = scmp.ne.s32.totalorder %s140, %s154
    %p156 = scmp.eq.s32.totalorder %s25, 0
    %p157 = por %p155, %p156
    %s159 = sadd.s32 %s158, 1
    %p162 = scmp.eq.s32.totalorder %s19, 1
    %p163 = scmp.ne.s32.totalorder %s158, %s160
    %p164 = scmp.eq.s32.totalorder %s19, 0
    %p165 = por %p163, %p164
    %p166 = scmp.ne.s32.totalorder %s158, %s160
    %p167 = scmp.eq.s32.totalorder %s24, 1
    %p168 = por %p166, %p167
    %p169 = scmp.ne.s32.totalorder %s160, %s161
    %p170 = scmp.eq.s32.totalorder %s24, 0
    %p171 = por %p169, %p170
    %p172 = scmp.ne.s32.totalorder %s160, %s161
    %p173 = scmp.eq.s32.totalorder %s25, 1
    %p174 = por %p172, %p173
    %p176 = scmp.ne.s32.totalorder %s161, %s175
    %p177 = scmp.eq.s32.totalorder %s25, 0
    %p178 = por %p176, %p177
    %s180 = sadd.s32 %s179, 1
    %p183 = scmp.eq.s32.totalorder %s19, 1
    %p184 = scmp.ne.s32.totalorder %s179, %s181
    %p185 = scmp.eq.s32.totalorder %s19, 0
    %p186 = por %p184, %p185
    %p187 = scmp.ne.s32.totalorder %s179, %s181
    %p188 = scmp.eq.s32.totalorder %s24, 1
    %p189 = por %p187, %p188
    %p190 = scmp.ne.s32.totalorder %s181, %s182
    %p191 = scmp.eq.s32.totalorder %s24, 0
    %p192 = por %p190, %p191
    %p193 = scmp.ne.s32.totalorder %s181, %s182
    %p194 = scmp.eq.s32.totalorder %s25, 1
    %p195 = por %p193, %p194
    %p197 = scmp.ne.s32.totalorder %s182, %s196
    %p198 = scmp.eq.s32.totalorder %s25, 0
    %p199 = por %p197, %p198
    %s201 = sadd.s32 %s200, 1
    %p204 = scmp.eq.s32.totalorder %s19, 1
    %p205 = scmp.ne.s32.totalorder %s200, %s202
    %p206 = scmp.eq.s32.totalorder %s19, 0
    %p207 = por %p205, %p206
    %p208 = scmp.ne.s32.totalorder %s200, %s202
    %p209 = scmp.eq.s32.totalorder %s24, 1
    %p210 = por %p208, %p209
    %p211 = scmp.ne.s32.totalorder %s202, %s203
    %p212 = scmp.eq.s32.totalorder %s24, 0
    %p213 = por %p211, %p212
    %p214 = scmp.ne.s32.totalorder %s202, %s203
    %p215 = scmp.eq.s32.totalorder %s25, 1
    %p216 = por %p214, %p215
    %p218 = scmp.ne.s32.totalorder %s203, %s217
    %p219 = scmp.eq.s32.totalorder %s25, 0
    %p220 = por %p218, %p219
    %s222 = sadd.s32 %s221, 1
    %p225 = scmp.eq.s32.totalorder %s19, 1
    %p226 = scmp.ne.s32.totalorder %s221, %s223
    %p227 = scmp.eq.s32.totalorder %s19, 0
    %p228 = por %p226, %p227
    %p229 = scmp.ne.s32.totalorder %s221, %s223
    %p230 = scmp.eq.s32.totalorder %s24, 1
    %p231 = por %p229, %p230
    %p232 = scmp.ne.s32.totalorder %s223, %s224
    %p233 = scmp.eq.s32.totalorder %s24, 0
    %p234 = por %p232, %p233
    %p235 = scmp.ne.s32.totalorder %s223, %s224
    %p236 = scmp.eq.s32.totalorder %s25, 1
    %p237 = por %p235, %p236
    %p239 = scmp.ne.s32.totalorder %s224, %s238
    %p240 = scmp.eq.s32.totalorder %s25, 0
    %p241 = por %p239, %p240
    %s243 = sadd.s32 %s242, 1
    %p246 = scmp.eq.s32.totalorder %s19, 1
    %p247 = scmp.ne.s32.totalorder %s242, %s244
    %p248 = scmp.eq.s32.totalorder %s19, 0
    %p249 = por %p247, %p248
    %p250 = scmp.ne.s32.totalorder %s242, %s244
    %p251 = scmp.eq.s32.totalorder %s24, 1
    %p252 = por %p250, %p251
    %p253 = scmp.ne.s32.totalorder %s244, %s245
    %p254 = scmp.eq.s32.totalorder %s24, 0
    %p255 = por %p253, %p254
    %p256 = scmp.ne.s32.totalorder %s244, %s245
    %p257 = scmp.eq.s32.totalorder %s25, 1
    %p258 = por %p256, %p257
    %p260 = scmp.ne.s32.totalorder %s245, %s259
    %p261 = scmp.eq.s32.totalorder %s25, 0
    %p262 = por %p260, %p261
    %s264 = sadd.s32 %s263, 1
    %p267 = scmp.eq.s32.totalorder %s19, 1
    %p268 = scmp.ne.s32.totalorder %s263, %s265
    %p269 = scmp.eq.s32.totalorder %s19, 0
    %p270 = por %p268, %p269
    %p271 = scmp.ne.s32.totalorder %s263, %s265
    %p272 = scmp.eq.s32.totalorder %s24, 1
    %p273 = por %p271, %p272
    %p274 = scmp.ne.s32.totalorder %s265, %s266
    %p275 = scmp.eq.s32.totalorder %s24, 0
    %p276 = por %p274, %p275
    %p277 = scmp.ne.s32.totalorder %s265, %s266
    %p278 = scmp.eq.s32.totalorder %s25, 1
    %p279 = por %p277, %p278
    %p281 = scmp.ne.s32.totalorder %s266, %s280
    %p282 = scmp.eq.s32.totalorder %s25, 0
    %p283 = por %p281, %p282
    %s285 = sadd.s32 %s284, 1
    %p288 = scmp.eq.s32.totalorder %s19, 1
    %p289 = scmp.ne.s32.totalorder %s284, %s286
    %p290 = scmp.eq.s32.totalorder %s19, 0
    %p291 = por %p289, %p290
    %p292 = scmp.ne.s32.totalorder %s284, %s286
    %p293 = scmp.eq.s32.totalorder %s24, 1
    %p294 = por %p292, %p293
    %p295 = scmp.ne.s32.totalorder %s286, %s287
    %p296 = scmp.eq.s32.totalorder %s24, 0
    %p297 = por %p295, %p296
    %p298 = scmp.ne.s32.totalorder %s286, %s287
    %p299 = scmp.eq.s32.totalorder %s25, 1
    %p300 = por %p298, %p299
    %p302 = scmp.ne.s32.totalorder %s287, %s301
    %p303 = scmp.eq.s32.totalorder %s25, 0
    %p304 = por %p302, %p303
    %s305 = ssub.s32 %s19, %s26
    %p306 = scmp.eq.s32.totalorder %s305, 0
    %s308 = sadd.s32 %s307, 1
    %s309 = scalar_select %p306, %s307, %s308
    %p312 = pneg %p306
    %p313 = scmp.eq.s32.totalorder %s19, 1
    %p314 = por %p312, %p313
    %p315 = scmp.ne.s32.totalorder %s307, %s310
    %p316 = scmp.eq.s32.totalorder %s19, 0
    %p317 = por %p315, %p316
    %p318 = scmp.ne.s32.totalorder %s307, %s310
    %p319 = scmp.eq.s32.totalorder %s24, 1
    %p320 = por %p318, %p319
    %p321 = scmp.ne.s32.totalorder %s310, %s311
    %p322 = scmp.eq.s32.totalorder %s24, 0
    %p323 = por %p321, %p322
    %p324 = scmp.ne.s32.totalorder %s310, %s311
    %p325 = scmp.eq.s32.totalorder %s25, 1
    %p326 = por %p324, %p325
    %p328 = scmp.ne.s32.totalorder %s311, %s327
    %p329 = scmp.eq.s32.totalorder %s25, 0
    %p330 = por %p328, %p329
    %p331 = scmp.le.s32.totalorder 1, %s19
    %p332 = scmp.lt.s32.totalorder %s19, 3
    %p333 = pnand %p331, %p332
    %p334 = pneg %p333
    // Predicated region
    $region9: #{modified_bert_model.3} parent=5 // pred_check
      _
    $region10: #{modified_bert_model.3} parent=5 // pred_check_branch
      %336 = sbr.rel (%p333) target = $region12
    $region11: #{modified_bert_model.3} parent=5 // pred_region
      %s337 = ssub.s32 %s19, 1
      // Predicated region
      $region13: #{modified_bert_model.3} parent=11 // pred_check
        %p338 = pneg %p66
      $region14: #{modified_bert_model.3} parent=11 // pred_check_branch
        %340 = sbr.rel (%p338) target = $region16
      $region15: #{modified_bert_model.3} parent=11 // pred_region
        _
      $region16: #{modified_bert_model.3} parent=11 // pred_fallthru
        _
      // Predicated region
      $region17: #{modified_bert_model.3} parent=11 // pred_check
        %p341 = pneg %p87
      $region18: #{modified_bert_model.3} parent=11 // pred_check_branch
        %343 = sbr.rel (%p341) target = $region20
      $region19: #{modified_bert_model.3} parent=11 // pred_region
        _
      $region20: #{modified_bert_model.3} parent=11 // pred_fallthru
        _
      // Predicated region
      $region21: #{modified_bert_model.3} parent=11 // pred_check
        %p344 = pneg %p108
      $region22: #{modified_bert_model.3} parent=11 // pred_check_branch
        %346 = sbr.rel (%p344) target = $region24
      $region23: #{modified_bert_model.3} parent=11 // pred_region
        _
      $region24: #{modified_bert_model.3} parent=11 // pred_fallthru
        _
      // Predicated region
      $region25: #{modified_bert_model.3} parent=11 // pred_check
        %p347 = pneg %p129
      $region26: #{modified_bert_model.3} parent=11 // pred_check_branch
        %349 = sbr.rel (%p347) target = $region28
      $region27: #{modified_bert_model.3} parent=11 // pred_region
        _
      $region28: #{modified_bert_model.3} parent=11 // pred_fallthru
        _
      // Predicated region
      $region29: #{modified_bert_model.3} parent=11 // pred_check
        %p350 = pneg %p150
      $region30: #{modified_bert_model.3} parent=11 // pred_check_branch
        %352 = sbr.rel (%p350) target = $region32
      $region31: #{modified_bert_model.3} parent=11 // pred_region
        _
      $region32: #{modified_bert_model.3} parent=11 // pred_fallthru
        _
      // Predicated region
      $region33: #{modified_bert_model.3} parent=11 // pred_check
        %p353 = pneg %p171
      $region34: #{modified_bert_model.3} parent=11 // pred_check_branch
        %355 = sbr.rel (%p353) target = $region36
      $region35: #{modified_bert_model.3} parent=11 // pred_region
        _
      $region36: #{modified_bert_model.3} parent=11 // pred_fallthru
        _
      // Predicated region
      $region37: #{modified_bert_model.3} parent=11 // pred_check
        %p356 = pneg %p192
      $region38: #{modified_bert_model.3} parent=11 // pred_check_branch
        %358 = sbr.rel (%p356) target = $region40
      $region39: #{modified_bert_model.3} parent=11 // pred_region
        _
      $region40: #{modified_bert_model.3} parent=11 // pred_fallthru
        _
      // Predicated region
      $region41: #{modified_bert_model.3} parent=11 // pred_check
        %p359 = pneg %p213
      $region42: #{modified_bert_model.3} parent=11 // pred_check_branch
        %361 = sbr.rel (%p359) target = $region44
      $region43: #{modified_bert_model.3} parent=11 // pred_region
        _
      $region44: #{modified_bert_model.3} parent=11 // pred_fallthru
        _
      // Predicated region
      $region45: #{modified_bert_model.3} parent=11 // pred_check
        %p362 = pneg %p234
      $region46: #{modified_bert_model.3} parent=11 // pred_check_branch
        %364 = sbr.rel (%p362) target = $region48
      $region47: #{modified_bert_model.3} parent=11 // pred_region
        _
      $region48: #{modified_bert_model.3} parent=11 // pred_fallthru
        _
      // Predicated region
      $region49: #{modified_bert_model.3} parent=11 // pred_check
        %p365 = pneg %p255
      $region50: #{modified_bert_model.3} parent=11 // pred_check_branch
        %367 = sbr.rel (%p365) target = $region52
      $region51: #{modified_bert_model.3} parent=11 // pred_region
        _
      $region52: #{modified_bert_model.3} parent=11 // pred_fallthru
        _
      // Predicated region
      $region53: #{modified_bert_model.3} parent=11 // pred_check
        %p368 = pneg %p276
      $region54: #{modified_bert_model.3} parent=11 // pred_check_branch
        %370 = sbr.rel (%p368) target = $region56
      $region55: #{modified_bert_model.3} parent=11 // pred_region
        _
      $region56: #{modified_bert_model.3} parent=11 // pred_fallthru
        _
      // Predicated region
      $region57: #{modified_bert_model.3} parent=11 // pred_check
        %p371 = pneg %p297
      $region58: #{modified_bert_model.3} parent=11 // pred_check_branch
        %373 = sbr.rel (%p371) target = $region60
      $region59: #{modified_bert_model.3} parent=11 // pred_region
        _
      $region60: #{modified_bert_model.3} parent=11 // pred_fallthru
        _
    $region12: #{modified_bert_model.3} parent=5 // pred_fallthru
      _
    %p374 = scmp.lt.s32.totalorder %s19, 2
    // Predicated region
    $region61: #{modified_bert_model.3} parent=5 // pred_check
      %p375 = pneg %p374
    $region62: #{modified_bert_model.3} parent=5 // pred_check_branch
      %377 = sbr.rel (%p375) target = $region64
    $region63: #{modified_bert_model.3} parent=5 // pred_region
      // Predicated region
      $region65: #{modified_bert_model.3} parent=63 // pred_check
        %p378 = pneg %p39
      $region66: #{modified_bert_model.3} parent=63 // pred_check_branch
        %380 = sbr.rel (%p378) target = $region68
      $region67: #{modified_bert_model.3} parent=63 // pred_region
        %p381 = scmp.lt.s32.totalorder %s19, 1
        %s382 = scalar_select %p381, %s19, 1
        %s383 = smul.addr %s382, 4
        %s384 = scalar_lea.vmem %s0, %s383
      $region68: #{modified_bert_model.3} parent=63 // pred_fallthru
        _
    $region64: #{modified_bert_model.3} parent=5 // pred_fallthru
      _
    %p385 = scmp.le.s32.totalorder 1, %s19
    %p386 = scmp.lt.s32.totalorder %s19, 3
    %p387 = pnand %p385, %p386
    %p388 = pneg %p387
    // Predicated region
    $region69: #{modified_bert_model.3} parent=5 // pred_check
      _
    $region70: #{modified_bert_model.3} parent=5 // pred_check_branch
      %390 = sbr.rel (%p387) target = $region72
    $region71: #{modified_bert_model.3} parent=5 // pred_region
      %s391 = ssub.s32 %s19, 1
      %p392 = scmp.lt.s32.totalorder %s24, 1
      %s393 = scalar_select %p392, %s24, 1
      %s394 = smul.addr %s393, 4
      %s395 = scalar_lea.vmem %s0, %s394
      %p396 = pneg %p45
      %p397 = pneg %p42
      %p398 = pneg %p66
      %p399 = pneg %p63
      %p400 = pneg %p87
      %p401 = pneg %p84
      %p402 = pneg %p108
      %p403 = pneg %p105
      %p404 = pneg %p129
      %p405 = pneg %p126
      %p406 = pneg %p150
      %p407 = pneg %p147
      %p408 = pneg %p171
      %p409 = pneg %p168
      %p410 = pneg %p192
      %p411 = pneg %p189
      %p412 = pneg %p213
      %p413 = pneg %p210
      %p414 = pneg %p234
      %p415 = pneg %p231
      %p416 = pneg %p255
      %p417 = pneg %p252
      %p418 = pneg %p276
      %p419 = pneg %p273
      %p420 = pneg %p297
      %p421 = pneg %p294
      %p422 = pneg %p323
      %p423 = pneg %p320
      %p424 = scmp.lt.s32.totalorder %s24, 1
      %s425 = scalar_select %p424, %s24, 1
      %s426 = smul.addr %s425, 4
      %s427 = scalar_lea.vmem %s13, %s426
      %p428 = scmp.lt.s32.totalorder %s24, 1
      %s429 = scalar_select %p428, %s24, 1
      %s430 = smul.addr %s429, 4
      %s431 = scalar_lea.vmem %s0, %s430
      %p432 = scmp.lt.s32.totalorder %s24, 1
      %s433 = scalar_select %p432, %s24, 1
      %s434 = smul.addr %s433, 4
      %s435 = scalar_lea.vmem %s13, %s434
      %v437 = vld [vmem:[%s431] sm:$0xf]
      %v438 = vunpack.c.l.bf16 %v437
      %v439 = vld [vmem:[%s1] sm:$0xff]
      %v440 = vld [vmem:[%s1 + $0x8] sm:$0xf]
      %v441 = vld [vmem:[%s1 + $0xc] sm:$0xff]
      %v442 = vld [vmem:[%s1 + $0x14] sm:$0xf]
      %v443 = vld [vmem:[%s1 + $0x18] sm:$0xff]
      %v444 = vld [vmem:[%s1 + $0x20] sm:$0xf]
      %v445 = vld [vmem:[%s1 + $0x24] sm:$0xff]
      %v446 = vld [vmem:[%s1 + $0x2c] sm:$0xf]
      %v447 = vld [vmem:[%s1 + $0x30] sm:$0xff]
      %v448 = vld [vmem:[%s1 + $0x38] sm:$0xf]
      %v449 = vld [vmem:[%s1 + $0x3c] sm:$0xff]
      %v450 = vld [vmem:[%s1 + $0x44] sm:$0xf]
      %v451 = vld [vmem:[%s1 + $0x48] sm:$0xff]
      %v452 = vld [vmem:[%s1 + $0x50] sm:$0xf]
      %v453 = vld [vmem:[%s1 + $0x54] sm:$0xff]
      %v454 = vld [vmem:[%s1 + $0x5c] sm:$0xf]
      %v455 = vld [vmem:[%s1 + $0x60] sm:$0xff]
      %v456 = vld [vmem:[%s1 + $0x68] sm:$0xf]
      %v457 = vld [vmem:[%s1 + $0x6c] sm:$0xff]
      %v458 = vld [vmem:[%s1 + $0x74] sm:$0xf]
      %v459 = vld [vmem:[%s1 + $0x78] sm:$0xff]
      %v460 = vld [vmem:[%s1 + $0x80] sm:$0xf]
      %v461 = vld [vmem:[%s1 + $0x84] sm:$0xff]
      %v462 = vld [vmem:[%s1 + $0x8c] sm:$0xf]
      %v463 = vld [vmem:[%s1 + $0x90] sm:$0xff]
      %v464 = vld [vmem:[%s1 + $0x98] sm:$0xf]
      %v465 = vld [vmem:[%s1 + $0x9c] sm:$0xff]
      %v466 = vld [vmem:[%s1 + $0xa4] sm:$0xf]
      %v467 = vld [vmem:[%s1 + $0xa8] sm:$0xff]
      %v468 = vld [vmem:[%s1 + $0xb0] sm:$0xf]
      %v469 = vld [vmem:[%s1 + $0xb4] sm:$0xff]
      %v470 = vld [vmem:[%s1 + $0xbc] sm:$0xf]
      %v471 = vld [vmem:[%s2] sm:$0x7]
      %v473 = vlaneseq
      %v474 = vshrl.u32 %v473, 7
      %v475 = vsub.s32 0, %v474
      %v476 = vrot.slane %v471, %v475
      %v477 = vlaneseq
      %v478 = vshrl.u32 %v477, 7
      %v479 = vsub.s32 1, %v478
      %v480 = vrot.slane %v471, %v479
      %v481 = vlaneseq
      %v482 = vshrl.u32 %v481, 7
      %v483 = vsub.s32 2, %v482
      %v484 = vrot.slane %v471, %v483
      %v520 = vunpack.c.l.b16 %v439
      %v521 = vunpack.c.h.b16 %v439
      %v522 = vunpack.c.l.b16 %v440
      %v523 = vunpack.c.l.b16 %v441
      %v524 = vunpack.c.h.b16 %v441
      %v525 = vunpack.c.l.b16 %v442
      %v526 = vunpack.c.l.b16 %v443
      %v527 = vunpack.c.h.b16 %v443
      %v528 = vunpack.c.l.b16 %v444
      %v529 = vunpack.c.l.b16 %v445
      %v530 = vunpack.c.h.b16 %v445
      %v531 = vunpack.c.l.b16 %v446
      %v532 = vunpack.c.l.b16 %v447
      %v533 = vunpack.c.h.b16 %v447
      %v534 = vunpack.c.l.b16 %v448
      %v535 = vunpack.c.l.b16 %v449
      %v536 = vunpack.c.h.b16 %v449
      %v537 = vunpack.c.l.b16 %v450
      %v538 = vunpack.c.l.b16 %v451
      %v539 = vunpack.c.h.b16 %v451
      %v540 = vunpack.c.l.b16 %v452
      %v541 = vunpack.c.l.b16 %v453
      %v542 = vunpack.c.h.b16 %v453
      %v543 = vunpack.c.l.b16 %v454
      %v544 = vunpack.c.l.b16 %v455
      %v545 = vunpack.c.h.b16 %v455
      %v546 = vunpack.c.l.b16 %v456
      %v547 = vunpack.c.l.b16 %v457
      %v548 = vunpack.c.h.b16 %v457
      %v549 = vunpack.c.l.b16 %v458
      %v550 = vunpack.c.l.b16 %v459
      %v551 = vunpack.c.h.b16 %v459
      %v552 = vunpack.c.l.b16 %v460
      %v553 = vunpack.c.l.b16 %v461
      %v554 = vunpack.c.h.b16 %v461
      %v555 = vunpack.c.l.b16 %v462
      %v556 = vunpack.c.l.b16 %v463
      %v557 = vunpack.c.h.b16 %v463
      %v558 = vunpack.c.l.b16 %v464
      %v559 = vunpack.c.l.b16 %v465
      %v560 = vunpack.c.h.b16 %v465
      %v561 = vunpack.c.l.b16 %v466
      %v562 = vunpack.c.l.b16 %v467
      %v563 = vunpack.c.h.b16 %v467
      %v564 = vunpack.c.l.b16 %v468
      %v565 = vunpack.c.l.b16 %v469
      %v566 = vunpack.c.h.b16 %v469
      %v567 = vunpack.c.l.b16 %v470
      %v568 = vpack.c.b16 %v523, %v520
      %v569 = vpack.c.b16 %v524, %v521
      %v570 = vpack.c.b16 %v525, %v522
      %v571 = vpack.c.b16 %v529, %v526
      %v572 = vpack.c.b16 %v530, %v527
      %v573 = vpack.c.b16 %v531, %v528
      %v574 = vpack.c.b16 %v535, %v532
      %v575 = vpack.c.b16 %v536, %v533
      %v576 = vpack.c.b16 %v537, %v534
      %v577 = vpack.c.b16 %v541, %v538
      %v578 = vpack.c.b16 %v542, %v539
      %v579 = vpack.c.b16 %v543, %v540
      %v580 = vpack.c.b16 %v547, %v544
      %v581 = vpack.c.b16 %v548, %v545
      %v582 = vpack.c.b16 %v549, %v546
      %v583 = vpack.c.b16 %v553, %v550
      %v584 = vpack.c.b16 %v554, %v551
      %v585 = vpack.c.b16 %v555, %v552
      %v586 = vpack.c.b16 %v559, %v556
      %v587 = vpack.c.b16 %v560, %v557
      %v588 = vpack.c.b16 %v561, %v558
      %v589 = vpack.c.b16 %v565, %v562
      %v590 = vpack.c.b16 %v566, %v563
      %v591 = vpack.c.b16 %v567, %v564
      %616 = vmatprep.subr.bf16.mxu0 %v569
      %617 = vmatpush1.bf16.msra.mxu0 %v568
      %618 = vmatprep.subr.bf16.mxu0 %v572
      %619 = vmatpush1.bf16.msra.mxu0 %v571
      %620 = vmatprep.subr.bf16.mxu0 %v575
      %621 = vmatpush1.bf16.msra.mxu0 %v574
      %622 = vmatprep.subr.bf16.mxu0 %v578
      %623 = vmatpush1.bf16.msra.mxu0 %v577
      %624 = vmatprep.subr.bf16.mxu0 %v581
      %625 = vmatpush1.bf16.msra.mxu0 %v580
      %626 = vmatprep.subr.bf16.mxu0 %v584
      %627 = vmatpush1.bf16.msra.mxu0 %v583
      %628 = vmatprep.subr.bf16.mxu0 %v587
      %629 = vmatpush1.bf16.msra.mxu0 %v586
      %630 = vmatprep.subr.bf16.mxu0 %v590
      %631 = vmatpush1.bf16.msra.mxu0 %v589
      %632 = vmatprep.subr.bf16.mxu0 0
      %633 = vmatpush1.bf16.msra.mxu0 0
      %634 = vmatprep.subr.bf16.mxu0 0
      %635 = vmatpush1.bf16.msra.mxu0 0
      %636 = vmatprep.subr.bf16.mxu0 0
      %637 = vmatpush1.bf16.msra.mxu0 0
      %638 = vmatprep.subr.bf16.mxu0 0
      %639 = vmatpush1.bf16.msra.mxu0 0
      %640 = vmatprep.subr.bf16.mxu0 0
      %641 = vmatpush1.bf16.msra.mxu0 0
      %642 = vmatprep.subr.bf16.mxu0 0
      %643 = vmatpush1.bf16.msra.mxu0 0
      %644 = vmatprep.subr.bf16.mxu0 0
      %645 = vmatpush1.bf16.msra.mxu0 0
      %646 = vmatprep.subr.bf16.mxu0 0
      %647 = vmatpush1.bf16.msra.mxu0 0
      %648 = vmatprep.mubr.bf16.mxu0 0
      %649 = vmatmul.mubr.bf16.gmra.mrb[0].mxu0 %v437
      %v650 = vpop.f32.mrb[0].mxu0
      %v651 = vadd.f32 %v476, %v650
      %v652 = vpop.f32.mrb[0].mxu0
      %v653 = vadd.f32 %v480, %v652
      %v654 = vpop.f32.mrb[0].mxu0
      %v655 = vpop.f32.mrb[0].mxu0
      %656 = vdwg.mxu0
      %657 = vmatprep.subr.bf16.mxu0 0
      %658 = vmatpush1.bf16.msra.mxu0 %v570
      %659 = vmatprep.subr.bf16.mxu0 0
      %660 = vmatpush1.bf16.msra.mxu0 %v573
      %661 = vmatprep.subr.bf16.mxu0 0
      %662 = vmatpush1.bf16.msra.mxu0 %v576
      %663 = vmatprep.subr.bf16.mxu0 0
      %664 = vmatpush1.bf16.msra.mxu0 %v579
      %665 = vmatprep.subr.bf16.mxu0 0
      %666 = vmatpush1.bf16.msra.mxu0 %v582
      %667 = vmatprep.subr.bf16.mxu0 0
      %668 = vmatpush1.bf16.msra.mxu0 %v585
      %669 = vmatprep.subr.bf16.mxu0 0
      %670 = vmatpush1.bf16.msra.mxu0 %v588
      %671 = vmatprep.subr.bf16.mxu0 0
      %672 = vmatpush1.bf16.msra.mxu0 %v591
      %673 = vmatprep.subr.bf16.mxu0 0
      %674 = vmatpush1.bf16.msra.mxu0 0
      %675 = vmatprep.subr.bf16.mxu0 0
      %676 = vmatpush1.bf16.msra.mxu0 0
      %677 = vmatprep.subr.bf16.mxu0 0
      %678 = vmatpush1.bf16.msra.mxu0 0
      %679 = vmatprep.subr.bf16.mxu0 0
      %680 = vmatpush1.bf16.msra.mxu0 0
      %681 = vmatprep.subr.bf16.mxu0 0
      %682 = vmatpush1.bf16.msra.mxu0 0
      %683 = vmatprep.subr.bf16.mxu0 0
      %684 = vmatpush1.bf16.msra.mxu0 0
      %685 = vmatprep.subr.bf16.mxu0 0
      %686 = vmatpush1.bf16.msra.mxu0 0
      %687 = vmatprep.subr.bf16.mxu0 0
      %688 = vmatpush1.bf16.msra.mxu0 0
      %689 = vmatprep.mubr.bf16.mxu0 0
      %690 = vmatmul.mubr.bf16.gmra.mrb[0].mxu0 %v437
      %v691 = vpop.f32.mrb[0].mxu0
      %v692 = vadd.f32 %v484, %v691
      %v693 = vpop.f32.mrb[0].mxu0
      %v694 = vpop.f32.mrb[0].mxu0
      %v695 = vpop.f32.mrb[0].mxu0
      %696 = vdwg.mxu0
      %v697 = vpack.c.bf16 %v651, %v651
      %699 = vrot.lane.b32.xlu0 %v697, 64
      %v700 = vpop.permute.xlu0 %699
      %v702 = vunpack.c.l.s4 1983009808
      %v703 = vunpack.c.0.s8 %v702
      %v704 = vlaneseq
      %v705 = vshrl.u32 %v704, 7
      %v706 = vsub.s32 %v703, %v705
      %v707 = vrot.slane %v697, %v706
      %v708 = vcombine.high %v707, 0
      %v710 = vunpack.c.l.s4 1934713408
      %v711 = vunpack.c.0.s8 %v710
      %v712 = vlaneseq
      %v713 = vshrl.u32 %v712, 7
      %v714 = vsub.s32 %v711, %v713
      %v715 = vrot.slane %v707, %v714
      %v717 = vunpack.c.l.s4 1934713408
      %v718 = vunpack.c.0.s8 %v717
      %v719 = vlaneseq
      %v720 = vshrl.u32 %v719, 7
      %v721 = vsub.s32 %v718, %v720
      %v722 = vrot.slane %v708, %v721
      %v723 = vcombine.high %v715, 0
      %v724 = vcombine.high %v722, 0
      %v727 = vunpack.c.l.s4 1983009808
      %v728 = vunpack.c.0.s8 %v727
      %v729 = vlaneseq
      %v730 = vshrl.u32 %v729, 7
      %v731 = vsub.s32 %v728, %v730
      %v732 = vrot.slane %v700, %v731
      %v733 = vcombine.high %v732, 0
      %v735 = vunpack.c.l.s4 1934713408
      %v736 = vunpack.c.0.s8 %v735
      %v737 = vlaneseq
      %v738 = vshrl.u32 %v737, 7
      %v739 = vsub.s32 %v736, %v738
      %v740 = vrot.slane %v732, %v739
      %v742 = vunpack.c.l.s4 1934713408
      %v743 = vunpack.c.0.s8 %v742
      %v744 = vlaneseq
      %v745 = vshrl.u32 %v744, 7
      %v746 = vsub.s32 %v743, %v745
      %v747 = vrot.slane %v733, %v746
      %v748 = vcombine.high %v740, 0
      %v749 = vcombine.high %v747, 0
      %v752 = vpack.i.b16 %v740, %v715
      %v754 = vshrl.u32 %v715, 16
      %v755 = vshrl.u32 %v740, 16
      %v756 = vpack.i.b16 %v755, %v754
      %v760 = vpack.i.b16 %v748, %v723
      %v762 = vshrl.u32 %v723, 16
      %v763 = vshrl.u32 %v748, 16
      %v764 = vpack.i.b16 %v763, %v762
      %v768 = vpack.i.b16 %v747, %v722
      %v770 = vshrl.u32 %v722, 16
      %v771 = vshrl.u32 %v747, 16
      %v772 = vpack.i.b16 %v771, %v770
      %v776 = vpack.i.b16 %v749, %v724
      %v778 = vshrl.u32 %v724, 16
      %v779 = vshrl.u32 %v749, 16
      %v780 = vpack.i.b16 %v779, %v778
      %v782 = vcombine.low %v752, %v768
      %v784 = vunpack.c.l.s4 1983009808
      %v785 = vunpack.c.0.s8 %v784
      %v786 = vlaneseq
      %v787 = vshrl.u32 %v786, 7
      %v788 = vsub.s32 %v785, %v787
      %v789 = vrot.slane %v782, %v788
      %v790 = vcombine.low %v760, %v776
      %v792 = vunpack.c.l.s4 1983009808
      %v793 = vunpack.c.0.s8 %v792
      %v794 = vlaneseq
      %v795 = vshrl.u32 %v794, 7
      %v796 = vsub.s32 %v793, %v795
      %v797 = vrot.slane %v790, %v796
      %v798 = vcombine.low %v789, %v797
      %v800 = vunpack.c.l.s4 1934713408
      %v801 = vunpack.c.0.s8 %v800
      %v802 = vlaneseq
      %v803 = vshrl.u32 %v802, 7
      %v804 = vsub.s32 %v801, %v803
      %v805 = vrot.slane %v798, %v804
      %v806 = vcombine.low %v756, %v772
      %v808 = vunpack.c.l.s4 1983009808
      %v809 = vunpack.c.0.s8 %v808
      %v810 = vlaneseq
      %v811 = vshrl.u32 %v810, 7
      %v812 = vsub.s32 %v809, %v811
      %v813 = vrot.slane %v806, %v812
      %v814 = vcombine.low %v764, %v780
      %v816 = vunpack.c.l.s4 1983009808
      %v817 = vunpack.c.0.s8 %v816
      %v818 = vlaneseq
      %v819 = vshrl.u32 %v818, 7
      %v820 = vsub.s32 %v817, %v819
      %v821 = vrot.slane %v814, %v820
      %v822 = vcombine.low %v813, %v821
      %v824 = vunpack.c.l.s4 1934713408
      %v825 = vunpack.c.0.s8 %v824
      %v826 = vlaneseq
      %v827 = vshrl.u32 %v826, 7
      %v828 = vsub.s32 %v825, %v827
      %v829 = vrot.slane %v822, %v828
      %v832 = vpack.i.b16 %v829, %v805
      %v833 = vshrl.u32 %v805, 16
      %v834 = vshrl.u32 %v829, 16
      %v835 = vpack.i.b16 %v834, %v833
      %v836 = vpack.c.bf16 %v653, %v653
      %838 = vrot.lane.b32.xlu0 %v836, 64
      %v839 = vpop.permute.xlu0 %838
      %v841 = vunpack.c.l.s4 1983009808
      %v842 = vunpack.c.0.s8 %v841
      %v843 = vlaneseq
      %v844 = vshrl.u32 %v843, 7
      %v845 = vsub.s32 %v842, %v844
      %v846 = vrot.slane %v836, %v845
      %v847 = vcombine.high %v846, 0
      %v849 = vunpack.c.l.s4 1934713408
      %v850 = vunpack.c.0.s8 %v849
      %v851 = vlaneseq
      %v852 = vshrl.u32 %v851, 7
      %v853 = vsub.s32 %v850, %v852
      %v854 = vrot.slane %v846, %v853
      %v856 = vunpack.c.l.s4 1934713408
      %v857 = vunpack.c.0.s8 %v856
      %v858 = vlaneseq
      %v859 = vshrl.u32 %v858, 7
      %v860 = vsub.s32 %v857, %v859
      %v861 = vrot.slane %v847, %v860
      %v862 = vcombine.high %v854, 0
      %v863 = vcombine.high %v861, 0
      %v866 = vunpack.c.l.s4 1983009808
      %v867 = vunpack.c.0.s8 %v866
      %v868 = vlaneseq
      %v869 = vshrl.u32 %v868, 7
      %v870 = vsub.s32 %v867, %v869
      %v871 = vrot.slane %v839, %v870
      %v872 = vcombine.high %v871, 0
      %v874 = vunpack.c.l.s4 1934713408
      %v875 = vunpack.c.0.s8 %v874
      %v876 = vlaneseq
      %v877 = vshrl.u32 %v876, 7
      %v878 = vsub.s32 %v875, %v877
      %v879 = vrot.slane %v871, %v878
      %v881 = vunpack.c.l.s4 1934713408
      %v882 = vunpack.c.0.s8 %v881
      %v883 = vlaneseq
      %v884 = vshrl.u32 %v883, 7
      %v885 = vsub.s32 %v882, %v884
      %v886 = vrot.slane %v872, %v885
      %v887 = vcombine.high %v879, 0
      %v888 = vcombine.high %v886, 0
      %v891 = vpack.i.b16 %v879, %v854
      %v893 = vshrl.u32 %v854, 16
      %v894 = vshrl.u32 %v879, 16
      %v895 = vpack.i.b16 %v894, %v893
      %v899 = vpack.i.b16 %v887, %v862
      %v901 = vshrl.u32 %v862, 16
      %v902 = vshrl.u32 %v887, 16
      %v903 = vpack.i.b16 %v902, %v901
      %v907 = vpack.i.b16 %v886, %v861
      %v909 = vshrl.u32 %v861, 16
      %v910 = vshrl.u32 %v886, 16
      %v911 = vpack.i.b16 %v910, %v909
      %v915 = vpack.i.b16 %v888, %v863
      %v917 = vshrl.u32 %v863, 16
      %v918 = vshrl.u32 %v888, 16
      %v919 = vpack.i.b16 %v918, %v917
      %v921 = vcombine.low %v891, %v907
      %v923 = vunpack.c.l.s4 1983009808
      %v924 = vunpack.c.0.s8 %v923
      %v925 = vlaneseq
      %v926 = vshrl.u32 %v925, 7
      %v927 = vsub.s32 %v924, %v926
      %v928 = vrot.slane %v921, %v927
      %v929 = vcombine.low %v899, %v915
      %v931 = vunpack.c.l.s4 1983009808
      %v932 = vunpack.c.0.s8 %v931
      %v933 = vlaneseq
      %v934 = vshrl.u32 %v933, 7
      %v935 = vsub.s32 %v932, %v934
      %v936 = vrot.slane %v929, %v935
      %v937 = vcombine.low %v928, %v936
      %v939 = vunpack.c.l.s4 1934713408
      %v940 = vunpack.c.0.s8 %v939
      %v941 = vlaneseq
      %v942 = vshrl.u32 %v941, 7
      %v943 = vsub.s32 %v940, %v942
      %v944 = vrot.slane %v937, %v943
      %v945 = vcombine.low %v895, %v911
      %v947 = vunpack.c.l.s4 1983009808
      %v948 = vunpack.c.0.s8 %v947
      %v949 = vlaneseq
      %v950 = vshrl.u32 %v949, 7
      %v951 = vsub.s32 %v948, %v950
      %v952 = vrot.slane %v945, %v951
      %v953 = vcombine.low %v903, %v919
      %v955 = vunpack.c.l.s4 1983009808
      %v956 = vunpack.c.0.s8 %v955
      %v957 = vlaneseq
      %v958 = vshrl.u32 %v957, 7
      %v959 = vsub.s32 %v956, %v958
      %v960 = vrot.slane %v953, %v959
      %v961 = vcombine.low %v952, %v960
      %v963 = vunpack.c.l.s4 1934713408
      %v964 = vunpack.c.0.s8 %v963
      %v965 = vlaneseq
      %v966 = vshrl.u32 %v965, 7
      %v967 = vsub.s32 %v964, %v966
      %v968 = vrot.slane %v961, %v967
      %v971 = vpack.i.b16 %v968, %v944
      %v972 = vshrl.u32 %v944, 16
      %v973 = vshrl.u32 %v968, 16
      %v974 = vpack.i.b16 %v973, %v972
      %v975 = vpack.c.bf16 %v692, %v692
      %977 = vrot.lane.b32.xlu0 %v975, 64
      %v978 = vpop.permute.xlu0 %977
      %v980 = vunpack.c.l.s4 1983009808
      %v981 = vunpack.c.0.s8 %v980
      %v982 = vlaneseq
      %v983 = vshrl.u32 %v982, 7
      %v984 = vsub.s32 %v981, %v983
      %v985 = vrot.slane %v975, %v984
      %v986 = vcombine.high %v985, 0
      %v988 = vunpack.c.l.s4 1934713408
      %v989 = vunpack.c.0.s8 %v988
      %v990 = vlaneseq
      %v991 = vshrl.u32 %v990, 7
      %v992 = vsub.s32 %v989, %v991
      %v993 = vrot.slane %v985, %v992
      %v995 = vunpack.c.l.s4 1934713408
      %v996 = vunpack.c.0.s8 %v995
      %v997 = vlaneseq
      %v998 = vshrl.u32 %v997, 7
      %v999 = vsub.s32 %v996, %v998
      %v1000 = vrot.slane %v986, %v999
      %v1001 = vcombine.high %v993, 0
      %v1002 = vcombine.high %v1000, 0
      %v1005 = vunpack.c.l.s4 1983009808
      %v1006 = vunpack.c.0.s8 %v1005
      %v1007 = vlaneseq
      %v1008 = vshrl.u32 %v1007, 7
      %v1009 = vsub.s32 %v1006, %v1008
      %v1010 = vrot.slane %v978, %v1009
      %v1011 = vcombine.high %v1010, 0
      %v1013 = vunpack.c.l.s4 1934713408
      %v1014 = vunpack.c.0.s8 %v1013
      %v1015 = vlaneseq
      %v1016 = vshrl.u32 %v1015, 7
      %v1017 = vsub.s32 %v1014, %v1016
      %v1018 = vrot.slane %v1010, %v1017
      %v1020 = vunpack.c.l.s4 1934713408
      %v1021 = vunpack.c.0.s8 %v1020
      %v1022 = vlaneseq
      %v1023 = vshrl.u32 %v1022, 7
      %v1024 = vsub.s32 %v1021, %v1023
      %v1025 = vrot.slane %v1011, %v1024
      %v1026 = vcombine.high %v1018, 0
      %v1027 = vcombine.high %v1025, 0
      %v1030 = vpack.i.b16 %v1018, %v993
      %v1032 = vshrl.u32 %v993, 16
      %v1033 = vshrl.u32 %v1018, 16
      %v1034 = vpack.i.b16 %v1033, %v1032
      %v1038 = vpack.i.b16 %v1026, %v1001
      %v1040 = vshrl.u32 %v1001, 16
      %v1041 = vshrl.u32 %v1026, 16
      %v1042 = vpack.i.b16 %v1041, %v1040
      %v1046 = vpack.i.b16 %v1025, %v1000
      %v1048 = vshrl.u32 %v1000, 16
      %v1049 = vshrl.u32 %v1025, 16
      %v1050 = vpack.i.b16 %v1049, %v1048
      %v1054 = vpack.i.b16 %v1027, %v1002
      %v1056 = vshrl.u32 %v1002, 16
      %v1057 = vshrl.u32 %v1027, 16
      %v1058 = vpack.i.b16 %v1057, %v1056
      %v1060 = vcombine.low %v1030, %v1046
      %v1062 = vunpack.c.l.s4 1983009808
      %v1063 = vunpack.c.0.s8 %v1062
      %v1064 = vlaneseq
      %v1065 = vshrl.u32 %v1064, 7
      %v1066 = vsub.s32 %v1063, %v1065
      %v1067 = vrot.slane %v1060, %v1066
      %v1068 = vcombine.low %v1038, %v1054
      %v1070 = vunpack.c.l.s4 1983009808
      %v1071 = vunpack.c.0.s8 %v1070
      %v1072 = vlaneseq
      %v1073 = vshrl.u32 %v1072, 7
      %v1074 = vsub.s32 %v1071, %v1073
      %v1075 = vrot.slane %v1068, %v1074
      %v1076 = vcombine.low %v1067, %v1075
      %v1078 = vunpack.c.l.s4 1934713408
      %v1079 = vunpack.c.0.s8 %v1078
      %v1080 = vlaneseq
      %v1081 = vshrl.u32 %v1080, 7
      %v1082 = vsub.s32 %v1079, %v1081
      %v1083 = vrot.slane %v1076, %v1082
      %v1084 = vcombine.low %v1034, %v1050
      %v1086 = vunpack.c.l.s4 1983009808
      %v1087 = vunpack.c.0.s8 %v1086
      %v1088 = vlaneseq
      %v1089 = vshrl.u32 %v1088, 7
      %v1090 = vsub.s32 %v1087, %v1089
      %v1091 = vrot.slane %v1084, %v1090
      %v1092 = vcombine.low %v1042, %v1058
      %v1094 = vunpack.c.l.s4 1983009808
      %v1095 = vunpack.c.0.s8 %v1094
      %v1096 = vlaneseq
      %v1097 = vshrl.u32 %v1096, 7
      %v1098 = vsub.s32 %v1095, %v1097
      %v1099 = vrot.slane %v1092, %v1098
      %v1100 = vcombine.low %v1091, %v1099
      %v1102 = vunpack.c.l.s4 1934713408
      %v1103 = vunpack.c.0.s8 %v1102
      %v1104 = vlaneseq
      %v1105 = vshrl.u32 %v1104, 7
      %v1106 = vsub.s32 %v1103, %v1105
      %v1107 = vrot.slane %v1100, %v1106
      %v1110 = vpack.i.b16 %v1107, %v1083
      %v1111 = vshrl.u32 %v1083, 16
      %v1112 = vshrl.u32 %v1107, 16
      %v1113 = vpack.i.b16 %v1112, %v1111
      %vm1114 = vcmask 523264
      %v1116 = vsel %vm1114, %v832, 0
      %v1119 = vsel %vm1114, %v971, 0
      %1121 = vmatprep.subr.bf16.mxu0 0
      %1122 = vmatpush1.bf16.xpose.msra.mxu0 %v1119
      %1123 = vmatprep.subr.bf16.mxu0 0
      %1124 = vmatpush1.bf16.xpose.msra.mxu0 0
      %1125 = vmatprep.subr.bf16.mxu0 0
      %1126 = vmatpush1.bf16.xpose.msra.mxu0 0
      %1127 = vmatprep.subr.bf16.mxu0 0
      %1128 = vmatpush1.bf16.xpose.msra.mxu0 0
      %1129 = vmatprep.subr.bf16.mxu0 0
      %1130 = vmatpush1.bf16.xpose.msra.mxu0 0
      %1131 = vmatprep.subr.bf16.mxu0 0
      %1132 = vmatpush1.bf16.xpose.msra.mxu0 0
      %1133 = vmatprep.subr.bf16.mxu0 0
      %1134 = vmatpush1.bf16.xpose.msra.mxu0 0
      %1135 = vmatprep.subr.bf16.mxu0 0
      %1136 = vmatpush1.bf16.xpose.msra.mxu0 0
      %1137 = vmatprep.subr.bf16.mxu0 0
      %1138 = vmatpush1.bf16.xpose.msra.mxu0 0
      %1139 = vmatprep.subr.bf16.mxu0 0
      %1140 = vmatpush1.bf16.xpose.msra.mxu0 0
      %1141 = vmatprep.subr.bf16.mxu0 0
      %1142 = vmatpush1.bf16.xpose.msra.mxu0 0
      %1143 = vmatprep.subr.bf16.mxu0 0
      %1144 = vmatpush1.bf16.xpose.msra.mxu0 0
      %1145 = vmatprep.subr.bf16.mxu0 0
      %1146 = vmatpush1.bf16.xpose.msra.mxu0 0
      %1147 = vmatprep.subr.bf16.mxu0 0
      %1148 = vmatpush1.bf16.xpose.msra.mxu0 0
      %1149 = vmatprep.subr.bf16.mxu0 0
      %1150 = vmatpush1.bf16.xpose.msra.mxu0 0
      %1151 = vmatprep.subr.bf16.mxu0 0
      %1152 = vmatpush1.bf16.xpose.msra.mxu0 0
      %1153 = vmatprep.mubr.bf16.mxu0 0
      %1154 = vmatmul.mubr.bf16.gmra.mrb[0].mxu0 %v1116
      %v1155 = vpop.f32.mrb[0].mxu0
      %v1156 = vadd.f32 0.0, %v1155
      %v1157 = vpop.f32.mrb[0].mxu0
      %v1158 = vpop.f32.mrb[0].mxu0
      %v1159 = vpop.f32.mrb[0].mxu0
      %1160 = vdwg.mxu0
      %v1162 = vsel %vm1114, %v835, 0
      %v1165 = vsel %vm1114, %v974, 0
      %1167 = vmatprep.subr.bf16.mxu0 0
      %1168 = vmatpush1.bf16.xpose.msra.mxu0 %v1165
      %1169 = vmatprep.subr.bf16.mxu0 0
      %1170 = vmatpush1.bf16.xpose.msra.mxu0 0
      %1171 = vmatprep.subr.bf16.mxu0 0
      %1172 = vmatpush1.bf16.xpose.msra.mxu0 0
      %1173 = vmatprep.subr.bf16.mxu0 0
      %1174 = vmatpush1.bf16.xpose.msra.mxu0 0
      %1175 = vmatprep.subr.bf16.mxu0 0
      %1176 = vmatpush1.bf16.xpose.msra.mxu0 0
      %1177 = vmatprep.subr.bf16.mxu0 0
      %1178 = vmatpush1.bf16.xpose.msra.mxu0 0
      %1179 = vmatprep.subr.bf16.mxu0 0
      %1180 = vmatpush1.bf16.xpose.msra.mxu0 0
      %1181 = vmatprep.subr.bf16.mxu0 0
      %1182 = vmatpush1.bf16.xpose.msra.mxu0 0
      %1183 = vmatprep.subr.bf16.mxu0 0
      %1184 = vmatpush1.bf16.xpose.msra.mxu0 0
      %1185 = vmatprep.subr.bf16.mxu0 0
      %1186 = vmatpush1.bf16.xpose.msra.mxu0 0
      %1187 = vmatprep.subr.bf16.mxu0 0
      %1188 = vmatpush1.bf16.xpose.msra.mxu0 0
      %1189 = vmatprep.subr.bf16.mxu0 0
      %1190 = vmatpush1.bf16.xpose.msra.mxu0 0
      %1191 = vmatprep.subr.bf16.mxu0 0
      %1192 = vmatpush1.bf16.xpose.msra.mxu0 0
      %1193 = vmatprep.subr.bf16.mxu0 0
      %1194 = vmatpush1.bf16.xpose.msra.mxu0 0
      %1195 = vmatprep.subr.bf16.mxu0 0
      %1196 = vmatpush1.bf16.xpose.msra.mxu0 0
      %1197 = vmatprep.subr.bf16.mxu0 0
      %1198 = vmatpush1.bf16.xpose.msra.mxu0 0
      %1199 = vmatprep.mubr.bf16.mxu0 0
      %1200 = vmatmul.mubr.bf16.gmra.mrb[0].mxu0 %v1162
      %v1201 = vpop.f32.mrb[0].mxu0
      %v1202 = vadd.f32 0.0, %v1201
      %v1203 = vpop.f32.mrb[0].mxu0
      %v1204 = vpop.f32.mrb[0].mxu0
      %v1205 = vpop.f32.mrb[0].mxu0
      %1206 = vdwg.mxu0
      %vm1207 = vcmask 64512
      %v1208 = vsel %vm1207, %v1156, -inf
      %1209 = vmax.xlane.f32.xlu0 %v1208
      %v1210 = vpop.xlane.xlu0 %1209
      %v1211 = vsel %vm1207, %v1202, -inf
      %1212 = vmax.xlane.f32.xlu0 %v1211
      %v1213 = vpop.xlane.xlu0 %1212
      %v1214 = vsub.f32 %v1156, %v1210
      %v1215 = vsub.f32 %v1202, %v1213
      %v1216 = vmul.f32 %v1214, 1.442695
      %v1217 = vpow.pop %v1216
      %v1218 = vmul.f32 %v1215, 1.442695
      %v1219 = vpow.pop %v1218
      %v1220 = vsel %vm1207, %v1217, 0.0
      %1221 = vadd.xlane.f32.xlu0 %v1220
      %v1222 = vpop.xlane.xlu0 %1221
      %v1223 = vsel %vm1207, %v1219, 0.0
      %1224 = vadd.xlane.f32.xlu0 %v1223
      %v1225 = vpop.xlane.xlu0 %1224
      %v1226 = vrcp.pop %v1222
      %v1227 = vrcp.pop %v1225
      %v1228 = vmul.f32 %v1217, %v1226
      %v1229 = vmul.f32 %v1219, %v1227
      %v1230 = vpack.c.bf16 %v1228, %v1228
      %v1231 = vpack.c.bf16 %v1229, %v1229
      %v1233 = vsel %vm1207, %v1230, 0
      %vm1235 = vcmask 1043456
      %v1237 = vsel %vm1235, %v1110, 0
      %1239 = vmatprep.subr.bf16.mxu0 0
      %1240 = vmatpush1.bf16.msra.mxu0 %v1237
      %1241 = vmatprep.subr.bf16.mxu0 0
      %1242 = vmatpush1.bf16.msra.mxu0 0
      %1243 = vmatprep.subr.bf16.mxu0 0
      %1244 = vmatpush1.bf16.msra.mxu0 0
      %1245 = vmatprep.subr.bf16.mxu0 0
      %1246 = vmatpush1.bf16.msra.mxu0 0
      %1247 = vmatprep.subr.bf16.mxu0 0
      %1248 = vmatpush1.bf16.msra.mxu0 0
      %1249 = vmatprep.subr.bf16.mxu0 0
      %1250 = vmatpush1.bf16.msra.mxu0 0
      %1251 = vmatprep.subr.bf16.mxu0 0
      %1252 = vmatpush1.bf16.msra.mxu0 0
      %1253 = vmatprep.subr.bf16.mxu0 0
      %1254 = vmatpush1.bf16.msra.mxu0 0
      %1255 = vmatprep.subr.bf16.mxu0 0
      %1256 = vmatpush1.bf16.msra.mxu0 0
      %1257 = vmatprep.subr.bf16.mxu0 0
      %1258 = vmatpush1.bf16.msra.mxu0 0
      %1259 = vmatprep.subr.bf16.mxu0 0
      %1260 = vmatpush1.bf16.msra.mxu0 0
      %1261 = vmatprep.subr.bf16.mxu0 0
      %1262 = vmatpush1.bf16.msra.mxu0 0
      %1263 = vmatprep.subr.bf16.mxu0 0
      %1264 = vmatpush1.bf16.msra.mxu0 0
      %1265 = vmatprep.subr.bf16.mxu0 0
      %1266 = vmatpush1.bf16.msra.mxu0 0
      %1267 = vmatprep.subr.bf16.mxu0 0
      %1268 = vmatpush1.bf16.msra.mxu0 0
      %1269 = vmatprep.subr.bf16.mxu0 0
      %1270 = vmatpush1.bf16.msra.mxu0 0
      %1271 = vmatprep.mubr.bf16.mxu0 0
      %1272 = vmatmul.mubr.bf16.gmra.mrb[0].mxu0 %v1233
      %v1273 = vpop.f32.mrb[0].mxu0
      %v1274 = vadd.f32 0.0, %v1273
      %v1275 = vpop.f32.mrb[0].mxu0
      %v1276 = vpop.f32.mrb[0].mxu0
      %v1277 = vpop.f32.mrb[0].mxu0
      %1278 = vdwg.mxu0
      %v1280 = vsel %vm1207, %v1231, 0
      %v1283 = vsel %vm1235, %v1113, 0
      %1285 = vmatprep.subr.bf16.mxu0 0
      %1286 = vmatpush1.bf16.msra.mxu0 %v1283
      %1287 = vmatprep.subr.bf16.mxu0 0
      %1288 = vmatpush1.bf16.msra.mxu0 0
      %1289 = vmatprep.subr.bf16.mxu0 0
      %1290 = vmatpush1.bf16.msra.mxu0 0
      %1291 = vmatprep.subr.bf16.mxu0 0
      %1292 = vmatpush1.bf16.msra.mxu0 0
      %1293 = vmatprep.subr.bf16.mxu0 0
      %1294 = vmatpush1.bf16.msra.mxu0 0
      %1295 = vmatprep.subr.bf16.mxu0 0
      %1296 = vmatpush1.bf16.msra.mxu0 0
      %1297 = vmatprep.subr.bf16.mxu0 0
      %1298 = vmatpush1.bf16.msra.mxu0 0
      %1299 = vmatprep.subr.bf16.mxu0 0
      %1300 = vmatpush1.bf16.msra.mxu0 0
      %1301 = vmatprep.subr.bf16.mxu0 0
      %1302 = vmatpush1.bf16.msra.mxu0 0
      %1303 = vmatprep.subr.bf16.mxu0 0
      %1304 = vmatpush1.bf16.msra.mxu0 0
      %1305 = vmatprep.subr.bf16.mxu0 0
      %1306 = vmatpush1.bf16.msra.mxu0 0
      %1307 = vmatprep.subr.bf16.mxu0 0
      %1308 = vmatpush1.bf16.msra.mxu0 0
      %1309 = vmatprep.subr.bf16.mxu0 0
      %1310 = vmatpush1.bf16.msra.mxu0 0
      %1311 = vmatprep.subr.bf16.mxu0 0
      %1312 = vmatpush1.bf16.msra.mxu0 0
      %1313 = vmatprep.subr.bf16.mxu0 0
      %1314 = vmatpush1.bf16.msra.mxu0 0
      %1315 = vmatprep.subr.bf16.mxu0 0
      %1316 = vmatpush1.bf16.msra.mxu0 0
      %1317 = vmatprep.mubr.bf16.mxu0 0
      %1318 = vmatmul.mubr.bf16.gmra.mrb[0].mxu0 %v1280
      %v1319 = vpop.f32.mrb[0].mxu0
      %v1320 = vadd.f32 0.0, %v1319
      %v1321 = vpop.f32.mrb[0].mxu0
      %v1322 = vpop.f32.mrb[0].mxu0
      %v1323 = vpop.f32.mrb[0].mxu0
      %1324 = vdwg.mxu0
      %v1325 = vpack.c.bf16 %v1274, %v1274
      %v1326 = vpack.c.bf16 %v1320, %v1320
      %v1327 = vld [vmem:[%s3] sm:$0xf]
      %v1328 = vld [vmem:[%s3 + $0x4] sm:$0xf]
      %v1329 = vld [vmem:[%s3 + $0x8] sm:$0xf]
      %v1330 = vld [vmem:[%s3 + $0xc] sm:$0xf]
      %v1331 = vld [vmem:[%s3 + $0x10] sm:$0xf]
      %v1332 = vld [vmem:[%s3 + $0x14] sm:$0xf]
      %v1333 = vld [vmem:[%s3 + $0x18] sm:$0xf]
      %v1334 = vld [vmem:[%s3 + $0x1c] sm:$0xf]
      %v1335 = vld [vmem:[%s3 + $0x20] sm:$0xf]
      %v1336 = vld [vmem:[%s3 + $0x24] sm:$0xf]
      %v1337 = vld [vmem:[%s3 + $0x28] sm:$0xf]
      %v1338 = vld [vmem:[%s3 + $0x2c] sm:$0xf]
      %v1339 = vld [vmem:[%s3 + $0x30] sm:$0xf]
      %v1340 = vld [vmem:[%s3 + $0x34] sm:$0xf]
      %v1341 = vld [vmem:[%s3 + $0x38] sm:$0xf]
      %v1342 = vld [vmem:[%s3 + $0x3c] sm:$0xf]
      %v1351 = vunpack.c.l.b16 %v1327
      %v1352 = vunpack.c.l.b16 %v1328
      %v1353 = vunpack.c.l.b16 %v1329
      %v1354 = vunpack.c.l.b16 %v1330
      %v1355 = vunpack.c.l.b16 %v1331
      %v1356 = vunpack.c.l.b16 %v1332
      %v1357 = vunpack.c.l.b16 %v1333
      %v1358 = vunpack.c.l.b16 %v1334
      %v1359 = vpack.c.b16 %v1352, %v1351
      %v1360 = vpack.c.b16 %v1354, %v1353
      %v1361 = vpack.c.b16 %v1356, %v1355
      %v1362 = vpack.c.b16 %v1358, %v1357
      %v1368 = vsel %vm1114, %v1325, 0
      %1370 = vmatprep.subr.bf16.mxu0 0
      %1371 = vmatpush1.bf16.msra.mxu0 %v1359
      %1372 = vmatprep.subr.bf16.mxu0 0
      %1373 = vmatpush1.bf16.msra.mxu0 %v1360
      %1374 = vmatprep.subr.bf16.mxu0 0
      %1375 = vmatpush1.bf16.msra.mxu0 %v1361
      %1376 = vmatprep.subr.bf16.mxu0 0
      %1377 = vmatpush1.bf16.msra.mxu0 %v1362
      %1378 = vmatprep.subr.bf16.mxu0 0
      %1379 = vmatpush1.bf16.msra.mxu0 0
      %1380 = vmatprep.subr.bf16.mxu0 0
      %1381 = vmatpush1.bf16.msra.mxu0 0
      %1382 = vmatprep.subr.bf16.mxu0 0
      %1383 = vmatpush1.bf16.msra.mxu0 0
      %1384 = vmatprep.subr.bf16.mxu0 0
      %1385 = vmatpush1.bf16.msra.mxu0 0
      %1386 = vmatprep.subr.bf16.mxu0 0
      %1387 = vmatpush1.bf16.msra.mxu0 0
      %1388 = vmatprep.subr.bf16.mxu0 0
      %1389 = vmatpush1.bf16.msra.mxu0 0
      %1390 = vmatprep.subr.bf16.mxu0 0
      %1391 = vmatpush1.bf16.msra.mxu0 0
      %1392 = vmatprep.subr.bf16.mxu0 0
      %1393 = vmatpush1.bf16.msra.mxu0 0
      %1394 = vmatprep.subr.bf16.mxu0 0
      %1395 = vmatpush1.bf16.msra.mxu0 0
      %1396 = vmatprep.subr.bf16.mxu0 0
      %1397 = vmatpush1.bf16.msra.mxu0 0
      %1398 = vmatprep.subr.bf16.mxu0 0
      %1399 = vmatpush1.bf16.msra.mxu0 0
      %1400 = vmatprep.subr.bf16.mxu0 0
      %1401 = vmatpush1.bf16.msra.mxu0 0
      %1402 = vmatprep.mubr.bf16.mxu0 0
      %1403 = vmatmul.mubr.bf16.gmra.mrb[0].mxu0 %v1368
      %v1404 = vpop.f32.mrb[0].mxu0
      %v1405 = vadd.f32 0.0, %v1404
      %v1406 = vpop.f32.mrb[0].mxu0
      %v1407 = vpop.f32.mrb[0].mxu0
      %v1408 = vpop.f32.mrb[0].mxu0
      %1409 = vdwg.mxu0
      %v1418 = vunpack.c.l.b16 %v1335
      %v1419 = vunpack.c.l.b16 %v1336
      %v1420 = vunpack.c.l.b16 %v1337
      %v1421 = vunpack.c.l.b16 %v1338
      %v1422 = vunpack.c.l.b16 %v1339
      %v1423 = vunpack.c.l.b16 %v1340
      %v1424 = vunpack.c.l.b16 %v1341
      %v1425 = vunpack.c.l.b16 %v1342
      %v1426 = vpack.c.b16 %v1419, %v1418
      %v1427 = vpack.c.b16 %v1421, %v1420
      %v1428 = vpack.c.b16 %v1423, %v1422
      %v1429 = vpack.c.b16 %v1425, %v1424
      %v1435 = vsel %vm1114, %v1326, 0
      %1437 = vmatprep.subr.bf16.mxu0 0
      %1438 = vmatpush1.bf16.msra.mxu0 %v1426
      %1439 = vmatprep.subr.bf16.mxu0 0
      %1440 = vmatpush1.bf16.msra.mxu0 %v1427
      %1441 = vmatprep.subr.bf16.mxu0 0
      %1442 = vmatpush1.bf16.msra.mxu0 %v1428
      %1443 = vmatprep.subr.bf16.mxu0 0
      %1444 = vmatpush1.bf16.msra.mxu0 %v1429
      %1445 = vmatprep.subr.bf16.mxu0 0
      %1446 = vmatpush1.bf16.msra.mxu0 0
      %1447 = vmatprep.subr.bf16.mxu0 0
      %1448 = vmatpush1.bf16.msra.mxu0 0
      %1449 = vmatprep.subr.bf16.mxu0 0
      %1450 = vmatpush1.bf16.msra.mxu0 0
      %1451 = vmatprep.subr.bf16.mxu0 0
      %1452 = vmatpush1.bf16.msra.mxu0 0
      %1453 = vmatprep.subr.bf16.mxu0 0
      %1454 = vmatpush1.bf16.msra.mxu0 0
      %1455 = vmatprep.subr.bf16.mxu0 0
      %1456 = vmatpush1.bf16.msra.mxu0 0
      %1457 = vmatprep.subr.bf16.mxu0 0
      %1458 = vmatpush1.bf16.msra.mxu0 0
      %1459 = vmatprep.subr.bf16.mxu0 0
      %1460 = vmatpush1.bf16.msra.mxu0 0
      %1461 = vmatprep.subr.bf16.mxu0 0
      %1462 = vmatpush1.bf16.msra.mxu0 0
      %1463 = vmatprep.subr.bf16.mxu0 0
      %1464 = vmatpush1.bf16.msra.mxu0 0
      %1465 = vmatprep.subr.bf16.mxu0 0
      %1466 = vmatpush1.bf16.msra.mxu0 0
      %1467 = vmatprep.subr.bf16.mxu0 0
      %1468 = vmatpush1.bf16.msra.mxu0 0
      %1469 = vmatprep.mubr.bf16.mxu0 0
      %1470 = vmatmul.mubr.bf16.gmra.mrb[0].mxu0 %v1435
      %v1471 = vpop.f32.mrb[0].mxu0
      %v1472 = vadd.f32 0.0, %v1471
      %v1473 = vpop.f32.mrb[0].mxu0
      %v1474 = vpop.f32.mrb[0].mxu0
      %v1475 = vpop.f32.mrb[0].mxu0
      %1476 = vdwg.mxu0
      %v1477 = vadd.f32 %v1405, %v1472
      %v1478 = vld [vmem:[%s4] sm:$0x1]
      %v1480 = vlaneseq
      %v1481 = vshrl.u32 %v1480, 7
      %v1482 = vsub.s32 0, %v1481
      %v1483 = vrot.slane %v1478, %v1482
      %v1485 = vadd.f32 %v1477, %v1483
      %v1486 = vadd.f32 %v1485, %v438
      %v1487 = vld [vmem:[%s5] sm:$0x1]
      %v1488 = vld [vmem:[%s6] sm:$0x1]
      %1489 = vadd.xlane.f32.xlu0 %v1486
      %v1490 = vpop.xlane.xlu0 %1489
      %v1491 = vrcp.pop 128.0
      %v1492 = vmul.f32 %v1490, %v1491
      %v1493 = vsub.f32 %v1486, %v1492
      %v1494 = vmul.f32 %v1493, %v1493
      %1495 = vadd.xlane.f32.xlu0 %v1494
      %v1496 = vpop.xlane.xlu0 %1495
      %v1497 = vmul.f32 %v1496, %v1491
      %v1498 = vadd.f32 %v1497, 1e-12
      %v1499 = vrsqrt.pop %v1498
      %v1500 = vmul.f32 %v1493, %v1499
      %v1502 = vlaneseq
      %v1503 = vshrl.u32 %v1502, 7
      %v1504 = vsub.s32 0, %v1503
      %v1505 = vrot.slane %v1487, %v1504
      %v1507 = vmul.f32 %v1500, %v1505
      %v1509 = vlaneseq
      %v1510 = vshrl.u32 %v1509, 7
      %v1511 = vsub.s32 0, %v1510
      %v1512 = vrot.slane %v1488, %v1511
      %v1514 = vadd.f32 %v1507, %v1512
      %v1515 = vpack.c.bf16 %v1514, %v1514
      %v1516 = vld [vmem:[%s7] sm:$0xff]
      %v1517 = vld [vmem:[%s7 + $0x8] sm:$0xff]
      %v1518 = vld [vmem:[%s7 + $0x10] sm:$0xff]
      %v1519 = vld [vmem:[%s7 + $0x18] sm:$0xff]
      %v1520 = vld [vmem:[%s7 + $0x20] sm:$0xff]
      %v1521 = vld [vmem:[%s7 + $0x28] sm:$0xff]
      %v1522 = vld [vmem:[%s7 + $0x30] sm:$0xff]
      %v1523 = vld [vmem:[%s7 + $0x38] sm:$0xff]
      %v1524 = vld [vmem:[%s7 + $0x40] sm:$0xff]
      %v1525 = vld [vmem:[%s7 + $0x48] sm:$0xff]
      %v1526 = vld [vmem:[%s7 + $0x50] sm:$0xff]
      %v1527 = vld [vmem:[%s7 + $0x58] sm:$0xff]
      %v1528 = vld [vmem:[%s7 + $0x60] sm:$0xff]
      %v1529 = vld [vmem:[%s7 + $0x68] sm:$0xff]
      %v1530 = vld [vmem:[%s7 + $0x70] sm:$0xff]
      %v1531 = vld [vmem:[%s7 + $0x78] sm:$0xff]
      %v1532 = vld [vmem:[%s7 + $0x80] sm:$0xff]
      %v1533 = vld [vmem:[%s7 + $0x88] sm:$0xff]
      %v1534 = vld [vmem:[%s7 + $0x90] sm:$0xff]
      %v1535 = vld [vmem:[%s7 + $0x98] sm:$0xff]
      %v1536 = vld [vmem:[%s7 + $0xa0] sm:$0xff]
      %v1537 = vld [vmem:[%s7 + $0xa8] sm:$0xff]
      %v1538 = vld [vmem:[%s7 + $0xb0] sm:$0xff]
      %v1539 = vld [vmem:[%s7 + $0xb8] sm:$0xff]
      %v1540 = vld [vmem:[%s7 + $0xc0] sm:$0xff]
      %v1541 = vld [vmem:[%s7 + $0xc8] sm:$0xff]
      %v1542 = vld [vmem:[%s7 + $0xd0] sm:$0xff]
      %v1543 = vld [vmem:[%s7 + $0xd8] sm:$0xff]
      %v1544 = vld [vmem:[%s7 + $0xe0] sm:$0xff]
      %v1545 = vld [vmem:[%s7 + $0xe8] sm:$0xff]
      %v1546 = vld [vmem:[%s7 + $0xf0] sm:$0xff]
      %v1547 = vld [vmem:[%s7 + $0xf8] sm:$0xff]
      %v1548 = vld [vmem:[%s8] sm:$0xf]
      %v1550 = vlaneseq
      %v1551 = vshrl.u32 %v1550, 7
      %v1552 = vsub.s32 0, %v1551
      %v1553 = vrot.slane %v1548, %v1552
      %v1554 = vlaneseq
      %v1555 = vshrl.u32 %v1554, 7
      %v1556 = vsub.s32 1, %v1555
      %v1557 = vrot.slane %v1548, %v1556
      %v1558 = vlaneseq
      %v1559 = vshrl.u32 %v1558, 7
      %v1560 = vsub.s32 2, %v1559
      %v1561 = vrot.slane %v1548, %v1560
      %v1562 = vlaneseq
      %v1563 = vshrl.u32 %v1562, 7
      %v1564 = vsub.s32 3, %v1563
      %v1565 = vrot.slane %v1548, %v1564
      %v1602 = vunpack.c.l.b16 %v1516
      %v1603 = vunpack.c.h.b16 %v1516
      %v1604 = vunpack.c.l.b16 %v1517
      %v1605 = vunpack.c.h.b16 %v1517
      %v1606 = vunpack.c.l.b16 %v1518
      %v1607 = vunpack.c.h.b16 %v1518
      %v1608 = vunpack.c.l.b16 %v1519
      %v1609 = vunpack.c.h.b16 %v1519
      %v1610 = vunpack.c.l.b16 %v1520
      %v1611 = vunpack.c.h.b16 %v1520
      %v1612 = vunpack.c.l.b16 %v1521
      %v1613 = vunpack.c.h.b16 %v1521
      %v1614 = vunpack.c.l.b16 %v1522
      %v1615 = vunpack.c.h.b16 %v1522
      %v1616 = vunpack.c.l.b16 %v1523
      %v1617 = vunpack.c.h.b16 %v1523
      %v1618 = vunpack.c.l.b16 %v1524
      %v1619 = vunpack.c.h.b16 %v1524
      %v1620 = vunpack.c.l.b16 %v1525
      %v1621 = vunpack.c.h.b16 %v1525
      %v1622 = vunpack.c.l.b16 %v1526
      %v1623 = vunpack.c.h.b16 %v1526
      %v1624 = vunpack.c.l.b16 %v1527
      %v1625 = vunpack.c.h.b16 %v1527
      %v1626 = vunpack.c.l.b16 %v1528
      %v1627 = vunpack.c.h.b16 %v1528
      %v1628 = vunpack.c.l.b16 %v1529
      %v1629 = vunpack.c.h.b16 %v1529
      %v1630 = vunpack.c.l.b16 %v1530
      %v1631 = vunpack.c.h.b16 %v1530
      %v1632 = vunpack.c.l.b16 %v1531
      %v1633 = vunpack.c.h.b16 %v1531
      %v1634 = vunpack.c.l.b16 %v1532
      %v1635 = vunpack.c.h.b16 %v1532
      %v1636 = vunpack.c.l.b16 %v1533
      %v1637 = vunpack.c.h.b16 %v1533
      %v1638 = vunpack.c.l.b16 %v1534
      %v1639 = vunpack.c.h.b16 %v1534
      %v1640 = vunpack.c.l.b16 %v1535
      %v1641 = vunpack.c.h.b16 %v1535
      %v1642 = vunpack.c.l.b16 %v1536
      %v1643 = vunpack.c.h.b16 %v1536
      %v1644 = vunpack.c.l.b16 %v1537
      %v1645 = vunpack.c.h.b16 %v1537
      %v1646 = vunpack.c.l.b16 %v1538
      %v1647 = vunpack.c.h.b16 %v1538
      %v1648 = vunpack.c.l.b16 %v1539
      %v1649 = vunpack.c.h.b16 %v1539
      %v1650 = vunpack.c.l.b16 %v1540
      %v1651 = vunpack.c.h.b16 %v1540
      %v1652 = vunpack.c.l.b16 %v1541
      %v1653 = vunpack.c.h.b16 %v1541
      %v1654 = vunpack.c.l.b16 %v1542
      %v1655 = vunpack.c.h.b16 %v1542
      %v1656 = vunpack.c.l.b16 %v1543
      %v1657 = vunpack.c.h.b16 %v1543
      %v1658 = vunpack.c.l.b16 %v1544
      %v1659 = vunpack.c.h.b16 %v1544
      %v1660 = vunpack.c.l.b16 %v1545
      %v1661 = vunpack.c.h.b16 %v1545
      %v1662 = vunpack.c.l.b16 %v1546
      %v1663 = vunpack.c.h.b16 %v1546
      %v1664 = vunpack.c.l.b16 %v1547
      %v1665 = vunpack.c.h.b16 %v1547
      %v1666 = vpack.c.b16 %v1606, %v1602
      %v1667 = vpack.c.b16 %v1607, %v1603
      %v1668 = vpack.c.b16 %v1608, %v1604
      %v1669 = vpack.c.b16 %v1609, %v1605
      %v1670 = vpack.c.b16 %v1614, %v1610
      %v1671 = vpack.c.b16 %v1615, %v1611
      %v1672 = vpack.c.b16 %v1616, %v1612
      %v1673 = vpack.c.b16 %v1617, %v1613
      %v1674 = vpack.c.b16 %v1622, %v1618
      %v1675 = vpack.c.b16 %v1623, %v1619
      %v1676 = vpack.c.b16 %v1624, %v1620
      %v1677 = vpack.c.b16 %v1625, %v1621
      %v1678 = vpack.c.b16 %v1630, %v1626
      %v1679 = vpack.c.b16 %v1631, %v1627
      %v1680 = vpack.c.b16 %v1632, %v1628
      %v1681 = vpack.c.b16 %v1633, %v1629
      %v1682 = vpack.c.b16 %v1638, %v1634
      %v1683 = vpack.c.b16 %v1639, %v1635
      %v1684 = vpack.c.b16 %v1640, %v1636
      %v1685 = vpack.c.b16 %v1641, %v1637
      %v1686 = vpack.c.b16 %v1646, %v1642
      %v1687 = vpack.c.b16 %v1647, %v1643
      %v1688 = vpack.c.b16 %v1648, %v1644
      %v1689 = vpack.c.b16 %v1649, %v1645
      %v1690 = vpack.c.b16 %v1654, %v1650
      %v1691 = vpack.c.b16 %v1655, %v1651
      %v1692 = vpack.c.b16 %v1656, %v1652
      %v1693 = vpack.c.b16 %v1657, %v1653
      %v1694 = vpack.c.b16 %v1662, %v1658
      %v1695 = vpack.c.b16 %v1663, %v1659
      %v1696 = vpack.c.b16 %v1664, %v1660
      %v1697 = vpack.c.b16 %v1665, %v1661
      %1730 = vmatprep.subr.bf16.mxu0 %v1667
      %1731 = vmatpush1.bf16.msra.mxu0 %v1666
      %1732 = vmatprep.subr.bf16.mxu0 %v1671
      %1733 = vmatpush1.bf16.msra.mxu0 %v1670
      %1734 = vmatprep.subr.bf16.mxu0 %v1675
      %1735 = vmatpush1.bf16.msra.mxu0 %v1674
      %1736 = vmatprep.subr.bf16.mxu0 %v1679
      %1737 = vmatpush1.bf16.msra.mxu0 %v1678
      %1738 = vmatprep.subr.bf16.mxu0 %v1683
      %1739 = vmatpush1.bf16.msra.mxu0 %v1682
      %1740 = vmatprep.subr.bf16.mxu0 %v1687
      %1741 = vmatpush1.bf16.msra.mxu0 %v1686
      %1742 = vmatprep.subr.bf16.mxu0 %v1691
      %1743 = vmatpush1.bf16.msra.mxu0 %v1690
      %1744 = vmatprep.subr.bf16.mxu0 %v1695
      %1745 = vmatpush1.bf16.msra.mxu0 %v1694
      %1746 = vmatprep.subr.bf16.mxu0 0
      %1747 = vmatpush1.bf16.msra.mxu0 0
      %1748 = vmatprep.subr.bf16.mxu0 0
      %1749 = vmatpush1.bf16.msra.mxu0 0
      %1750 = vmatprep.subr.bf16.mxu0 0
      %1751 = vmatpush1.bf16.msra.mxu0 0
      %1752 = vmatprep.subr.bf16.mxu0 0
      %1753 = vmatpush1.bf16.msra.mxu0 0
      %1754 = vmatprep.subr.bf16.mxu0 0
      %1755 = vmatpush1.bf16.msra.mxu0 0
      %1756 = vmatprep.subr.bf16.mxu0 0
      %1757 = vmatpush1.bf16.msra.mxu0 0
      %1758 = vmatprep.subr.bf16.mxu0 0
      %1759 = vmatpush1.bf16.msra.mxu0 0
      %1760 = vmatprep.subr.bf16.mxu0 0
      %1761 = vmatpush1.bf16.msra.mxu0 0
      %1762 = vmatprep.mubr.bf16.mxu0 0
      %1763 = vmatmul.mubr.bf16.gmra.mrb[0].mxu0 %v1515
      %v1764 = vpop.f32.mrb[0].mxu0
      %v1765 = vadd.f32 %v1553, %v1764
      %v1766 = vpop.f32.mrb[0].mxu0
      %v1767 = vadd.f32 %v1557, %v1766
      %v1768 = vpop.f32.mrb[0].mxu0
      %v1769 = vpop.f32.mrb[0].mxu0
      %1770 = vdwg.mxu0
      %1771 = vmatprep.subr.bf16.mxu0 %v1669
      %1772 = vmatpush1.bf16.msra.mxu0 %v1668
      %1773 = vmatprep.subr.bf16.mxu0 %v1673
      %1774 = vmatpush1.bf16.msra.mxu0 %v1672
      %1775 = vmatprep.subr.bf16.mxu0 %v1677
      %1776 = vmatpush1.bf16.msra.mxu0 %v1676
      %1777 = vmatprep.subr.bf16.mxu0 %v1681
      %1778 = vmatpush1.bf16.msra.mxu0 %v1680
      %1779 = vmatprep.subr.bf16.mxu0 %v1685
      %1780 = vmatpush1.bf16.msra.mxu0 %v1684
      %1781 = vmatprep.subr.bf16.mxu0 %v1689
      %1782 = vmatpush1.bf16.msra.mxu0 %v1688
      %1783 = vmatprep.subr.bf16.mxu0 %v1693
      %1784 = vmatpush1.bf16.msra.mxu0 %v1692
      %1785 = vmatprep.subr.bf16.mxu0 %v1697
      %1786 = vmatpush1.bf16.msra.mxu0 %v1696
      %1787 = vmatprep.subr.bf16.mxu0 0
      %1788 = vmatpush1.bf16.msra.mxu0 0
      %1789 = vmatprep.subr.bf16.mxu0 0
      %1790 = vmatpush1.bf16.msra.mxu0 0
      %1791 = vmatprep.subr.bf16.mxu0 0
      %1792 = vmatpush1.bf16.msra.mxu0 0
      %1793 = vmatprep.subr.bf16.mxu0 0
      %1794 = vmatpush1.bf16.msra.mxu0 0
      %1795 = vmatprep.subr.bf16.mxu0 0
      %1796 = vmatpush1.bf16.msra.mxu0 0
      %1797 = vmatprep.subr.bf16.mxu0 0
      %1798 = vmatpush1.bf16.msra.mxu0 0
      %1799 = vmatprep.subr.bf16.mxu0 0
      %1800 = vmatpush1.bf16.msra.mxu0 0
      %1801 = vmatprep.subr.bf16.mxu0 0
      %1802 = vmatpush1.bf16.msra.mxu0 0
      %1803 = vmatprep.mubr.bf16.mxu0 0
      %1804 = vmatmul.mubr.bf16.gmra.mrb[0].mxu0 %v1515
      %v1805 = vpop.f32.mrb[0].mxu0
      %v1806 = vadd.f32 %v1561, %v1805
      %v1807 = vpop.f32.mrb[0].mxu0
      %v1808 = vadd.f32 %v1565, %v1807
      %v1809 = vpop.f32.mrb[0].mxu0
      %v1810 = vpop.f32.mrb[0].mxu0
      %1811 = vdwg.mxu0
      %v1812 = vmul.f32 %v1765, 0.5
      %v1813 = vmul.f32 %v1767, 0.5
      %v1814 = vmul.f32 %v1806, 0.5
      %v1815 = vmul.f32 %v1808, 0.5
      %v1816 = vmul.f32 %v1765, 0.044715
      %v1817 = vmul.f32 %v1767, 0.044715
      %v1818 = vmul.f32 %v1806, 0.044715
      %v1819 = vmul.f32 %v1808, 0.044715
      %v1820 = vmul.f32 %v1816, %v1765
      %v1821 = vmul.f32 %v1817, %v1767
      %v1822 = vmul.f32 %v1818, %v1806
      %v1823 = vmul.f32 %v1819, %v1808
      %v1824 = vmul.f32 %v1820, %v1765
      %v1825 = vmul.f32 %v1821, %v1767
      %v1826 = vmul.f32 %v1822, %v1806
      %v1827 = vmul.f32 %v1823, %v1808
      %v1828 = vadd.f32 %v1765, %v1824
      %v1829 = vadd.f32 %v1767, %v1825
      %v1830 = vadd.f32 %v1806, %v1826
      %v1831 = vadd.f32 %v1808, %v1827
      %v1832 = vmul.f32 %v1828, 0.7978846
      %v1833 = vmul.f32 %v1829, 0.7978846
      %v1834 = vmul.f32 %v1830, 0.7978846
      %v1835 = vmul.f32 %v1831, 0.7978846
      %v1836 = vtanh.pop %v1832
      %v1837 = vtanh.pop %v1833
      %v1838 = vtanh.pop %v1834
      %v1839 = vtanh.pop %v1835
      %v1840 = vadd.f32 %v1836, 1.0
      %v1841 = vadd.f32 %v1837, 1.0
      %v1842 = vadd.f32 %v1838, 1.0
      %v1843 = vadd.f32 %v1839, 1.0
      %v1844 = vmul.f32 %v1812, %v1840
      %v1845 = vmul.f32 %v1813, %v1841
      %v1846 = vmul.f32 %v1814, %v1842
      %v1847 = vmul.f32 %v1815, %v1843
      %v1848 = vpack.c.bf16 %v1844, %v1844
      %v1849 = vpack.c.bf16 %v1845, %v1845
      %v1850 = vpack.c.bf16 %v1846, %v1846
      %v1851 = vpack.c.bf16 %v1847, %v1847
      %v1852 = vld [vmem:[%s9] sm:$0xf]
      %v1853 = vld [vmem:[%s9 + $0x4] sm:$0xf]
      %v1854 = vld [vmem:[%s9 + $0x8] sm:$0xf]
      %v1855 = vld [vmem:[%s9 + $0xc] sm:$0xf]
      %v1856 = vld [vmem:[%s9 + $0x10] sm:$0xf]
      %v1857 = vld [vmem:[%s9 + $0x14] sm:$0xf]
      %v1858 = vld [vmem:[%s9 + $0x18] sm:$0xf]
      %v1859 = vld [vmem:[%s9 + $0x1c] sm:$0xf]
      %v1860 = vld [vmem:[%s9 + $0x20] sm:$0xf]
      %v1861 = vld [vmem:[%s9 + $0x24] sm:$0xf]
      %v1862 = vld [vmem:[%s9 + $0x28] sm:$0xf]
      %v1863 = vld [vmem:[%s9 + $0x2c] sm:$0xf]
      %v1864 = vld [vmem:[%s9 + $0x30] sm:$0xf]
      %v1865 = vld [vmem:[%s9 + $0x34] sm:$0xf]
      %v1866 = vld [vmem:[%s9 + $0x38] sm:$0xf]
      %v1867 = vld [vmem:[%s9 + $0x3c] sm:$0xf]
      %v1868 = vld [vmem:[%s9 + $0x40] sm:$0xf]
      %v1869 = vld [vmem:[%s9 + $0x44] sm:$0xf]
      %v1870 = vld [vmem:[%s9 + $0x48] sm:$0xf]
      %v1871 = vld [vmem:[%s9 + $0x4c] sm:$0xf]
      %v1872 = vld [vmem:[%s9 + $0x50] sm:$0xf]
      %v1873 = vld [vmem:[%s9 + $0x54] sm:$0xf]
      %v1874 = vld [vmem:[%s9 + $0x58] sm:$0xf]
      %v1875 = vld [vmem:[%s9 + $0x5c] sm:$0xf]
      %v1876 = vld [vmem:[%s9 + $0x60] sm:$0xf]
      %v1877 = vld [vmem:[%s9 + $0x64] sm:$0xf]
      %v1878 = vld [vmem:[%s9 + $0x68] sm:$0xf]
      %v1879 = vld [vmem:[%s9 + $0x6c] sm:$0xf]
      %v1880 = vld [vmem:[%s9 + $0x70] sm:$0xf]
      %v1881 = vld [vmem:[%s9 + $0x74] sm:$0xf]
      %v1882 = vld [vmem:[%s9 + $0x78] sm:$0xf]
      %v1883 = vld [vmem:[%s9 + $0x7c] sm:$0xf]
      %v1884 = vld [vmem:[%s9 + $0x80] sm:$0xf]
      %v1885 = vld [vmem:[%s9 + $0x84] sm:$0xf]
      %v1886 = vld [vmem:[%s9 + $0x88] sm:$0xf]
      %v1887 = vld [vmem:[%s9 + $0x8c] sm:$0xf]
      %v1888 = vld [vmem:[%s9 + $0x90] sm:$0xf]
      %v1889 = vld [vmem:[%s9 + $0x94] sm:$0xf]
      %v1890 = vld [vmem:[%s9 + $0x98] sm:$0xf]
      %v1891 = vld [vmem:[%s9 + $0x9c] sm:$0xf]
      %v1892 = vld [vmem:[%s9 + $0xa0] sm:$0xf]
      %v1893 = vld [vmem:[%s9 + $0xa4] sm:$0xf]
      %v1894 = vld [vmem:[%s9 + $0xa8] sm:$0xf]
      %v1895 = vld [vmem:[%s9 + $0xac] sm:$0xf]
      %v1896 = vld [vmem:[%s9 + $0xb0] sm:$0xf]
      %v1897 = vld [vmem:[%s9 + $0xb4] sm:$0xf]
      %v1898 = vld [vmem:[%s9 + $0xb8] sm:$0xf]
      %v1899 = vld [vmem:[%s9 + $0xbc] sm:$0xf]
      %v1900 = vld [vmem:[%s9 + $0xc0] sm:$0xf]
      %v1901 = vld [vmem:[%s9 + $0xc4] sm:$0xf]
      %v1902 = vld [vmem:[%s9 + $0xc8] sm:$0xf]
      %v1903 = vld [vmem:[%s9 + $0xcc] sm:$0xf]
      %v1904 = vld [vmem:[%s9 + $0xd0] sm:$0xf]
      %v1905 = vld [vmem:[%s9 + $0xd4] sm:$0xf]
      %v1906 = vld [vmem:[%s9 + $0xd8] sm:$0xf]
      %v1907 = vld [vmem:[%s9 + $0xdc] sm:$0xf]
      %v1908 = vld [vmem:[%s9 + $0xe0] sm:$0xf]
      %v1909 = vld [vmem:[%s9 + $0xe4] sm:$0xf]
      %v1910 = vld [vmem:[%s9 + $0xe8] sm:$0xf]
      %v1911 = vld [vmem:[%s9 + $0xec] sm:$0xf]
      %v1912 = vld [vmem:[%s9 + $0xf0] sm:$0xf]
      %v1913 = vld [vmem:[%s9 + $0xf4] sm:$0xf]
      %v1914 = vld [vmem:[%s9 + $0xf8] sm:$0xf]
      %v1915 = vld [vmem:[%s9 + $0xfc] sm:$0xf]
      %v1916 = vld [vmem:[%s10] sm:$0x1]
      %v1918 = vlaneseq
      %v1919 = vshrl.u32 %v1918, 7
      %v1920 = vsub.s32 0, %v1919
      %v1921 = vrot.slane %v1916, %v1920
      %v1987 = vunpack.c.l.b16 %v1852
      %v1988 = vunpack.c.l.b16 %v1853
      %v1989 = vunpack.c.l.b16 %v1854
      %v1990 = vunpack.c.l.b16 %v1855
      %v1991 = vunpack.c.l.b16 %v1856
      %v1992 = vunpack.c.l.b16 %v1857
      %v1993 = vunpack.c.l.b16 %v1858
      %v1994 = vunpack.c.l.b16 %v1859
      %v1995 = vunpack.c.l.b16 %v1860
      %v1996 = vunpack.c.l.b16 %v1861
      %v1997 = vunpack.c.l.b16 %v1862
      %v1998 = vunpack.c.l.b16 %v1863
      %v1999 = vunpack.c.l.b16 %v1864
      %v2000 = vunpack.c.l.b16 %v1865
      %v2001 = vunpack.c.l.b16 %v1866
      %v2002 = vunpack.c.l.b16 %v1867
      %v2003 = vunpack.c.l.b16 %v1868
      %v2004 = vunpack.c.l.b16 %v1869
      %v2005 = vunpack.c.l.b16 %v1870
      %v2006 = vunpack.c.l.b16 %v1871
      %v2007 = vunpack.c.l.b16 %v1872
      %v2008 = vunpack.c.l.b16 %v1873
      %v2009 = vunpack.c.l.b16 %v1874
      %v2010 = vunpack.c.l.b16 %v1875
      %v2011 = vunpack.c.l.b16 %v1876
      %v2012 = vunpack.c.l.b16 %v1877
      %v2013 = vunpack.c.l.b16 %v1878
      %v2014 = vunpack.c.l.b16 %v1879
      %v2015 = vunpack.c.l.b16 %v1880
      %v2016 = vunpack.c.l.b16 %v1881
      %v2017 = vunpack.c.l.b16 %v1882
      %v2018 = vunpack.c.l.b16 %v1883
      %v2019 = vunpack.c.l.b16 %v1884
      %v2020 = vunpack.c.l.b16 %v1885
      %v2021 = vunpack.c.l.b16 %v1886
      %v2022 = vunpack.c.l.b16 %v1887
      %v2023 = vunpack.c.l.b16 %v1888
      %v2024 = vunpack.c.l.b16 %v1889
      %v2025 = vunpack.c.l.b16 %v1890
      %v2026 = vunpack.c.l.b16 %v1891
      %v2027 = vunpack.c.l.b16 %v1892
      %v2028 = vunpack.c.l.b16 %v1893
      %v2029 = vunpack.c.l.b16 %v1894
      %v2030 = vunpack.c.l.b16 %v1895
      %v2031 = vunpack.c.l.b16 %v1896
      %v2032 = vunpack.c.l.b16 %v1897
      %v2033 = vunpack.c.l.b16 %v1898
      %v2034 = vunpack.c.l.b16 %v1899
      %v2035 = vunpack.c.l.b16 %v1900
      %v2036 = vunpack.c.l.b16 %v1901
      %v2037 = vunpack.c.l.b16 %v1902
      %v2038 = vunpack.c.l.b16 %v1903
      %v2039 = vunpack.c.l.b16 %v1904
      %v2040 = vunpack.c.l.b16 %v1905
      %v2041 = vunpack.c.l.b16 %v1906
      %v2042 = vunpack.c.l.b16 %v1907
      %v2043 = vunpack.c.l.b16 %v1908
      %v2044 = vunpack.c.l.b16 %v1909
      %v2045 = vunpack.c.l.b16 %v1910
      %v2046 = vunpack.c.l.b16 %v1911
      %v2047 = vunpack.c.l.b16 %v1912
      %v2048 = vunpack.c.l.b16 %v1913
      %v2049 = vunpack.c.l.b16 %v1914
      %v2050 = vunpack.c.l.b16 %v1915
      %v2051 = vpack.c.b16 %v1988, %v1987
      %v2052 = vpack.c.b16 %v1990, %v1989
      %v2053 = vpack.c.b16 %v1992, %v1991
      %v2054 = vpack.c.b16 %v1994, %v1993
      %v2055 = vpack.c.b16 %v1996, %v1995
      %v2056 = vpack.c.b16 %v1998, %v1997
      %v2057 = vpack.c.b16 %v2000, %v1999
      %v2058 = vpack.c.b16 %v2002, %v2001
      %v2059 = vpack.c.b16 %v2004, %v2003
      %v2060 = vpack.c.b16 %v2006, %v2005
      %v2061 = vpack.c.b16 %v2008, %v2007
      %v2062 = vpack.c.b16 %v2010, %v2009
      %v2063 = vpack.c.b16 %v2012, %v2011
      %v2064 = vpack.c.b16 %v2014, %v2013
      %v2065 = vpack.c.b16 %v2016, %v2015
      %v2066 = vpack.c.b16 %v2018, %v2017
      %v2067 = vpack.c.b16 %v2020, %v2019
      %v2068 = vpack.c.b16 %v2022, %v2021
      %v2069 = vpack.c.b16 %v2024, %v2023
      %v2070 = vpack.c.b16 %v2026, %v2025
      %v2071 = vpack.c.b16 %v2028, %v2027
      %v2072 = vpack.c.b16 %v2030, %v2029
      %v2073 = vpack.c.b16 %v2032, %v2031
      %v2074 = vpack.c.b16 %v2034, %v2033
      %v2075 = vpack.c.b16 %v2036, %v2035
      %v2076 = vpack.c.b16 %v2038, %v2037
      %v2077 = vpack.c.b16 %v2040, %v2039
      %v2078 = vpack.c.b16 %v2042, %v2041
      %v2079 = vpack.c.b16 %v2044, %v2043
      %v2080 = vpack.c.b16 %v2046, %v2045
      %v2081 = vpack.c.b16 %v2048, %v2047
      %v2082 = vpack.c.b16 %v2050, %v2049
      %2115 = vmatprep.subr.bf16.mxu0 0
      %2116 = vmatpush1.bf16.msra.mxu0 %v2051
      %2117 = vmatprep.subr.bf16.mxu0 0
      %2118 = vmatpush1.bf16.msra.mxu0 %v2052
      %2119 = vmatprep.subr.bf16.mxu0 0
      %2120 = vmatpush1.bf16.msra.mxu0 %v2053
      %2121 = vmatprep.subr.bf16.mxu0 0
      %2122 = vmatpush1.bf16.msra.mxu0 %v2054
      %2123 = vmatprep.subr.bf16.mxu0 0
      %2124 = vmatpush1.bf16.msra.mxu0 %v2055
      %2125 = vmatprep.subr.bf16.mxu0 0
      %2126 = vmatpush1.bf16.msra.mxu0 %v2056
      %2127 = vmatprep.subr.bf16.mxu0 0
      %2128 = vmatpush1.bf16.msra.mxu0 %v2057
      %2129 = vmatprep.subr.bf16.mxu0 0
      %2130 = vmatpush1.bf16.msra.mxu0 %v2058
      %2131 = vmatprep.subr.bf16.mxu0 0
      %2132 = vmatpush1.bf16.msra.mxu0 %v2059
      %2133 = vmatprep.subr.bf16.mxu0 0
      %2134 = vmatpush1.bf16.msra.mxu0 %v2060
      %2135 = vmatprep.subr.bf16.mxu0 0
      %2136 = vmatpush1.bf16.msra.mxu0 %v2061
      %2137 = vmatprep.subr.bf16.mxu0 0
      %2138 = vmatpush1.bf16.msra.mxu0 %v2062
      %2139 = vmatprep.subr.bf16.mxu0 0
      %2140 = vmatpush1.bf16.msra.mxu0 %v2063
      %2141 = vmatprep.subr.bf16.mxu0 0
      %2142 = vmatpush1.bf16.msra.mxu0 %v2064
      %2143 = vmatprep.subr.bf16.mxu0 0
      %2144 = vmatpush1.bf16.msra.mxu0 %v2065
      %2145 = vmatprep.subr.bf16.mxu0 0
      %2146 = vmatpush1.bf16.msra.mxu0 %v2066
      %2147 = vmatprep.mubr.bf16.mxu0 %v1849
      %2148 = vmatmul.mubr.bf16.gmra.mrb[0].mxu0 %v1848
      %v2149 = vpop.f32.mrb[0].mxu0
      %v2150 = vadd.f32 %v1921, %v2149
      %v2151 = vpop.f32.mrb[0].mxu0
      %v2152 = vpop.f32.mrb[0].mxu0
      %v2153 = vpop.f32.mrb[0].mxu0
      %2154 = vdwg.mxu0
      %2155 = vmatprep.subr.bf16.mxu0 0
      %2156 = vmatpush1.bf16.msra.mxu0 %v2067
      %2157 = vmatprep.subr.bf16.mxu0 0
      %2158 = vmatpush1.bf16.msra.mxu0 %v2068
      %2159 = vmatprep.subr.bf16.mxu0 0
      %2160 = vmatpush1.bf16.msra.mxu0 %v2069
      %2161 = vmatprep.subr.bf16.mxu0 0
      %2162 = vmatpush1.bf16.msra.mxu0 %v2070
      %2163 = vmatprep.subr.bf16.mxu0 0
      %2164 = vmatpush1.bf16.msra.mxu0 %v2071
      %2165 = vmatprep.subr.bf16.mxu0 0
      %2166 = vmatpush1.bf16.msra.mxu0 %v2072
      %2167 = vmatprep.subr.bf16.mxu0 0
      %2168 = vmatpush1.bf16.msra.mxu0 %v2073
      %2169 = vmatprep.subr.bf16.mxu0 0
      %2170 = vmatpush1.bf16.msra.mxu0 %v2074
      %2171 = vmatprep.subr.bf16.mxu0 0
      %2172 = vmatpush1.bf16.msra.mxu0 %v2075
      %2173 = vmatprep.subr.bf16.mxu0 0
      %2174 = vmatpush1.bf16.msra.mxu0 %v2076
      %2175 = vmatprep.subr.bf16.mxu0 0
      %2176 = vmatpush1.bf16.msra.mxu0 %v2077
      %2177 = vmatprep.subr.bf16.mxu0 0
      %2178 = vmatpush1.bf16.msra.mxu0 %v2078
      %2179 = vmatprep.subr.bf16.mxu0 0
      %2180 = vmatpush1.bf16.msra.mxu0 %v2079
      %2181 = vmatprep.subr.bf16.mxu0 0
      %2182 = vmatpush1.bf16.msra.mxu0 %v2080
      %2183 = vmatprep.subr.bf16.mxu0 0
      %2184 = vmatpush1.bf16.msra.mxu0 %v2081
      %2185 = vmatprep.subr.bf16.mxu0 0
      %2186 = vmatpush1.bf16.msra.mxu0 %v2082
      %2187 = vmatprep.mubr.bf16.mxu0 %v1851
      %2188 = vmatmul.mubr.bf16.gmra.mrb[0].mxu0 %v1850
      %v2189 = vpop.f32.mrb[0].mxu0
      %v2190 = vadd.f32 %v2150, %v2189
      %v2191 = vpop.f32.mrb[0].mxu0
      %v2192 = vpop.f32.mrb[0].mxu0
      %v2193 = vpop.f32.mrb[0].mxu0
      %2194 = vdwg.mxu0
      %v2195 = vadd.f32 %v2190, %v1514
      %v2196 = vld [vmem:[%s11] sm:$0x1]
      %v2197 = vld [vmem:[%s12] sm:$0x1]
      %2198 = vadd.xlane.f32.xlu0 %v2195
      %v2199 = vpop.xlane.xlu0 %2198
      %v2200 = vmul.f32 %v2199, %v1491
      %v2201 = vsub.f32 %v2195, %v2200
      %v2202 = vmul.f32 %v2201, %v2201
      %2203 = vadd.xlane.f32.xlu0 %v2202
      %v2204 = vpop.xlane.xlu0 %2203
      %v2205 = vmul.f32 %v2204, %v1491
      %v2206 = vadd.f32 %v2205, 1e-12
      %v2207 = vrsqrt.pop %v2206
      %v2208 = vmul.f32 %v2201, %v2207
      %v2210 = vlaneseq
      %v2211 = vshrl.u32 %v2210, 7
      %v2212 = vsub.s32 0, %v2211
      %v2213 = vrot.slane %v2196, %v2212
      %v2215 = vmul.f32 %v2208, %v2213
      %v2217 = vlaneseq
      %v2218 = vshrl.u32 %v2217, 7
      %v2219 = vsub.s32 0, %v2218
      %v2220 = vrot.slane %v2197, %v2219
      %v2222 = vadd.f32 %v2215, %v2220
      %v2223 = vpack.c.bf16 %v2222, %v2222
      %2224 = vst [vmem:[%s435] sm:$0xf] %v2223
      %p2225 = scmp.lt.s32.totalorder %s24, 1
      %s2226 = scalar_select %p2225, %s24, 1
      %s2227 = smul.addr %s2226, 4
      %s2228 = scalar_lea.vmem %s13, %s2227
      // Predicated region
      $region73: #{modified_bert_model.3} parent=71 // pred_check
        %p2229 = pneg %p320
      $region74: #{modified_bert_model.3} parent=71 // pred_check_branch
        %2231 = sbr.rel (%p2229) target = $region76
      $region75: #{modified_bert_model.3} parent=71 // pred_region
        _
      $region76: #{modified_bert_model.3} parent=71 // pred_fallthru
        _
    $region72: #{modified_bert_model.3} parent=5 // pred_fallthru
      _
    %p2232 = scmp.le.s32.totalorder 2, %s19
    // Predicated region
    $region77: #{modified_bert_model.3} parent=5 // pred_check
      %p2233 = pneg %p2232
    $region78: #{modified_bert_model.3} parent=5 // pred_check_branch
      %2235 = sbr.rel (%p2233) target = $region80
    $region79: #{modified_bert_model.3} parent=5 // pred_region
      %s2236 = ssub.s32 %s19, 2
      // Predicated region
      $region81: #{modified_bert_model.3} parent=79 // pred_check
        %p2237 = pneg %p326
      $region82: #{modified_bert_model.3} parent=79 // pred_check_branch
        %2239 = sbr.rel (%p2237) target = $region84
      $region83: #{modified_bert_model.3} parent=79 // pred_region
        %p2240 = scmp.lt.s32.totalorder %s25, 1
        %s2241 = scalar_select %p2240, %s25, 1
        %s2242 = smul.addr %s2241, 4
        %s2243 = scalar_lea.vmem %s13, %s2242
      $region84: #{modified_bert_model.3} parent=79 // pred_fallthru
        _
    $region80: #{modified_bert_model.3} parent=5 // pred_fallthru
      _
  $region6: #{modified_bert_model.3} parent=0 // loop_footer
    %s23 = sadd.s32 1, %s19
  $region7: #{modified_bert_model.3} parent=0 // loop_footer_branch
    %18 = sbr.rel target = $region3
  $region8: #{modified_bert_model.3} parent=0 // loop_exit
    _

// kernel: modified_bert_model.2
$region0: #{modified_bert_model.2}
  #allocation0 [shape = 'u32[]', space=smem, size = 0x4, offset = 0x4, fixed_abs, tag = 'smem constant byte address 0x4 - core index']
  #allocation1 [shape = 'u32[144,128]{1,0:T(1,128)}', space=vmem, size = 0x12000, scoped, tag = 'internal scratch']
  %s0 = inlined_call_operand.vmem [shape: bf16[2,8,128], index: 0, kind: input, shape index: {}]
  %s1 = inlined_call_operand.hbm [shape: bf16[128,384], index: 1, kind: input, shape index: {}]
  %s2 = inlined_call_operand.hbm [shape: f32[1,384], index: 2, kind: input, shape index: {}]
  %s3 = inlined_call_operand.vmem [shape: bf16[2,64,128], index: 3, kind: input, shape index: {}]
  %s4 = inlined_call_operand.vmem [shape: f32[1,128], index: 4, kind: input, shape index: {}]
  %s5 = inlined_call_operand.hbm [shape: f32[1,128], index: 5, kind: input, shape index: {}]
  %s6 = inlined_call_operand.hbm [shape: f32[1,128], index: 6, kind: input, shape index: {}]
  %s7 = inlined_call_operand.hbm [shape: bf16[128,512], index: 7, kind: input, shape index: {}]
  %s8 = inlined_call_operand.vmem [shape: f32[1,512], index: 8, kind: input, shape index: {}]
  %s9 = inlined_call_operand.hbm [shape: bf16[512,128], index: 9, kind: input, shape index: {}]
  %s10 = inlined_call_operand.hbm [shape: f32[1,128], index: 10, kind: input, shape index: {}]
  %s11 = inlined_call_operand.hbm [shape: f32[1,128], index: 11, kind: input, shape index: {}]
  %s12 = inlined_call_operand.hbm [shape: f32[1,128], index: 12, kind: input, shape index: {}]
  %s13 = inlined_call_operand.vmem [shape: bf16[2,8,128], index: 13, kind: output, shape index: {}]
  %s14 = sld [smem:[#allocation0]]
  $region121: #{modified_bert_model.2} parent=0
    _
  %s16 = ssub.s32 1, %s14
  %s17 = scalar_select 0, %s16, %s14
  $region1: #{modified_bert_model.2} parent=0
    #allocation2 [shape = 'u8[98304]{0}', space=vmem, size = 0x18000, scoped, tag = 'input window, operand 1, single buffered']
    #allocation3 [shape = 's32[2]{0}', space=sflag, size = 0x8, scoped, tag = 'scoped memory for modified_bert_model.2']
    #allocation4 [shape = 'u8[1536]{0}', space=vmem, size = 0x800, scoped, tag = 'input window, operand 2, single buffered']
    #allocation5 [shape = 's32[1]{0}', space=sflag, size = 0x4, scoped, tag = 'scoped memory for modified_bert_model.2']
    #allocation6 [shape = 'u8[512]{0}', space=vmem, size = 0x400, scoped, tag = 'input window, operand 5, single buffered']
    #allocation7 [shape = 'u8[512]{0}', space=vmem, size = 0x400, scoped, tag = 'input window, operand 6, single buffered']
    #allocation8 [shape = 's32[1]{0}', space=sflag, size = 0x4, scoped, tag = 'scoped memory for modified_bert_model.2']
    #allocation9 [shape = 'u8[131072]{0}', space=vmem, size = 0x20000, scoped, tag = 'input window, operand 7, single buffered']
    #allocation10 [shape = 'u8[131072]{0}', space=vmem, size = 0x20000, scoped, tag = 'input window, operand 9, single buffered']
    #allocation11 [shape = 's32[1]{0}', space=sflag, size = 0x4, scoped, tag = 'scoped memory for modified_bert_model.2']
    #allocation12 [shape = 'u8[512]{0}', space=vmem, size = 0x400, scoped, tag = 'input window, operand 10, single buffered']
    #allocation13 [shape = 'u8[512]{0}', space=vmem, size = 0x400, scoped, tag = 'input window, operand 11, single buffered']
    #allocation14 [shape = 's32[1]{0}', space=sflag, size = 0x4, scoped, tag = 'scoped memory for modified_bert_model.2']
    #allocation15 [shape = 'u8[512]{0}', space=vmem, size = 0x400, scoped, tag = 'input window, operand 12, single buffered']
    %18 = vsyncpa [#allocation3], 0
    %19 = vsyncpa [#allocation5], 0
    %20 = vsyncpa [#allocation8], 0
    %21 = vsyncpa [#allocation11], 0
    %22 = vsyncpa [#allocation14], 0
    loop: start=0, step=1, limit=4
    $region2: #{modified_bert_model.2} parent=1 // loop_pre_header
      _
    $region3: #{modified_bert_model.2} parent=1 // loop_header
      %s24 = sphi 0, %s28
      %p25 = scmp.ge.s32.totalorder %s24, 4
      %s34 = sphi 0, %s36
      %s37 = sphi 0, %s34
      %s38 = sphi 0, %s37
      %s54 = sphi 0, %s38
      %s58 = sphi 0, %s58
      %s60 = sphi 0, %s58
      %s61 = sphi 0, %s60
      %s75 = sphi 0, %s61
      %s79 = sphi 0, %s79
      %s81 = sphi 0, %s79
      %s82 = sphi 0, %s81
      %s96 = sphi 0, %s82
      %s100 = sphi 0, %s100
      %s102 = sphi 0, %s100
      %s103 = sphi 0, %s102
      %s117 = sphi 0, %s103
      %s121 = sphi 0, %s121
      %s123 = sphi 0, %s121
      %s124 = sphi 0, %s123
      %s138 = sphi 0, %s124
      %s142 = sphi 0, %s142
      %s144 = sphi 0, %s142
      %s145 = sphi 0, %s144
      %s159 = sphi 0, %s145
      %s163 = sphi 0, %s163
      %s165 = sphi 0, %s163
      %s166 = sphi 0, %s165
      %s180 = sphi 0, %s166
      %s184 = sphi 0, %s184
      %s186 = sphi 0, %s184
      %s187 = sphi 0, %s186
      %s201 = sphi 0, %s187
      %s205 = sphi 0, %s205
      %s207 = sphi 0, %s205
      %s208 = sphi 0, %s207
      %s222 = sphi 0, %s208
      %s226 = sphi 0, %s226
      %s228 = sphi 0, %s226
      %s229 = sphi 0, %s228
      %s243 = sphi 0, %s229
      %s247 = sphi 0, %s247
      %s249 = sphi 0, %s247
      %s250 = sphi 0, %s249
      %s264 = sphi 0, %s250
      %s268 = sphi 0, %s268
      %s270 = sphi 0, %s268
      %s271 = sphi 0, %s270
      %s285 = sphi 0, %s271
      %s289 = sphi 0, %s289
      %s291 = sphi 0, %s289
      %s292 = sphi 0, %s291
      %s306 = sphi 0, %s292
      %s312 = sphi 0, %s314
      %s315 = sphi 0, %s312
      %s316 = sphi 0, %s315
      %s332 = sphi 0, %s316
    $region4: #{modified_bert_model.2} parent=1 // loop_header_branch
      %27 = sbr.rel (%p25) target = $region8
    $region5: #{modified_bert_model.2} parent=1 // loop_body
      %s29 = ssub.s32 %s24, 1
      %s30 = ssub.s32 %s24, 2
      %s31 = sadd.s32 %s24, 1
      %s32 = ssub.s32 %s24, %s31
      %p33 = scmp.eq.s32.totalorder %s32, 0
      %s35 = sadd.s32 %s34, 1
      %s36 = scalar_select %p33, %s34, %s35
      %p39 = pneg %p33
      %p40 = scmp.eq.s32.totalorder %s24, 1
      %p41 = por %p39, %p40
      %p42 = scmp.ne.s32.totalorder %s34, %s37
      %p43 = scmp.eq.s32.totalorder %s24, 0
      %p44 = por %p42, %p43
      %p45 = scmp.ne.s32.totalorder %s34, %s37
      %p46 = scmp.eq.s32.totalorder %s29, 1
      %p47 = por %p45, %p46
      %p48 = scmp.ne.s32.totalorder %s37, %s38
      %p49 = scmp.eq.s32.totalorder %s29, 0
      %p50 = por %p48, %p49
      %p51 = scmp.ne.s32.totalorder %s37, %s38
      %p52 = scmp.eq.s32.totalorder %s30, 1
      %p53 = por %p51, %p52
      %p55 = scmp.ne.s32.totalorder %s38, %s54
      %p56 = scmp.eq.s32.totalorder %s30, 0
      %p57 = por %p55, %p56
      %s59 = sadd.s32 %s58, 1
      %p62 = scmp.eq.s32.totalorder %s24, 1
      %p63 = scmp.ne.s32.totalorder %s58, %s60
      %p64 = scmp.eq.s32.totalorder %s24, 0
      %p65 = por %p63, %p64
      %p66 = scmp.ne.s32.totalorder %s58, %s60
      %p67 = scmp.eq.s32.totalorder %s29, 1
      %p68 = por %p66, %p67
      %p69 = scmp.ne.s32.totalorder %s60, %s61
      %p70 = scmp.eq.s32.totalorder %s29, 0
      %p71 = por %p69, %p70
      %p72 = scmp.ne.s32.totalorder %s60, %s61
      %p73 = scmp.eq.s32.totalorder %s30, 1
      %p74 = por %p72, %p73
      %p76 = scmp.ne.s32.totalorder %s61, %s75
      %p77 = scmp.eq.s32.totalorder %s30, 0
      %p78 = por %p76, %p77
      %s80 = sadd.s32 %s79, 1
      %p83 = scmp.eq.s32.totalorder %s24, 1
      %p84 = scmp.ne.s32.totalorder %s79, %s81
      %p85 = scmp.eq.s32.totalorder %s24, 0
      %p86 = por %p84, %p85
      %p87 = scmp.ne.s32.totalorder %s79, %s81
      %p88 = scmp.eq.s32.totalorder %s29, 1
      %p89 = por %p87, %p88
      %p90 = scmp.ne.s32.totalorder %s81, %s82
      %p91 = scmp.eq.s32.totalorder %s29, 0
      %p92 = por %p90, %p91
      %p93 = scmp.ne.s32.totalorder %s81, %s82
      %p94 = scmp.eq.s32.totalorder %s30, 1
      %p95 = por %p93, %p94
      %p97 = scmp.ne.s32.totalorder %s82, %s96
      %p98 = scmp.eq.s32.totalorder %s30, 0
      %p99 = por %p97, %p98
      %s101 = sadd.s32 %s100, 1
      %p104 = scmp.eq.s32.totalorder %s24, 1
      %p105 = scmp.ne.s32.totalorder %s100, %s102
      %p106 = scmp.eq.s32.totalorder %s24, 0
      %p107 = por %p105, %p106
      %p108 = scmp.ne.s32.totalorder %s100, %s102
      %p109 = scmp.eq.s32.totalorder %s29, 1
      %p110 = por %p108, %p109
      %p111 = scmp.ne.s32.totalorder %s102, %s103
      %p112 = scmp.eq.s32.totalorder %s29, 0
      %p113 = por %p111, %p112
      %p114 = scmp.ne.s32.totalorder %s102, %s103
      %p115 = scmp.eq.s32.totalorder %s30, 1
      %p116 = por %p114, %p115
      %p118 = scmp.ne.s32.totalorder %s103, %s117
      %p119 = scmp.eq.s32.totalorder %s30, 0
      %p120 = por %p118, %p119
      %s122 = sadd.s32 %s121, 1
      %p125 = scmp.eq.s32.totalorder %s24, 1
      %p126 = scmp.ne.s32.totalorder %s121, %s123
      %p127 = scmp.eq.s32.totalorder %s24, 0
      %p128 = por %p126, %p127
      %p129 = scmp.ne.s32.totalorder %s121, %s123
      %p130 = scmp.eq.s32.totalorder %s29, 1
      %p131 = por %p129, %p130
      %p132 = scmp.ne.s32.totalorder %s123, %s124
      %p133 = scmp.eq.s32.totalorder %s29, 0
      %p134 = por %p132, %p133
      %p135 = scmp.ne.s32.totalorder %s123, %s124
      %p136 = scmp.eq.s32.totalorder %s30, 1
      %p137 = por %p135, %p136
      %p139 = scmp.ne.s32.totalorder %s124, %s138
      %p140 = scmp.eq.s32.totalorder %s30, 0
      %p141 = por %p139, %p140
      %s143 = sadd.s32 %s142, 1
      %p146 = scmp.eq.s32.totalorder %s24, 1
      %p147 = scmp.ne.s32.totalorder %s142, %s144
      %p148 = scmp.eq.s32.totalorder %s24, 0
      %p149 = por %p147, %p148
      %p150 = scmp.ne.s32.totalorder %s142, %s144
      %p151 = scmp.eq.s32.totalorder %s29, 1
      %p152 = por %p150, %p151
      %p153 = scmp.ne.s32.totalorder %s144, %s145
      %p154 = scmp.eq.s32.totalorder %s29, 0
      %p155 = por %p153, %p154
      %p156 = scmp.ne.s32.totalorder %s144, %s145
      %p157 = scmp.eq.s32.totalorder %s30, 1
      %p158 = por %p156, %p157
      %p160 = scmp.ne.s32.totalorder %s145, %s159
      %p161 = scmp.eq.s32.totalorder %s30, 0
      %p162 = por %p160, %p161
      %s164 = sadd.s32 %s163, 1
      %p167 = scmp.eq.s32.totalorder %s24, 1
      %p168 = scmp.ne.s32.totalorder %s163, %s165
      %p169 = scmp.eq.s32.totalorder %s24, 0
      %p170 = por %p168, %p169
      %p171 = scmp.ne.s32.totalorder %s163, %s165
      %p172 = scmp.eq.s32.totalorder %s29, 1
      %p173 = por %p171, %p172
      %p174 = scmp.ne.s32.totalorder %s165, %s166
      %p175 = scmp.eq.s32.totalorder %s29, 0
      %p176 = por %p174, %p175
      %p177 = scmp.ne.s32.totalorder %s165, %s166
      %p178 = scmp.eq.s32.totalorder %s30, 1
      %p179 = por %p177, %p178
      %p181 = scmp.ne.s32.totalorder %s166, %s180
      %p182 = scmp.eq.s32.totalorder %s30, 0
      %p183 = por %p181, %p182
      %s185 = sadd.s32 %s184, 1
      %p188 = scmp.eq.s32.totalorder %s24, 1
      %p189 = scmp.ne.s32.totalorder %s184, %s186
      %p190 = scmp.eq.s32.totalorder %s24, 0
      %p191 = por %p189, %p190
      %p192 = scmp.ne.s32.totalorder %s184, %s186
      %p193 = scmp.eq.s32.totalorder %s29, 1
      %p194 = por %p192, %p193
      %p195 = scmp.ne.s32.totalorder %s186, %s187
      %p196 = scmp.eq.s32.totalorder %s29, 0
      %p197 = por %p195, %p196
      %p198 = scmp.ne.s32.totalorder %s186, %s187
      %p199 = scmp.eq.s32.totalorder %s30, 1
      %p200 = por %p198, %p199
      %p202 = scmp.ne.s32.totalorder %s187, %s201
      %p203 = scmp.eq.s32.totalorder %s30, 0
      %p204 = por %p202, %p203
      %s206 = sadd.s32 %s205, 1
      %p209 = scmp.eq.s32.totalorder %s24, 1
      %p210 = scmp.ne.s32.totalorder %s205, %s207
      %p211 = scmp.eq.s32.totalorder %s24, 0
      %p212 = por %p210, %p211
      %p213 = scmp.ne.s32.totalorder %s205, %s207
      %p214 = scmp.eq.s32.totalorder %s29, 1
      %p215 = por %p213, %p214
      %p216 = scmp.ne.s32.totalorder %s207, %s208
      %p217 = scmp.eq.s32.totalorder %s29, 0
      %p218 = por %p216, %p217
      %p219 = scmp.ne.s32.totalorder %s207, %s208
      %p220 = scmp.eq.s32.totalorder %s30, 1
      %p221 = por %p219, %p220
      %p223 = scmp.ne.s32.totalorder %s208, %s222
      %p224 = scmp.eq.s32.totalorder %s30, 0
      %p225 = por %p223, %p224
      %s227 = sadd.s32 %s226, 1
      %p230 = scmp.eq.s32.totalorder %s24, 1
      %p231 = scmp.ne.s32.totalorder %s226, %s228
      %p232 = scmp.eq.s32.totalorder %s24, 0
      %p233 = por %p231, %p232
      %p234 = scmp.ne.s32.totalorder %s226, %s228
      %p235 = scmp.eq.s32.totalorder %s29, 1
      %p236 = por %p234, %p235
      %p237 = scmp.ne.s32.totalorder %s228, %s229
      %p238 = scmp.eq.s32.totalorder %s29, 0
      %p239 = por %p237, %p238
      %p240 = scmp.ne.s32.totalorder %s228, %s229
      %p241 = scmp.eq.s32.totalorder %s30, 1
      %p242 = por %p240, %p241
      %p244 = scmp.ne.s32.totalorder %s229, %s243
      %p245 = scmp.eq.s32.totalorder %s30, 0
      %p246 = por %p244, %p245
      %s248 = sadd.s32 %s247, 1
      %p251 = scmp.eq.s32.totalorder %s24, 1
      %p252 = scmp.ne.s32.totalorder %s247, %s249
      %p253 = scmp.eq.s32.totalorder %s24, 0
      %p254 = por %p252, %p253
      %p255 = scmp.ne.s32.totalorder %s247, %s249
      %p256 = scmp.eq.s32.totalorder %s29, 1
      %p257 = por %p255, %p256
      %p258 = scmp.ne.s32.totalorder %s249, %s250
      %p259 = scmp.eq.s32.totalorder %s29, 0
      %p260 = por %p258, %p259
      %p261 = scmp.ne.s32.totalorder %s249, %s250
      %p262 = scmp.eq.s32.totalorder %s30, 1
      %p263 = por %p261, %p262
      %p265 = scmp.ne.s32.totalorder %s250, %s264
      %p266 = scmp.eq.s32.totalorder %s30, 0
      %p267 = por %p265, %p266
      %s269 = sadd.s32 %s268, 1
      %p272 = scmp.eq.s32.totalorder %s24, 1
      %p273 = scmp.ne.s32.totalorder %s268, %s270
      %p274 = scmp.eq.s32.totalorder %s24, 0
      %p275 = por %p273, %p274
      %p276 = scmp.ne.s32.totalorder %s268, %s270
      %p277 = scmp.eq.s32.totalorder %s29, 1
      %p278 = por %p276, %p277
      %p279 = scmp.ne.s32.totalorder %s270, %s271
      %p280 = scmp.eq.s32.totalorder %s29, 0
      %p281 = por %p279, %p280
      %p282 = scmp.ne.s32.totalorder %s270, %s271
      %p283 = scmp.eq.s32.totalorder %s30, 1
      %p284 = por %p282, %p283
      %p286 = scmp.ne.s32.totalorder %s271, %s285
      %p287 = scmp.eq.s32.totalorder %s30, 0
      %p288 = por %p286, %p287
      %s290 = sadd.s32 %s289, 1
      %p293 = scmp.eq.s32.totalorder %s24, 1
      %p294 = scmp.ne.s32.totalorder %s289, %s291
      %p295 = scmp.eq.s32.totalorder %s24, 0
      %p296 = por %p294, %p295
      %p297 = scmp.ne.s32.totalorder %s289, %s291
      %p298 = scmp.eq.s32.totalorder %s29, 1
      %p299 = por %p297, %p298
      %p300 = scmp.ne.s32.totalorder %s291, %s292
      %p301 = scmp.eq.s32.totalorder %s29, 0
      %p302 = por %p300, %p301
      %p303 = scmp.ne.s32.totalorder %s291, %s292
      %p304 = scmp.eq.s32.totalorder %s30, 1
      %p305 = por %p303, %p304
      %p307 = scmp.ne.s32.totalorder %s292, %s306
      %p308 = scmp.eq.s32.totalorder %s30, 0
      %p309 = por %p307, %p308
      %s310 = ssub.s32 %s24, %s31
      %p311 = scmp.eq.s32.totalorder %s310, 0
      %s313 = sadd.s32 %s312, 1
      %s314 = scalar_select %p311, %s312, %s313
      %p317 = pneg %p311
      %p318 = scmp.eq.s32.totalorder %s24, 1
      %p319 = por %p317, %p318
      %p320 = scmp.ne.s32.totalorder %s312, %s315
      %p321 = scmp.eq.s32.totalorder %s24, 0
      %p322 = por %p320, %p321
      %p323 = scmp.ne.s32.totalorder %s312, %s315
      %p324 = scmp.eq.s32.totalorder %s29, 1
      %p325 = por %p323, %p324
      %p326 = scmp.ne.s32.totalorder %s315, %s316
      %p327 = scmp.eq.s32.totalorder %s29, 0
      %p328 = por %p326, %p327
      %p329 = scmp.ne.s32.totalorder %s315, %s316
      %p330 = scmp.eq.s32.totalorder %s30, 1
      %p331 = por %p329, %p330
      %p333 = scmp.ne.s32.totalorder %s316, %s332
      %p334 = scmp.eq.s32.totalorder %s30, 0
      %p335 = por %p333, %p334
      %p336 = scmp.le.s32.totalorder 1, %s24
      %p337 = scmp.lt.s32.totalorder %s24, 3
      %p338 = pnand %p336, %p337
      %p339 = pneg %p338
      // Predicated region
      $region9: #{modified_bert_model.2} parent=5 // pred_check
        _
      $region10: #{modified_bert_model.2} parent=5 // pred_check_branch
        %341 = sbr.rel (%p338) target = $region12
      $region11: #{modified_bert_model.2} parent=5 // pred_region
        %s342 = ssub.s32 %s24, 1
        // Predicated region
        $region13: #{modified_bert_model.2} parent=11 // pred_check
          %p343 = pneg %p71
        $region14: #{modified_bert_model.2} parent=11 // pred_check_branch
          %345 = sbr.rel (%p343) target = $region16
        $region15: #{modified_bert_model.2} parent=11 // pred_region
          %s347 = ssub.s32 3072, 3072
          %348 = vsyncadd [#allocation3], %s347
          %s349 = sshll.u32 [#allocation2], 4
          %s350 = int_to_ptr.vmem [resolvable:$true] %s349
          %355 = dma.hbm_to_vmem [thread:$0]  %s1, 3072, %s350, [#allocation3], 192, 192, 12
        $region16: #{modified_bert_model.2} parent=11 // pred_fallthru
          _
        // Predicated region
        $region17: #{modified_bert_model.2} parent=11 // pred_check
          %p356 = pneg %p92
        $region18: #{modified_bert_model.2} parent=11 // pred_check_branch
          %358 = sbr.rel (%p356) target = $region20
        $region19: #{modified_bert_model.2} parent=11 // pred_region
          %s360 = ssub.s32 48, 48
          %361 = vsyncadd [#allocation5], %s360
          %s363 = sshll.u32 [#allocation4], 4
          %s364 = int_to_ptr.vmem [resolvable:$true] %s363
          %366 = dma.hbm_to_vmem [thread:$0]  %s2, 48, %s364, [#allocation5]
        $region20: #{modified_bert_model.2} parent=11 // pred_fallthru
          _
        // Predicated region
        $region21: #{modified_bert_model.2} parent=11 // pred_check
          %p367 = pneg %p113
        $region22: #{modified_bert_model.2} parent=11 // pred_check_branch
          %369 = sbr.rel (%p367) target = $region24
        $region23: #{modified_bert_model.2} parent=11 // pred_region
          _
        $region24: #{modified_bert_model.2} parent=11 // pred_fallthru
          _
        // Predicated region
        $region25: #{modified_bert_model.2} parent=11 // pred_check
          %p370 = pneg %p134
        $region26: #{modified_bert_model.2} parent=11 // pred_check_branch
          %372 = sbr.rel (%p370) target = $region28
        $region27: #{modified_bert_model.2} parent=11 // pred_region
          _
        $region28: #{modified_bert_model.2} parent=11 // pred_fallthru
          _
        // Predicated region
        $region29: #{modified_bert_model.2} parent=11 // pred_check
          %p373 = pneg %p155
        $region30: #{modified_bert_model.2} parent=11 // pred_check_branch
          %375 = sbr.rel (%p373) target = $region32
        $region31: #{modified_bert_model.2} parent=11 // pred_region
          %s377 = ssub.s32 16, 16
          %378 = vsyncadd [#allocation5], %s377
          %s380 = sshll.u32 [#allocation6], 4
          %s381 = int_to_ptr.vmem [resolvable:$true] %s380
          %383 = dma.hbm_to_vmem [thread:$0]  %s5, 16, %s381, [#allocation5]
        $region32: #{modified_bert_model.2} parent=11 // pred_fallthru
          _
        // Predicated region
        $region33: #{modified_bert_model.2} parent=11 // pred_check
          %p384 = pneg %p176
        $region34: #{modified_bert_model.2} parent=11 // pred_check_branch
          %386 = sbr.rel (%p384) target = $region36
        $region35: #{modified_bert_model.2} parent=11 // pred_region
          %s388 = ssub.s32 16, 16
          %389 = vsyncadd [#allocation8], %s388
          %s391 = sshll.u32 [#allocation7], 4
          %s392 = int_to_ptr.vmem [resolvable:$true] %s391
          %394 = dma.hbm_to_vmem [thread:$0]  %s6, 16, %s392, [#allocation8]
        $region36: #{modified_bert_model.2} parent=11 // pred_fallthru
          _
        // Predicated region
        $region37: #{modified_bert_model.2} parent=11 // pred_check
          %p395 = pneg %p197
        $region38: #{modified_bert_model.2} parent=11 // pred_check_branch
          %397 = sbr.rel (%p395) target = $region40
        $region39: #{modified_bert_model.2} parent=11 // pred_region
          %s399 = ssub.s32 4096, 4096
          %400 = vsyncadd [#allocation8], %s399
          %s401 = sshll.u32 [#allocation9], 4
          %s402 = int_to_ptr.vmem [resolvable:$true] %s401
          %407 = dma.hbm_to_vmem [thread:$0]  %s7, 4096, %s402, [#allocation8], 256, 256, 16
        $region40: #{modified_bert_model.2} parent=11 // pred_fallthru
          _
        // Predicated region
        $region41: #{modified_bert_model.2} parent=11 // pred_check
          %p408 = pneg %p218
        $region42: #{modified_bert_model.2} parent=11 // pred_check_branch
          %410 = sbr.rel (%p408) target = $region44
        $region43: #{modified_bert_model.2} parent=11 // pred_region
          _
        $region44: #{modified_bert_model.2} parent=11 // pred_fallthru
          _
        // Predicated region
        $region45: #{modified_bert_model.2} parent=11 // pred_check
          %p411 = pneg %p239
        $region46: #{modified_bert_model.2} parent=11 // pred_check_branch
          %413 = sbr.rel (%p411) target = $region48
        $region47: #{modified_bert_model.2} parent=11 // pred_region
          %s415 = ssub.s32 4096, 4096
          %416 = vsyncadd [#allocation11], %s415
          %s417 = sshll.u32 [#allocation10], 4
          %s418 = int_to_ptr.vmem [resolvable:$true] %s417
          %423 = dma.hbm_to_vmem [thread:$0]  %s9, 4096, %s418, [#allocation11], 64, 64, 4
        $region48: #{modified_bert_model.2} parent=11 // pred_fallthru
          _
        // Predicated region
        $region49: #{modified_bert_model.2} parent=11 // pred_check
          %p424 = pneg %p260
        $region50: #{modified_bert_model.2} parent=11 // pred_check_branch
          %426 = sbr.rel (%p424) target = $region52
        $region51: #{modified_bert_model.2} parent=11 // pred_region
          %s428 = ssub.s32 16, 16
          %429 = vsyncadd [#allocation11], %s428
          %s431 = sshll.u32 [#allocation12], 4
          %s432 = int_to_ptr.vmem [resolvable:$true] %s431
          %434 = dma.hbm_to_vmem [thread:$0]  %s10, 16, %s432, [#allocation11]
        $region52: #{modified_bert_model.2} parent=11 // pred_fallthru
          _
        // Predicated region
        $region53: #{modified_bert_model.2} parent=11 // pred_check
          %p435 = pneg %p281
        $region54: #{modified_bert_model.2} parent=11 // pred_check_branch
          %437 = sbr.rel (%p435) target = $region56
        $region55: #{modified_bert_model.2} parent=11 // pred_region
          %s439 = ssub.s32 16, 16
          %440 = vsyncadd [#allocation14], %s439
          %s442 = sshll.u32 [#allocation13], 4
          %s443 = int_to_ptr.vmem [resolvable:$true] %s442
          %445 = dma.hbm_to_vmem [thread:$0]  %s11, 16, %s443, [#allocation14]
        $region56: #{modified_bert_model.2} parent=11 // pred_fallthru
          _
        // Predicated region
        $region57: #{modified_bert_model.2} parent=11 // pred_check
          %p446 = pneg %p302
        $region58: #{modified_bert_model.2} parent=11 // pred_check_branch
          %448 = sbr.rel (%p446) target = $region60
        $region59: #{modified_bert_model.2} parent=11 // pred_region
          %s450 = ssub.s32 16, 16
          %451 = vsyncadd [#allocation14], %s450
          %s453 = sshll.u32 [#allocation15], 4
          %s454 = int_to_ptr.vmem [resolvable:$true] %s453
          %456 = dma.hbm_to_vmem [thread:$0]  %s12, 16, %s454, [#allocation14]
        $region60: #{modified_bert_model.2} parent=11 // pred_fallthru
          _
      $region12: #{modified_bert_model.2} parent=5 // pred_fallthru
        _
      %p457 = scmp.lt.s32.totalorder %s24, 2
      // Predicated region
      $region61: #{modified_bert_model.2} parent=5 // pred_check
        %p458 = pneg %p457
      $region62: #{modified_bert_model.2} parent=5 // pred_check_branch
        %460 = sbr.rel (%p458) target = $region64
      $region63: #{modified_bert_model.2} parent=5 // pred_region
        // Predicated region
        $region65: #{modified_bert_model.2} parent=63 // pred_check
          %p461 = pneg %p44
        $region66: #{modified_bert_model.2} parent=63 // pred_check_branch
          %463 = sbr.rel (%p461) target = $region68
        $region67: #{modified_bert_model.2} parent=63 // pred_region
          %p464 = scmp.lt.s32.totalorder %s24, 1
          %s465 = scalar_select %p464, %s24, 1
          %s466 = smul.addr %s465, 4
          %s467 = scalar_lea.vmem %s0, %s466
        $region68: #{modified_bert_model.2} parent=63 // pred_fallthru
          _
      $region64: #{modified_bert_model.2} parent=5 // pred_fallthru
        _
      %p468 = scmp.le.s32.totalorder 1, %s24
      %p469 = scmp.lt.s32.totalorder %s24, 3
      %p470 = pnand %p468, %p469
      %p471 = pneg %p470
      // Predicated region
      $region69: #{modified_bert_model.2} parent=5 // pred_check
        _
      $region70: #{modified_bert_model.2} parent=5 // pred_check_branch
        %473 = sbr.rel (%p470) target = $region72
      $region71: #{modified_bert_model.2} parent=5 // pred_region
        %s474 = ssub.s32 %s24, 1
        // Predicated region
        $region73: #{modified_bert_model.2} parent=71 // pred_check
          %p475 = pneg %p71
        $region74: #{modified_bert_model.2} parent=71 // pred_check_branch
          %477 = sbr.rel (%p475) target = $region76
        $region75: #{modified_bert_model.2} parent=71 // pred_region
          %478 = dma.done [#allocation3], 3072
        $region76: #{modified_bert_model.2} parent=71 // pred_fallthru
          _
        // Predicated region
        $region77: #{modified_bert_model.2} parent=71 // pred_check
          %p479 = pneg %p92
        $region78: #{modified_bert_model.2} parent=71 // pred_check_branch
          %481 = sbr.rel (%p479) target = $region80
        $region79: #{modified_bert_model.2} parent=71 // pred_region
          %482 = dma.done [#allocation5], 48
        $region80: #{modified_bert_model.2} parent=71 // pred_fallthru
          _
        // Predicated region
        $region81: #{modified_bert_model.2} parent=71 // pred_check
          %p483 = pneg %p155
        $region82: #{modified_bert_model.2} parent=71 // pred_check_branch
          %485 = sbr.rel (%p483) target = $region84
        $region83: #{modified_bert_model.2} parent=71 // pred_region
          %486 = dma.done [#allocation5], 16
        $region84: #{modified_bert_model.2} parent=71 // pred_fallthru
          _
        // Predicated region
        $region85: #{modified_bert_model.2} parent=71 // pred_check
          %p487 = pneg %p176
        $region86: #{modified_bert_model.2} parent=71 // pred_check_branch
          %489 = sbr.rel (%p487) target = $region88
        $region87: #{modified_bert_model.2} parent=71 // pred_region
          %490 = dma.done [#allocation8], 16
        $region88: #{modified_bert_model.2} parent=71 // pred_fallthru
          _
        // Predicated region
        $region89: #{modified_bert_model.2} parent=71 // pred_check
          %p491 = pneg %p197
        $region90: #{modified_bert_model.2} parent=71 // pred_check_branch
          %493 = sbr.rel (%p491) target = $region92
        $region91: #{modified_bert_model.2} parent=71 // pred_region
          %494 = dma.done [#allocation8], 4096
        $region92: #{modified_bert_model.2} parent=71 // pred_fallthru
          _
        // Predicated region
        $region93: #{modified_bert_model.2} parent=71 // pred_check
          %p495 = pneg %p239
        $region94: #{modified_bert_model.2} parent=71 // pred_check_branch
          %497 = sbr.rel (%p495) target = $region96
        $region95: #{modified_bert_model.2} parent=71 // pred_region
          %498 = dma.done [#allocation11], 4096
        $region96: #{modified_bert_model.2} parent=71 // pred_fallthru
          _
        // Predicated region
        $region97: #{modified_bert_model.2} parent=71 // pred_check
          %p499 = pneg %p260
        $region98: #{modified_bert_model.2} parent=71 // pred_check_branch
          %501 = sbr.rel (%p499) target = $region100
        $region99: #{modified_bert_model.2} parent=71 // pred_region
          %502 = dma.done [#allocation11], 16
        $region100: #{modified_bert_model.2} parent=71 // pred_fallthru
          _
        // Predicated region
        $region101: #{modified_bert_model.2} parent=71 // pred_check
          %p503 = pneg %p281
        $region102: #{modified_bert_model.2} parent=71 // pred_check_branch
          %505 = sbr.rel (%p503) target = $region104
        $region103: #{modified_bert_model.2} parent=71 // pred_region
          %506 = dma.done [#allocation14], 16
        $region104: #{modified_bert_model.2} parent=71 // pred_fallthru
          _
        // Predicated region
        $region105: #{modified_bert_model.2} parent=71 // pred_check
          %p507 = pneg %p302
        $region106: #{modified_bert_model.2} parent=71 // pred_check_branch
          %509 = sbr.rel (%p507) target = $region108
        $region107: #{modified_bert_model.2} parent=71 // pred_region
          %510 = dma.done [#allocation14], 16
        $region108: #{modified_bert_model.2} parent=71 // pred_fallthru
          _
        %p511 = scmp.lt.s32.totalorder %s29, 1
        %s512 = scalar_select %p511, %s29, 1
        %s513 = smul.addr %s512, 4
        %s514 = scalar_lea.vmem %s0, %s513
        %p515 = pneg %p50
        %p516 = pneg %p47
        %p517 = pneg %p71
        %p518 = pneg %p68
        %p519 = pneg %p92
        %p520 = pneg %p89
        %p521 = pneg %p113
        %p522 = pneg %p110
        %p523 = pneg %p134
        %p524 = pneg %p131
        %p525 = pneg %p155
        %p526 = pneg %p152
        %p527 = pneg %p176
        %p528 = pneg %p173
        %p529 = pneg %p197
        %p530 = pneg %p194
        %p531 = pneg %p218
        %p532 = pneg %p215
        %p533 = pneg %p239
        %p534 = pneg %p236
        %p535 = pneg %p260
        %p536 = pneg %p257
        %p537 = pneg %p281
        %p538 = pneg %p278
        %p539 = pneg %p302
        %p540 = pneg %p299
        %p541 = pneg %p328
        %p542 = pneg %p325
        %p543 = scmp.lt.s32.totalorder %s29, 1
        %s544 = scalar_select %p543, %s29, 1
        %s545 = smul.addr %s544, 4
        %s546 = scalar_lea.vmem %s13, %s545
        %p547 = scmp.lt.s32.totalorder %s29, 1
        %s548 = scalar_select %p547, %s29, 1
        %s549 = smul.addr %s548, 4
        %s550 = scalar_lea.vmem %s0, %s549
        %p551 = scmp.lt.s32.totalorder %s29, 1
        %s552 = scalar_select %p551, %s29, 1
        %s553 = smul.addr %s552, 4
        %s554 = scalar_lea.vmem %s13, %s553
        %v556 = vld [vmem:[%s550] sm:$0xf]
        %v557 = vunpack.c.l.bf16 %v556
        %v558 = vld [vmem:[#allocation2] sm:$0xff]
        %v559 = vld [vmem:[#allocation2 + $0x8] sm:$0xf]
        %v560 = vld [vmem:[#allocation2 + $0xc] sm:$0xff]
        %v561 = vld [vmem:[#allocation2 + $0x14] sm:$0xf]
        %v562 = vld [vmem:[#allocation2 + $0x18] sm:$0xff]
        %v563 = vld [vmem:[#allocation2 + $0x20] sm:$0xf]
        %v564 = vld [vmem:[#allocation2 + $0x24] sm:$0xff]
        %v565 = vld [vmem:[#allocation2 + $0x2c] sm:$0xf]
        %v566 = vld [vmem:[#allocation2 + $0x30] sm:$0xff]
        %v567 = vld [vmem:[#allocation2 + $0x38] sm:$0xf]
        %v568 = vld [vmem:[#allocation2 + $0x3c] sm:$0xff]
        %v569 = vld [vmem:[#allocation2 + $0x44] sm:$0xf]
        %v570 = vld [vmem:[#allocation2 + $0x48] sm:$0xff]
        %v571 = vld [vmem:[#allocation2 + $0x50] sm:$0xf]
        %v572 = vld [vmem:[#allocation2 + $0x54] sm:$0xff]
        %v573 = vld [vmem:[#allocation2 + $0x5c] sm:$0xf]
        %v574 = vld [vmem:[#allocation2 + $0x60] sm:$0xff]
        %v575 = vld [vmem:[#allocation2 + $0x68] sm:$0xf]
        %v576 = vld [vmem:[#allocation2 + $0x6c] sm:$0xff]
        %v577 = vld [vmem:[#allocation2 + $0x74] sm:$0xf]
        %v578 = vld [vmem:[#allocation2 + $0x78] sm:$0xff]
        %v579 = vld [vmem:[#allocation2 + $0x80] sm:$0xf]
        %v580 = vld [vmem:[#allocation2 + $0x84] sm:$0xff]
        %v581 = vld [vmem:[#allocation2 + $0x8c] sm:$0xf]
        %v582 = vld [vmem:[#allocation2 + $0x90] sm:$0xff]
        %v583 = vld [vmem:[#allocation2 + $0x98] sm:$0xf]
        %v584 = vld [vmem:[#allocation2 + $0x9c] sm:$0xff]
        %v585 = vld [vmem:[#allocation2 + $0xa4] sm:$0xf]
        %v586 = vld [vmem:[#allocation2 + $0xa8] sm:$0xff]
        %v587 = vld [vmem:[#allocation2 + $0xb0] sm:$0xf]
        %v588 = vld [vmem:[#allocation2 + $0xb4] sm:$0xff]
        %v589 = vld [vmem:[#allocation2 + $0xbc] sm:$0xf]
        %v590 = vld [vmem:[#allocation4] sm:$0x7]
        %v592 = vlaneseq
        %v593 = vshrl.u32 %v592, 7
        %v594 = vsub.s32 0, %v593
        %v595 = vrot.slane %v590, %v594
        %v596 = vlaneseq
        %v597 = vshrl.u32 %v596, 7
        %v598 = vsub.s32 1, %v597
        %v599 = vrot.slane %v590, %v598
        %v600 = vlaneseq
        %v601 = vshrl.u32 %v600, 7
        %v602 = vsub.s32 2, %v601
        %v603 = vrot.slane %v590, %v602
        %v639 = vunpack.c.l.b16 %v558
        %v640 = vunpack.c.h.b16 %v558
        %v641 = vunpack.c.l.b16 %v559
        %v642 = vunpack.c.l.b16 %v560
        %v643 = vunpack.c.h.b16 %v560
        %v644 = vunpack.c.l.b16 %v561
        %v645 = vunpack.c.l.b16 %v562
        %v646 = vunpack.c.h.b16 %v562
        %v647 = vunpack.c.l.b16 %v563
        %v648 = vunpack.c.l.b16 %v564
        %v649 = vunpack.c.h.b16 %v564
        %v650 = vunpack.c.l.b16 %v565
        %v651 = vunpack.c.l.b16 %v566
        %v652 = vunpack.c.h.b16 %v566
        %v653 = vunpack.c.l.b16 %v567
        %v654 = vunpack.c.l.b16 %v568
        %v655 = vunpack.c.h.b16 %v568
        %v656 = vunpack.c.l.b16 %v569
        %v657 = vunpack.c.l.b16 %v570
        %v658 = vunpack.c.h.b16 %v570
        %v659 = vunpack.c.l.b16 %v571
        %v660 = vunpack.c.l.b16 %v572
        %v661 = vunpack.c.h.b16 %v572
        %v662 = vunpack.c.l.b16 %v573
        %v663 = vunpack.c.l.b16 %v574
        %v664 = vunpack.c.h.b16 %v574
        %v665 = vunpack.c.l.b16 %v575
        %v666 = vunpack.c.l.b16 %v576
        %v667 = vunpack.c.h.b16 %v576
        %v668 = vunpack.c.l.b16 %v577
        %v669 = vunpack.c.l.b16 %v578
        %v670 = vunpack.c.h.b16 %v578
        %v671 = vunpack.c.l.b16 %v579
        %v672 = vunpack.c.l.b16 %v580
        %v673 = vunpack.c.h.b16 %v580
        %v674 = vunpack.c.l.b16 %v581
        %v675 = vunpack.c.l.b16 %v582
        %v676 = vunpack.c.h.b16 %v582
        %v677 = vunpack.c.l.b16 %v583
        %v678 = vunpack.c.l.b16 %v584
        %v679 = vunpack.c.h.b16 %v584
        %v680 = vunpack.c.l.b16 %v585
        %v681 = vunpack.c.l.b16 %v586
        %v682 = vunpack.c.h.b16 %v586
        %v683 = vunpack.c.l.b16 %v587
        %v684 = vunpack.c.l.b16 %v588
        %v685 = vunpack.c.h.b16 %v588
        %v686 = vunpack.c.l.b16 %v589
        %v687 = vpack.c.b16 %v642, %v639
        %v688 = vpack.c.b16 %v643, %v640
        %v689 = vpack.c.b16 %v644, %v641
        %v690 = vpack.c.b16 %v648, %v645
        %v691 = vpack.c.b16 %v649, %v646
        %v692 = vpack.c.b16 %v650, %v647
        %v693 = vpack.c.b16 %v654, %v651
        %v694 = vpack.c.b16 %v655, %v652
        %v695 = vpack.c.b16 %v656, %v653
        %v696 = vpack.c.b16 %v660, %v657
        %v697 = vpack.c.b16 %v661, %v658
        %v698 = vpack.c.b16 %v662, %v659
        %v699 = vpack.c.b16 %v666, %v663
        %v700 = vpack.c.b16 %v667, %v664
        %v701 = vpack.c.b16 %v668, %v665
        %v702 = vpack.c.b16 %v672, %v669
        %v703 = vpack.c.b16 %v673, %v670
        %v704 = vpack.c.b16 %v674, %v671
        %v705 = vpack.c.b16 %v678, %v675
        %v706 = vpack.c.b16 %v679, %v676
        %v707 = vpack.c.b16 %v680, %v677
        %v708 = vpack.c.b16 %v684, %v681
        %v709 = vpack.c.b16 %v685, %v682
        %v710 = vpack.c.b16 %v686, %v683
        %735 = vmatprep.subr.bf16.mxu0 %v688
        %736 = vmatpush1.bf16.msra.mxu0 %v687
        %737 = vmatprep.subr.bf16.mxu0 %v691
        %738 = vmatpush1.bf16.msra.mxu0 %v690
        %739 = vmatprep.subr.bf16.mxu0 %v694
        %740 = vmatpush1.bf16.msra.mxu0 %v693
        %741 = vmatprep.subr.bf16.mxu0 %v697
        %742 = vmatpush1.bf16.msra.mxu0 %v696
        %743 = vmatprep.subr.bf16.mxu0 %v700
        %744 = vmatpush1.bf16.msra.mxu0 %v699
        %745 = vmatprep.subr.bf16.mxu0 %v703
        %746 = vmatpush1.bf16.msra.mxu0 %v702
        %747 = vmatprep.subr.bf16.mxu0 %v706
        %748 = vmatpush1.bf16.msra.mxu0 %v705
        %749 = vmatprep.subr.bf16.mxu0 %v709
        %750 = vmatpush1.bf16.msra.mxu0 %v708
        %751 = vmatprep.subr.bf16.mxu0 0
        %752 = vmatpush1.bf16.msra.mxu0 0
        %753 = vmatprep.subr.bf16.mxu0 0
        %754 = vmatpush1.bf16.msra.mxu0 0
        %755 = vmatprep.subr.bf16.mxu0 0
        %756 = vmatpush1.bf16.msra.mxu0 0
        %757 = vmatprep.subr.bf16.mxu0 0
        %758 = vmatpush1.bf16.msra.mxu0 0
        %759 = vmatprep.subr.bf16.mxu0 0
        %760 = vmatpush1.bf16.msra.mxu0 0
        %761 = vmatprep.subr.bf16.mxu0 0
        %762 = vmatpush1.bf16.msra.mxu0 0
        %763 = vmatprep.subr.bf16.mxu0 0
        %764 = vmatpush1.bf16.msra.mxu0 0
        %765 = vmatprep.subr.bf16.mxu0 0
        %766 = vmatpush1.bf16.msra.mxu0 0
        %767 = vmatprep.mubr.bf16.mxu0 0
        %768 = vmatmul.mubr.bf16.gmra.mrb[0].mxu0 %v556
        %v769 = vpop.f32.mrb[0].mxu0
        %v770 = vadd.f32 %v595, %v769
        %v771 = vpop.f32.mrb[0].mxu0
        %v772 = vadd.f32 %v599, %v771
        %v773 = vpop.f32.mrb[0].mxu0
        %v774 = vpop.f32.mrb[0].mxu0
        %775 = vdwg.mxu0
        %776 = vmatprep.subr.bf16.mxu0 0
        %777 = vmatpush1.bf16.msra.mxu0 %v689
        %778 = vmatprep.subr.bf16.mxu0 0
        %779 = vmatpush1.bf16.msra.mxu0 %v692
        %780 = vmatprep.subr.bf16.mxu0 0
        %781 = vmatpush1.bf16.msra.mxu0 %v695
        %782 = vmatprep.subr.bf16.mxu0 0
        %783 = vmatpush1.bf16.msra.mxu0 %v698
        %784 = vmatprep.subr.bf16.mxu0 0
        %785 = vmatpush1.bf16.msra.mxu0 %v701
        %786 = vmatprep.subr.bf16.mxu0 0
        %787 = vmatpush1.bf16.msra.mxu0 %v704
        %788 = vmatprep.subr.bf16.mxu0 0
        %789 = vmatpush1.bf16.msra.mxu0 %v707
        %790 = vmatprep.subr.bf16.mxu0 0
        %791 = vmatpush1.bf16.msra.mxu0 %v710
        %792 = vmatprep.subr.bf16.mxu0 0
        %793 = vmatpush1.bf16.msra.mxu0 0
        %794 = vmatprep.subr.bf16.mxu0 0
        %795 = vmatpush1.bf16.msra.mxu0 0
        %796 = vmatprep.subr.bf16.mxu0 0
        %797 = vmatpush1.bf16.msra.mxu0 0
        %798 = vmatprep.subr.bf16.mxu0 0
        %799 = vmatpush1.bf16.msra.mxu0 0
        %800 = vmatprep.subr.bf16.mxu0 0
        %801 = vmatpush1.bf16.msra.mxu0 0
        %802 = vmatprep.subr.bf16.mxu0 0
        %803 = vmatpush1.bf16.msra.mxu0 0
        %804 = vmatprep.subr.bf16.mxu0 0
        %805 = vmatpush1.bf16.msra.mxu0 0
        %806 = vmatprep.subr.bf16.mxu0 0
        %807 = vmatpush1.bf16.msra.mxu0 0
        %808 = vmatprep.mubr.bf16.mxu0 0
        %809 = vmatmul.mubr.bf16.gmra.mrb[0].mxu0 %v556
        %v810 = vpop.f32.mrb[0].mxu0
        %v811 = vadd.f32 %v603, %v810
        %v812 = vpop.f32.mrb[0].mxu0
        %v813 = vpop.f32.mrb[0].mxu0
        %v814 = vpop.f32.mrb[0].mxu0
        %815 = vdwg.mxu0
        %v816 = vpack.c.bf16 %v770, %v770
        %818 = vrot.lane.b32.xlu0 %v816, 64
        %v819 = vpop.permute.xlu0 %818
        %v821 = vunpack.c.l.s4 1983009808
        %v822 = vunpack.c.0.s8 %v821
        %v823 = vlaneseq
        %v824 = vshrl.u32 %v823, 7
        %v825 = vsub.s32 %v822, %v824
        %v826 = vrot.slane %v816, %v825
        %v827 = vcombine.high %v826, 0
        %v829 = vunpack.c.l.s4 1934713408
        %v830 = vunpack.c.0.s8 %v829
        %v831 = vlaneseq
        %v832 = vshrl.u32 %v831, 7
        %v833 = vsub.s32 %v830, %v832
        %v834 = vrot.slane %v826, %v833
        %v836 = vunpack.c.l.s4 1934713408
        %v837 = vunpack.c.0.s8 %v836
        %v838 = vlaneseq
        %v839 = vshrl.u32 %v838, 7
        %v840 = vsub.s32 %v837, %v839
        %v841 = vrot.slane %v827, %v840
        %v842 = vcombine.high %v834, 0
        %v843 = vcombine.high %v841, 0
        %v846 = vunpack.c.l.s4 1983009808
        %v847 = vunpack.c.0.s8 %v846
        %v848 = vlaneseq
        %v849 = vshrl.u32 %v848, 7
        %v850 = vsub.s32 %v847, %v849
        %v851 = vrot.slane %v819, %v850
        %v852 = vcombine.high %v851, 0
        %v854 = vunpack.c.l.s4 1934713408
        %v855 = vunpack.c.0.s8 %v854
        %v856 = vlaneseq
        %v857 = vshrl.u32 %v856, 7
        %v858 = vsub.s32 %v855, %v857
        %v859 = vrot.slane %v851, %v858
        %v861 = vunpack.c.l.s4 1934713408
        %v862 = vunpack.c.0.s8 %v861
        %v863 = vlaneseq
        %v864 = vshrl.u32 %v863, 7
        %v865 = vsub.s32 %v862, %v864
        %v866 = vrot.slane %v852, %v865
        %v867 = vcombine.high %v859, 0
        %v868 = vcombine.high %v866, 0
        %v871 = vpack.i.b16 %v859, %v834
        %v873 = vshrl.u32 %v834, 16
        %v874 = vshrl.u32 %v859, 16
        %v875 = vpack.i.b16 %v874, %v873
        %v879 = vpack.i.b16 %v867, %v842
        %v881 = vshrl.u32 %v842, 16
        %v882 = vshrl.u32 %v867, 16
        %v883 = vpack.i.b16 %v882, %v881
        %v887 = vpack.i.b16 %v866, %v841
        %v889 = vshrl.u32 %v841, 16
        %v890 = vshrl.u32 %v866, 16
        %v891 = vpack.i.b16 %v890, %v889
        %v895 = vpack.i.b16 %v868, %v843
        %v897 = vshrl.u32 %v843, 16
        %v898 = vshrl.u32 %v868, 16
        %v899 = vpack.i.b16 %v898, %v897
        %v901 = vcombine.low %v871, %v887
        %v903 = vunpack.c.l.s4 1983009808
        %v904 = vunpack.c.0.s8 %v903
        %v905 = vlaneseq
        %v906 = vshrl.u32 %v905, 7
        %v907 = vsub.s32 %v904, %v906
        %v908 = vrot.slane %v901, %v907
        %v909 = vcombine.low %v879, %v895
        %v911 = vunpack.c.l.s4 1983009808
        %v912 = vunpack.c.0.s8 %v911
        %v913 = vlaneseq
        %v914 = vshrl.u32 %v913, 7
        %v915 = vsub.s32 %v912, %v914
        %v916 = vrot.slane %v909, %v915
        %v917 = vcombine.low %v908, %v916
        %v919 = vunpack.c.l.s4 1934713408
        %v920 = vunpack.c.0.s8 %v919
        %v921 = vlaneseq
        %v922 = vshrl.u32 %v921, 7
        %v923 = vsub.s32 %v920, %v922
        %v924 = vrot.slane %v917, %v923
        %v925 = vcombine.low %v875, %v891
        %v927 = vunpack.c.l.s4 1983009808
        %v928 = vunpack.c.0.s8 %v927
        %v929 = vlaneseq
        %v930 = vshrl.u32 %v929, 7
        %v931 = vsub.s32 %v928, %v930
        %v932 = vrot.slane %v925, %v931
        %v933 = vcombine.low %v883, %v899
        %v935 = vunpack.c.l.s4 1983009808
        %v936 = vunpack.c.0.s8 %v935
        %v937 = vlaneseq
        %v938 = vshrl.u32 %v937, 7
        %v939 = vsub.s32 %v936, %v938
        %v940 = vrot.slane %v933, %v939
        %v941 = vcombine.low %v932, %v940
        %v943 = vunpack.c.l.s4 1934713408
        %v944 = vunpack.c.0.s8 %v943
        %v945 = vlaneseq
        %v946 = vshrl.u32 %v945, 7
        %v947 = vsub.s32 %v944, %v946
        %v948 = vrot.slane %v941, %v947
        %v951 = vpack.i.b16 %v948, %v924
        %v952 = vshrl.u32 %v924, 16
        %v953 = vshrl.u32 %v948, 16
        %v954 = vpack.i.b16 %v953, %v952
        %v955 = vpack.c.bf16 %v772, %v772
        %957 = vrot.lane.b32.xlu0 %v955, 64
        %v958 = vpop.permute.xlu0 %957
        %v960 = vunpack.c.l.s4 1983009808
        %v961 = vunpack.c.0.s8 %v960
        %v962 = vlaneseq
        %v963 = vshrl.u32 %v962, 7
        %v964 = vsub.s32 %v961, %v963
        %v965 = vrot.slane %v955, %v964
        %v966 = vcombine.high %v965, 0
        %v968 = vunpack.c.l.s4 1934713408
        %v969 = vunpack.c.0.s8 %v968
        %v970 = vlaneseq
        %v971 = vshrl.u32 %v970, 7
        %v972 = vsub.s32 %v969, %v971
        %v973 = vrot.slane %v965, %v972
        %v975 = vunpack.c.l.s4 1934713408
        %v976 = vunpack.c.0.s8 %v975
        %v977 = vlaneseq
        %v978 = vshrl.u32 %v977, 7
        %v979 = vsub.s32 %v976, %v978
        %v980 = vrot.slane %v966, %v979
        %v981 = vcombine.high %v973, 0
        %v982 = vcombine.high %v980, 0
        %v985 = vunpack.c.l.s4 1983009808
        %v986 = vunpack.c.0.s8 %v985
        %v987 = vlaneseq
        %v988 = vshrl.u32 %v987, 7
        %v989 = vsub.s32 %v986, %v988
        %v990 = vrot.slane %v958, %v989
        %v991 = vcombine.high %v990, 0
        %v993 = vunpack.c.l.s4 1934713408
        %v994 = vunpack.c.0.s8 %v993
        %v995 = vlaneseq
        %v996 = vshrl.u32 %v995, 7
        %v997 = vsub.s32 %v994, %v996
        %v998 = vrot.slane %v990, %v997
        %v1000 = vunpack.c.l.s4 1934713408
        %v1001 = vunpack.c.0.s8 %v1000
        %v1002 = vlaneseq
        %v1003 = vshrl.u32 %v1002, 7
        %v1004 = vsub.s32 %v1001, %v1003
        %v1005 = vrot.slane %v991, %v1004
        %v1006 = vcombine.high %v998, 0
        %v1007 = vcombine.high %v1005, 0
        %v1010 = vpack.i.b16 %v998, %v973
        %v1012 = vshrl.u32 %v973, 16
        %v1013 = vshrl.u32 %v998, 16
        %v1014 = vpack.i.b16 %v1013, %v1012
        %v1018 = vpack.i.b16 %v1006, %v981
        %v1020 = vshrl.u32 %v981, 16
        %v1021 = vshrl.u32 %v1006, 16
        %v1022 = vpack.i.b16 %v1021, %v1020
        %v1026 = vpack.i.b16 %v1005, %v980
        %v1028 = vshrl.u32 %v980, 16
        %v1029 = vshrl.u32 %v1005, 16
        %v1030 = vpack.i.b16 %v1029, %v1028
        %v1034 = vpack.i.b16 %v1007, %v982
        %v1036 = vshrl.u32 %v982, 16
        %v1037 = vshrl.u32 %v1007, 16
        %v1038 = vpack.i.b16 %v1037, %v1036
        %v1040 = vcombine.low %v1010, %v1026
        %v1042 = vunpack.c.l.s4 1983009808
        %v1043 = vunpack.c.0.s8 %v1042
        %v1044 = vlaneseq
        %v1045 = vshrl.u32 %v1044, 7
        %v1046 = vsub.s32 %v1043, %v1045
        %v1047 = vrot.slane %v1040, %v1046
        %v1048 = vcombine.low %v1018, %v1034
        %v1050 = vunpack.c.l.s4 1983009808
        %v1051 = vunpack.c.0.s8 %v1050
        %v1052 = vlaneseq
        %v1053 = vshrl.u32 %v1052, 7
        %v1054 = vsub.s32 %v1051, %v1053
        %v1055 = vrot.slane %v1048, %v1054
        %v1056 = vcombine.low %v1047, %v1055
        %v1058 = vunpack.c.l.s4 1934713408
        %v1059 = vunpack.c.0.s8 %v1058
        %v1060 = vlaneseq
        %v1061 = vshrl.u32 %v1060, 7
        %v1062 = vsub.s32 %v1059, %v1061
        %v1063 = vrot.slane %v1056, %v1062
        %v1064 = vcombine.low %v1014, %v1030
        %v1066 = vunpack.c.l.s4 1983009808
        %v1067 = vunpack.c.0.s8 %v1066
        %v1068 = vlaneseq
        %v1069 = vshrl.u32 %v1068, 7
        %v1070 = vsub.s32 %v1067, %v1069
        %v1071 = vrot.slane %v1064, %v1070
        %v1072 = vcombine.low %v1022, %v1038
        %v1074 = vunpack.c.l.s4 1983009808
        %v1075 = vunpack.c.0.s8 %v1074
        %v1076 = vlaneseq
        %v1077 = vshrl.u32 %v1076, 7
        %v1078 = vsub.s32 %v1075, %v1077
        %v1079 = vrot.slane %v1072, %v1078
        %v1080 = vcombine.low %v1071, %v1079
        %v1082 = vunpack.c.l.s4 1934713408
        %v1083 = vunpack.c.0.s8 %v1082
        %v1084 = vlaneseq
        %v1085 = vshrl.u32 %v1084, 7
        %v1086 = vsub.s32 %v1083, %v1085
        %v1087 = vrot.slane %v1080, %v1086
        %v1090 = vpack.i.b16 %v1087, %v1063
        %v1091 = vshrl.u32 %v1063, 16
        %v1092 = vshrl.u32 %v1087, 16
        %v1093 = vpack.i.b16 %v1092, %v1091
        %v1094 = vpack.c.bf16 %v811, %v811
        %1096 = vrot.lane.b32.xlu0 %v1094, 64
        %v1097 = vpop.permute.xlu0 %1096
        %v1099 = vunpack.c.l.s4 1983009808
        %v1100 = vunpack.c.0.s8 %v1099
        %v1101 = vlaneseq
        %v1102 = vshrl.u32 %v1101, 7
        %v1103 = vsub.s32 %v1100, %v1102
        %v1104 = vrot.slane %v1094, %v1103
        %v1105 = vcombine.high %v1104, 0
        %v1107 = vunpack.c.l.s4 1934713408
        %v1108 = vunpack.c.0.s8 %v1107
        %v1109 = vlaneseq
        %v1110 = vshrl.u32 %v1109, 7
        %v1111 = vsub.s32 %v1108, %v1110
        %v1112 = vrot.slane %v1104, %v1111
        %v1114 = vunpack.c.l.s4 1934713408
        %v1115 = vunpack.c.0.s8 %v1114
        %v1116 = vlaneseq
        %v1117 = vshrl.u32 %v1116, 7
        %v1118 = vsub.s32 %v1115, %v1117
        %v1119 = vrot.slane %v1105, %v1118
        %v1120 = vcombine.high %v1112, 0
        %v1121 = vcombine.high %v1119, 0
        %v1124 = vunpack.c.l.s4 1983009808
        %v1125 = vunpack.c.0.s8 %v1124
        %v1126 = vlaneseq
        %v1127 = vshrl.u32 %v1126, 7
        %v1128 = vsub.s32 %v1125, %v1127
        %v1129 = vrot.slane %v1097, %v1128
        %v1130 = vcombine.high %v1129, 0
        %v1132 = vunpack.c.l.s4 1934713408
        %v1133 = vunpack.c.0.s8 %v1132
        %v1134 = vlaneseq
        %v1135 = vshrl.u32 %v1134, 7
        %v1136 = vsub.s32 %v1133, %v1135
        %v1137 = vrot.slane %v1129, %v1136
        %v1139 = vunpack.c.l.s4 1934713408
        %v1140 = vunpack.c.0.s8 %v1139
        %v1141 = vlaneseq
        %v1142 = vshrl.u32 %v1141, 7
        %v1143 = vsub.s32 %v1140, %v1142
        %v1144 = vrot.slane %v1130, %v1143
        %v1145 = vcombine.high %v1137, 0
        %v1146 = vcombine.high %v1144, 0
        %v1149 = vpack.i.b16 %v1137, %v1112
        %v1151 = vshrl.u32 %v1112, 16
        %v1152 = vshrl.u32 %v1137, 16
        %v1153 = vpack.i.b16 %v1152, %v1151
        %v1157 = vpack.i.b16 %v1145, %v1120
        %v1159 = vshrl.u32 %v1120, 16
        %v1160 = vshrl.u32 %v1145, 16
        %v1161 = vpack.i.b16 %v1160, %v1159
        %v1165 = vpack.i.b16 %v1144, %v1119
        %v1167 = vshrl.u32 %v1119, 16
        %v1168 = vshrl.u32 %v1144, 16
        %v1169 = vpack.i.b16 %v1168, %v1167
        %v1173 = vpack.i.b16 %v1146, %v1121
        %v1175 = vshrl.u32 %v1121, 16
        %v1176 = vshrl.u32 %v1146, 16
        %v1177 = vpack.i.b16 %v1176, %v1175
        %v1179 = vcombine.low %v1149, %v1165
        %v1181 = vunpack.c.l.s4 1983009808
        %v1182 = vunpack.c.0.s8 %v1181
        %v1183 = vlaneseq
        %v1184 = vshrl.u32 %v1183, 7
        %v1185 = vsub.s32 %v1182, %v1184
        %v1186 = vrot.slane %v1179, %v1185
        %v1187 = vcombine.low %v1157, %v1173
        %v1189 = vunpack.c.l.s4 1983009808
        %v1190 = vunpack.c.0.s8 %v1189
        %v1191 = vlaneseq
        %v1192 = vshrl.u32 %v1191, 7
        %v1193 = vsub.s32 %v1190, %v1192
        %v1194 = vrot.slane %v1187, %v1193
        %v1195 = vcombine.low %v1186, %v1194
        %v1197 = vunpack.c.l.s4 1934713408
        %v1198 = vunpack.c.0.s8 %v1197
        %v1199 = vlaneseq
        %v1200 = vshrl.u32 %v1199, 7
        %v1201 = vsub.s32 %v1198, %v1200
        %v1202 = vrot.slane %v1195, %v1201
        %v1203 = vcombine.low %v1153, %v1169
        %v1205 = vunpack.c.l.s4 1983009808
        %v1206 = vunpack.c.0.s8 %v1205
        %v1207 = vlaneseq
        %v1208 = vshrl.u32 %v1207, 7
        %v1209 = vsub.s32 %v1206, %v1208
        %v1210 = vrot.slane %v1203, %v1209
        %v1211 = vcombine.low %v1161, %v1177
        %v1213 = vunpack.c.l.s4 1983009808
        %v1214 = vunpack.c.0.s8 %v1213
        %v1215 = vlaneseq
        %v1216 = vshrl.u32 %v1215, 7
        %v1217 = vsub.s32 %v1214, %v1216
        %v1218 = vrot.slane %v1211, %v1217
        %v1219 = vcombine.low %v1210, %v1218
        %v1221 = vunpack.c.l.s4 1934713408
        %v1222 = vunpack.c.0.s8 %v1221
        %v1223 = vlaneseq
        %v1224 = vshrl.u32 %v1223, 7
        %v1225 = vsub.s32 %v1222, %v1224
        %v1226 = vrot.slane %v1219, %v1225
        %v1229 = vpack.i.b16 %v1226, %v1202
        %v1230 = vshrl.u32 %v1202, 16
        %v1231 = vshrl.u32 %v1226, 16
        %v1232 = vpack.i.b16 %v1231, %v1230
        %vm1233 = vcmask 523264
        %v1235 = vsel %vm1233, %v951, 0
        %v1238 = vsel %vm1233, %v1090, 0
        %1240 = vmatprep.subr.bf16.mxu0 0
        %1241 = vmatpush1.bf16.xpose.msra.mxu0 %v1238
        %1242 = vmatprep.subr.bf16.mxu0 0
        %1243 = vmatpush1.bf16.xpose.msra.mxu0 0
        %1244 = vmatprep.subr.bf16.mxu0 0
        %1245 = vmatpush1.bf16.xpose.msra.mxu0 0
        %1246 = vmatprep.subr.bf16.mxu0 0
        %1247 = vmatpush1.bf16.xpose.msra.mxu0 0
        %1248 = vmatprep.subr.bf16.mxu0 0
        %1249 = vmatpush1.bf16.xpose.msra.mxu0 0
        %1250 = vmatprep.subr.bf16.mxu0 0
        %1251 = vmatpush1.bf16.xpose.msra.mxu0 0
        %1252 = vmatprep.subr.bf16.mxu0 0
        %1253 = vmatpush1.bf16.xpose.msra.mxu0 0
        %1254 = vmatprep.subr.bf16.mxu0 0
        %1255 = vmatpush1.bf16.xpose.msra.mxu0 0
        %1256 = vmatprep.subr.bf16.mxu0 0
        %1257 = vmatpush1.bf16.xpose.msra.mxu0 0
        %1258 = vmatprep.subr.bf16.mxu0 0
        %1259 = vmatpush1.bf16.xpose.msra.mxu0 0
        %1260 = vmatprep.subr.bf16.mxu0 0
        %1261 = vmatpush1.bf16.xpose.msra.mxu0 0
        %1262 = vmatprep.subr.bf16.mxu0 0
        %1263 = vmatpush1.bf16.xpose.msra.mxu0 0
        %1264 = vmatprep.subr.bf16.mxu0 0
        %1265 = vmatpush1.bf16.xpose.msra.mxu0 0
        %1266 = vmatprep.subr.bf16.mxu0 0
        %1267 = vmatpush1.bf16.xpose.msra.mxu0 0
        %1268 = vmatprep.subr.bf16.mxu0 0
        %1269 = vmatpush1.bf16.xpose.msra.mxu0 0
        %1270 = vmatprep.subr.bf16.mxu0 0
        %1271 = vmatpush1.bf16.xpose.msra.mxu0 0
        %1272 = vmatprep.mubr.bf16.mxu0 0
        %1273 = vmatmul.mubr.bf16.gmra.mrb[0].mxu0 %v1235
        %v1274 = vpop.f32.mrb[0].mxu0
        %v1275 = vadd.f32 0.0, %v1274
        %v1276 = vpop.f32.mrb[0].mxu0
        %v1277 = vpop.f32.mrb[0].mxu0
        %v1278 = vpop.f32.mrb[0].mxu0
        %1279 = vdwg.mxu0
        %v1281 = vsel %vm1233, %v954, 0
        %v1284 = vsel %vm1233, %v1093, 0
        %1286 = vmatprep.subr.bf16.mxu0 0
        %1287 = vmatpush1.bf16.xpose.msra.mxu0 %v1284
        %1288 = vmatprep.subr.bf16.mxu0 0
        %1289 = vmatpush1.bf16.xpose.msra.mxu0 0
        %1290 = vmatprep.subr.bf16.mxu0 0
        %1291 = vmatpush1.bf16.xpose.msra.mxu0 0
        %1292 = vmatprep.subr.bf16.mxu0 0
        %1293 = vmatpush1.bf16.xpose.msra.mxu0 0
        %1294 = vmatprep.subr.bf16.mxu0 0
        %1295 = vmatpush1.bf16.xpose.msra.mxu0 0
        %1296 = vmatprep.subr.bf16.mxu0 0
        %1297 = vmatpush1.bf16.xpose.msra.mxu0 0
        %1298 = vmatprep.subr.bf16.mxu0 0
        %1299 = vmatpush1.bf16.xpose.msra.mxu0 0
        %1300 = vmatprep.subr.bf16.mxu0 0
        %1301 = vmatpush1.bf16.xpose.msra.mxu0 0
        %1302 = vmatprep.subr.bf16.mxu0 0
        %1303 = vmatpush1.bf16.xpose.msra.mxu0 0
        %1304 = vmatprep.subr.bf16.mxu0 0
        %1305 = vmatpush1.bf16.xpose.msra.mxu0 0
        %1306 = vmatprep.subr.bf16.mxu0 0
        %1307 = vmatpush1.bf16.xpose.msra.mxu0 0
        %1308 = vmatprep.subr.bf16.mxu0 0
        %1309 = vmatpush1.bf16.xpose.msra.mxu0 0
        %1310 = vmatprep.subr.bf16.mxu0 0
        %1311 = vmatpush1.bf16.xpose.msra.mxu0 0
        %1312 = vmatprep.subr.bf16.mxu0 0
        %1313 = vmatpush1.bf16.xpose.msra.mxu0 0
        %1314 = vmatprep.subr.bf16.mxu0 0
        %1315 = vmatpush1.bf16.xpose.msra.mxu0 0
        %1316 = vmatprep.subr.bf16.mxu0 0
        %1317 = vmatpush1.bf16.xpose.msra.mxu0 0
        %1318 = vmatprep.mubr.bf16.mxu0 0
        %1319 = vmatmul.mubr.bf16.gmra.mrb[0].mxu0 %v1281
        %v1320 = vpop.f32.mrb[0].mxu0
        %v1321 = vadd.f32 0.0, %v1320
        %v1322 = vpop.f32.mrb[0].mxu0
        %v1323 = vpop.f32.mrb[0].mxu0
        %v1324 = vpop.f32.mrb[0].mxu0
        %1325 = vdwg.mxu0
        %vm1326 = vcmask 64512
        %v1327 = vsel %vm1326, %v1275, -inf
        %1328 = vmax.xlane.f32.xlu0 %v1327
        %v1329 = vpop.xlane.xlu0 %1328
        %v1330 = vsel %vm1326, %v1321, -inf
        %1331 = vmax.xlane.f32.xlu0 %v1330
        %v1332 = vpop.xlane.xlu0 %1331
        %v1333 = vsub.f32 %v1275, %v1329
        %v1334 = vsub.f32 %v1321, %v1332
        %v1335 = vmul.f32 %v1333, 1.442695
        %v1336 = vpow.pop %v1335
        %v1337 = vmul.f32 %v1334, 1.442695
        %v1338 = vpow.pop %v1337
        %v1339 = vsel %vm1326, %v1336, 0.0
        %1340 = vadd.xlane.f32.xlu0 %v1339
        %v1341 = vpop.xlane.xlu0 %1340
        %v1342 = vsel %vm1326, %v1338, 0.0
        %1343 = vadd.xlane.f32.xlu0 %v1342
        %v1344 = vpop.xlane.xlu0 %1343
        %v1345 = vrcp.pop %v1341
        %v1346 = vrcp.pop %v1344
        %v1347 = vmul.f32 %v1336, %v1345
        %v1348 = vmul.f32 %v1338, %v1346
        %v1349 = vpack.c.bf16 %v1347, %v1347
        %v1350 = vpack.c.bf16 %v1348, %v1348
        %v1352 = vsel %vm1326, %v1349, 0
        %vm1354 = vcmask 1043456
        %v1356 = vsel %vm1354, %v1229, 0
        %1358 = vmatprep.subr.bf16.mxu0 0
        %1359 = vmatpush1.bf16.msra.mxu0 %v1356
        %1360 = vmatprep.subr.bf16.mxu0 0
        %1361 = vmatpush1.bf16.msra.mxu0 0
        %1362 = vmatprep.subr.bf16.mxu0 0
        %1363 = vmatpush1.bf16.msra.mxu0 0
        %1364 = vmatprep.subr.bf16.mxu0 0
        %1365 = vmatpush1.bf16.msra.mxu0 0
        %1366 = vmatprep.subr.bf16.mxu0 0
        %1367 = vmatpush1.bf16.msra.mxu0 0
        %1368 = vmatprep.subr.bf16.mxu0 0
        %1369 = vmatpush1.bf16.msra.mxu0 0
        %1370 = vmatprep.subr.bf16.mxu0 0
        %1371 = vmatpush1.bf16.msra.mxu0 0
        %1372 = vmatprep.subr.bf16.mxu0 0
        %1373 = vmatpush1.bf16.msra.mxu0 0
        %1374 = vmatprep.subr.bf16.mxu0 0
        %1375 = vmatpush1.bf16.msra.mxu0 0
        %1376 = vmatprep.subr.bf16.mxu0 0
        %1377 = vmatpush1.bf16.msra.mxu0 0
        %1378 = vmatprep.subr.bf16.mxu0 0
        %1379 = vmatpush1.bf16.msra.mxu0 0
        %1380 = vmatprep.subr.bf16.mxu0 0
        %1381 = vmatpush1.bf16.msra.mxu0 0
        %1382 = vmatprep.subr.bf16.mxu0 0
        %1383 = vmatpush1.bf16.msra.mxu0 0
        %1384 = vmatprep.subr.bf16.mxu0 0
        %1385 = vmatpush1.bf16.msra.mxu0 0
        %1386 = vmatprep.subr.bf16.mxu0 0
        %1387 = vmatpush1.bf16.msra.mxu0 0
        %1388 = vmatprep.subr.bf16.mxu0 0
        %1389 = vmatpush1.bf16.msra.mxu0 0
        %1390 = vmatprep.mubr.bf16.mxu0 0
        %1391 = vmatmul.mubr.bf16.gmra.mrb[0].mxu0 %v1352
        %v1392 = vpop.f32.mrb[0].mxu0
        %v1393 = vadd.f32 0.0, %v1392
        %v1394 = vpop.f32.mrb[0].mxu0
        %v1395 = vpop.f32.mrb[0].mxu0
        %v1396 = vpop.f32.mrb[0].mxu0
        %1397 = vdwg.mxu0
        %v1399 = vsel %vm1326, %v1350, 0
        %v1402 = vsel %vm1354, %v1232, 0
        %1404 = vmatprep.subr.bf16.mxu0 0
        %1405 = vmatpush1.bf16.msra.mxu0 %v1402
        %1406 = vmatprep.subr.bf16.mxu0 0
        %1407 = vmatpush1.bf16.msra.mxu0 0
        %1408 = vmatprep.subr.bf16.mxu0 0
        %1409 = vmatpush1.bf16.msra.mxu0 0
        %1410 = vmatprep.subr.bf16.mxu0 0
        %1411 = vmatpush1.bf16.msra.mxu0 0
        %1412 = vmatprep.subr.bf16.mxu0 0
        %1413 = vmatpush1.bf16.msra.mxu0 0
        %1414 = vmatprep.subr.bf16.mxu0 0
        %1415 = vmatpush1.bf16.msra.mxu0 0
        %1416 = vmatprep.subr.bf16.mxu0 0
        %1417 = vmatpush1.bf16.msra.mxu0 0
        %1418 = vmatprep.subr.bf16.mxu0 0
        %1419 = vmatpush1.bf16.msra.mxu0 0
        %1420 = vmatprep.subr.bf16.mxu0 0
        %1421 = vmatpush1.bf16.msra.mxu0 0
        %1422 = vmatprep.subr.bf16.mxu0 0
        %1423 = vmatpush1.bf16.msra.mxu0 0
        %1424 = vmatprep.subr.bf16.mxu0 0
        %1425 = vmatpush1.bf16.msra.mxu0 0
        %1426 = vmatprep.subr.bf16.mxu0 0
        %1427 = vmatpush1.bf16.msra.mxu0 0
        %1428 = vmatprep.subr.bf16.mxu0 0
        %1429 = vmatpush1.bf16.msra.mxu0 0
        %1430 = vmatprep.subr.bf16.mxu0 0
        %1431 = vmatpush1.bf16.msra.mxu0 0
        %1432 = vmatprep.subr.bf16.mxu0 0
        %1433 = vmatpush1.bf16.msra.mxu0 0
        %1434 = vmatprep.subr.bf16.mxu0 0
        %1435 = vmatpush1.bf16.msra.mxu0 0
        %1436 = vmatprep.mubr.bf16.mxu0 0
        %1437 = vmatmul.mubr.bf16.gmra.mrb[0].mxu0 %v1399
        %v1438 = vpop.f32.mrb[0].mxu0
        %v1439 = vadd.f32 0.0, %v1438
        %v1440 = vpop.f32.mrb[0].mxu0
        %v1441 = vpop.f32.mrb[0].mxu0
        %v1442 = vpop.f32.mrb[0].mxu0
        %1443 = vdwg.mxu0
        %v1444 = vpack.c.bf16 %v1393, %v1393
        %v1445 = vpack.c.bf16 %v1439, %v1439
        %v1446 = vld [vmem:[%s3] sm:$0xf]
        %v1447 = vld [vmem:[%s3 + $0x4] sm:$0xf]
        %v1448 = vld [vmem:[%s3 + $0x8] sm:$0xf]
        %v1449 = vld [vmem:[%s3 + $0xc] sm:$0xf]
        %v1450 = vld [vmem:[%s3 + $0x10] sm:$0xf]
        %v1451 = vld [vmem:[%s3 + $0x14] sm:$0xf]
        %v1452 = vld [vmem:[%s3 + $0x18] sm:$0xf]
        %v1453 = vld [vmem:[%s3 + $0x1c] sm:$0xf]
        %v1454 = vld [vmem:[%s3 + $0x20] sm:$0xf]
        %v1455 = vld [vmem:[%s3 + $0x24] sm:$0xf]
        %v1456 = vld [vmem:[%s3 + $0x28] sm:$0xf]
        %v1457 = vld [vmem:[%s3 + $0x2c] sm:$0xf]
        %v1458 = vld [vmem:[%s3 + $0x30] sm:$0xf]
        %v1459 = vld [vmem:[%s3 + $0x34] sm:$0xf]
        %v1460 = vld [vmem:[%s3 + $0x38] sm:$0xf]
        %v1461 = vld [vmem:[%s3 + $0x3c] sm:$0xf]
        %v1470 = vunpack.c.l.b16 %v1446
        %v1471 = vunpack.c.l.b16 %v1447
        %v1472 = vunpack.c.l.b16 %v1448
        %v1473 = vunpack.c.l.b16 %v1449
        %v1474 = vunpack.c.l.b16 %v1450
        %v1475 = vunpack.c.l.b16 %v1451
        %v1476 = vunpack.c.l.b16 %v1452
        %v1477 = vunpack.c.l.b16 %v1453
        %v1478 = vpack.c.b16 %v1471, %v1470
        %v1479 = vpack.c.b16 %v1473, %v1472
        %v1480 = vpack.c.b16 %v1475, %v1474
        %v1481 = vpack.c.b16 %v1477, %v1476
        %v1487 = vsel %vm1233, %v1444, 0
        %1489 = vmatprep.subr.bf16.mxu0 0
        %1490 = vmatpush1.bf16.msra.mxu0 %v1478
        %1491 = vmatprep.subr.bf16.mxu0 0
        %1492 = vmatpush1.bf16.msra.mxu0 %v1479
        %1493 = vmatprep.subr.bf16.mxu0 0
        %1494 = vmatpush1.bf16.msra.mxu0 %v1480
        %1495 = vmatprep.subr.bf16.mxu0 0
        %1496 = vmatpush1.bf16.msra.mxu0 %v1481
        %1497 = vmatprep.subr.bf16.mxu0 0
        %1498 = vmatpush1.bf16.msra.mxu0 0
        %1499 = vmatprep.subr.bf16.mxu0 0
        %1500 = vmatpush1.bf16.msra.mxu0 0
        %1501 = vmatprep.subr.bf16.mxu0 0
        %1502 = vmatpush1.bf16.msra.mxu0 0
        %1503 = vmatprep.subr.bf16.mxu0 0
        %1504 = vmatpush1.bf16.msra.mxu0 0
        %1505 = vmatprep.subr.bf16.mxu0 0
        %1506 = vmatpush1.bf16.msra.mxu0 0
        %1507 = vmatprep.subr.bf16.mxu0 0
        %1508 = vmatpush1.bf16.msra.mxu0 0
        %1509 = vmatprep.subr.bf16.mxu0 0
        %1510 = vmatpush1.bf16.msra.mxu0 0
        %1511 = vmatprep.subr.bf16.mxu0 0
        %1512 = vmatpush1.bf16.msra.mxu0 0
        %1513 = vmatprep.subr.bf16.mxu0 0
        %1514 = vmatpush1.bf16.msra.mxu0 0
        %1515 = vmatprep.subr.bf16.mxu0 0
        %1516 = vmatpush1.bf16.msra.mxu0 0
        %1517 = vmatprep.subr.bf16.mxu0 0
        %1518 = vmatpush1.bf16.msra.mxu0 0
        %1519 = vmatprep.subr.bf16.mxu0 0
        %1520 = vmatpush1.bf16.msra.mxu0 0
        %1521 = vmatprep.mubr.bf16.mxu0 0
        %1522 = vmatmul.mubr.bf16.gmra.mrb[0].mxu0 %v1487
        %v1523 = vpop.f32.mrb[0].mxu0
        %v1524 = vadd.f32 0.0, %v1523
        %v1525 = vpop.f32.mrb[0].mxu0
        %v1526 = vpop.f32.mrb[0].mxu0
        %v1527 = vpop.f32.mrb[0].mxu0
        %1528 = vdwg.mxu0
        %v1537 = vunpack.c.l.b16 %v1454
        %v1538 = vunpack.c.l.b16 %v1455
        %v1539 = vunpack.c.l.b16 %v1456
        %v1540 = vunpack.c.l.b16 %v1457
        %v1541 = vunpack.c.l.b16 %v1458
        %v1542 = vunpack.c.l.b16 %v1459
        %v1543 = vunpack.c.l.b16 %v1460
        %v1544 = vunpack.c.l.b16 %v1461
        %v1545 = vpack.c.b16 %v1538, %v1537
        %v1546 = vpack.c.b16 %v1540, %v1539
        %v1547 = vpack.c.b16 %v1542, %v1541
        %v1548 = vpack.c.b16 %v1544, %v1543
        %v1554 = vsel %vm1233, %v1445, 0
        %1556 = vmatprep.subr.bf16.mxu0 0
        %1557 = vmatpush1.bf16.msra.mxu0 %v1545
        %1558 = vmatprep.subr.bf16.mxu0 0
        %1559 = vmatpush1.bf16.msra.mxu0 %v1546
        %1560 = vmatprep.subr.bf16.mxu0 0
        %1561 = vmatpush1.bf16.msra.mxu0 %v1547
        %1562 = vmatprep.subr.bf16.mxu0 0
        %1563 = vmatpush1.bf16.msra.mxu0 %v1548
        %1564 = vmatprep.subr.bf16.mxu0 0
        %1565 = vmatpush1.bf16.msra.mxu0 0
        %1566 = vmatprep.subr.bf16.mxu0 0
        %1567 = vmatpush1.bf16.msra.mxu0 0
        %1568 = vmatprep.subr.bf16.mxu0 0
        %1569 = vmatpush1.bf16.msra.mxu0 0
        %1570 = vmatprep.subr.bf16.mxu0 0
        %1571 = vmatpush1.bf16.msra.mxu0 0
        %1572 = vmatprep.subr.bf16.mxu0 0
        %1573 = vmatpush1.bf16.msra.mxu0 0
        %1574 = vmatprep.subr.bf16.mxu0 0
        %1575 = vmatpush1.bf16.msra.mxu0 0
        %1576 = vmatprep.subr.bf16.mxu0 0
        %1577 = vmatpush1.bf16.msra.mxu0 0
        %1578 = vmatprep.subr.bf16.mxu0 0
        %1579 = vmatpush1.bf16.msra.mxu0 0
        %1580 = vmatprep.subr.bf16.mxu0 0
        %1581 = vmatpush1.bf16.msra.mxu0 0
        %1582 = vmatprep.subr.bf16.mxu0 0
        %1583 = vmatpush1.bf16.msra.mxu0 0
        %1584 = vmatprep.subr.bf16.mxu0 0
        %1585 = vmatpush1.bf16.msra.mxu0 0
        %1586 = vmatprep.subr.bf16.mxu0 0
        %1587 = vmatpush1.bf16.msra.mxu0 0
        %1588 = vmatprep.mubr.bf16.mxu0 0
        %1589 = vmatmul.mubr.bf16.gmra.mrb[0].mxu0 %v1554
        %v1590 = vpop.f32.mrb[0].mxu0
        %v1591 = vadd.f32 0.0, %v1590
        %v1592 = vpop.f32.mrb[0].mxu0
        %v1593 = vpop.f32.mrb[0].mxu0
        %v1594 = vpop.f32.mrb[0].mxu0
        %1595 = vdwg.mxu0
        %v1596 = vadd.f32 %v1524, %v1591
        %v1597 = vld [vmem:[%s4] sm:$0x1]
        %v1599 = vlaneseq
        %v1600 = vshrl.u32 %v1599, 7
        %v1601 = vsub.s32 0, %v1600
        %v1602 = vrot.slane %v1597, %v1601
        %v1604 = vadd.f32 %v1596, %v1602
        %v1605 = vadd.f32 %v1604, %v557
        %v1606 = vld [vmem:[#allocation6] sm:$0x1]
        %v1607 = vld [vmem:[#allocation7] sm:$0x1]
        %1608 = vadd.xlane.f32.xlu0 %v1605
        %v1609 = vpop.xlane.xlu0 %1608
        %v1610 = vrcp.pop 128.0
        %v1611 = vmul.f32 %v1609, %v1610
        %v1612 = vsub.f32 %v1605, %v1611
        %v1613 = vmul.f32 %v1612, %v1612
        %1614 = vadd.xlane.f32.xlu0 %v1613
        %v1615 = vpop.xlane.xlu0 %1614
        %v1616 = vmul.f32 %v1615, %v1610
        %v1617 = vadd.f32 %v1616, 1e-12
        %v1618 = vrsqrt.pop %v1617
        %v1619 = vmul.f32 %v1612, %v1618
        %v1621 = vlaneseq
        %v1622 = vshrl.u32 %v1621, 7
        %v1623 = vsub.s32 0, %v1622
        %v1624 = vrot.slane %v1606, %v1623
        %v1626 = vmul.f32 %v1619, %v1624
        %v1628 = vlaneseq
        %v1629 = vshrl.u32 %v1628, 7
        %v1630 = vsub.s32 0, %v1629
        %v1631 = vrot.slane %v1607, %v1630
        %v1633 = vadd.f32 %v1626, %v1631
        %v1634 = vpack.c.bf16 %v1633, %v1633
        %v1635 = vld [vmem:[#allocation9] sm:$0xff]
        %v1636 = vld [vmem:[#allocation9 + $0x8] sm:$0xff]
        %v1637 = vld [vmem:[#allocation9 + $0x10] sm:$0xff]
        %v1638 = vld [vmem:[#allocation9 + $0x18] sm:$0xff]
        %v1639 = vld [vmem:[#allocation9 + $0x20] sm:$0xff]
        %v1640 = vld [vmem:[#allocation9 + $0x28] sm:$0xff]
        %v1641 = vld [vmem:[#allocation9 + $0x30] sm:$0xff]
        %v1642 = vld [vmem:[#allocation9 + $0x38] sm:$0xff]
        %v1643 = vld [vmem:[#allocation9 + $0x40] sm:$0xff]
        %v1644 = vld [vmem:[#allocation9 + $0x48] sm:$0xff]
        %v1645 = vld [vmem:[#allocation9 + $0x50] sm:$0xff]
        %v1646 = vld [vmem:[#allocation9 + $0x58] sm:$0xff]
        %v1647 = vld [vmem:[#allocation9 + $0x60] sm:$0xff]
        %v1648 = vld [vmem:[#allocation9 + $0x68] sm:$0xff]
        %v1649 = vld [vmem:[#allocation9 + $0x70] sm:$0xff]
        %v1650 = vld [vmem:[#allocation9 + $0x78] sm:$0xff]
        %v1651 = vld [vmem:[#allocation9 + $0x80] sm:$0xff]
        %v1652 = vld [vmem:[#allocation9 + $0x88] sm:$0xff]
        %v1653 = vld [vmem:[#allocation9 + $0x90] sm:$0xff]
        %v1654 = vld [vmem:[#allocation9 + $0x98] sm:$0xff]
        %v1655 = vld [vmem:[#allocation9 + $0xa0] sm:$0xff]
        %v1656 = vld [vmem:[#allocation9 + $0xa8] sm:$0xff]
        %v1657 = vld [vmem:[#allocation9 + $0xb0] sm:$0xff]
        %v1658 = vld [vmem:[#allocation9 + $0xb8] sm:$0xff]
        %v1659 = vld [vmem:[#allocation9 + $0xc0] sm:$0xff]
        %v1660 = vld [vmem:[#allocation9 + $0xc8] sm:$0xff]
        %v1661 = vld [vmem:[#allocation9 + $0xd0] sm:$0xff]
        %v1662 = vld [vmem:[#allocation9 + $0xd8] sm:$0xff]
        %v1663 = vld [vmem:[#allocation9 + $0xe0] sm:$0xff]
        %v1664 = vld [vmem:[#allocation9 + $0xe8] sm:$0xff]
        %v1665 = vld [vmem:[#allocation9 + $0xf0] sm:$0xff]
        %v1666 = vld [vmem:[#allocation9 + $0xf8] sm:$0xff]
        %v1667 = vld [vmem:[%s8] sm:$0xf]
        %v1669 = vlaneseq
        %v1670 = vshrl.u32 %v1669, 7
        %v1671 = vsub.s32 0, %v1670
        %v1672 = vrot.slane %v1667, %v1671
        %v1673 = vlaneseq
        %v1674 = vshrl.u32 %v1673, 7
        %v1675 = vsub.s32 1, %v1674
        %v1676 = vrot.slane %v1667, %v1675
        %v1677 = vlaneseq
        %v1678 = vshrl.u32 %v1677, 7
        %v1679 = vsub.s32 2, %v1678
        %v1680 = vrot.slane %v1667, %v1679
        %v1681 = vlaneseq
        %v1682 = vshrl.u32 %v1681, 7
        %v1683 = vsub.s32 3, %v1682
        %v1684 = vrot.slane %v1667, %v1683
        %v1721 = vunpack.c.l.b16 %v1635
        %v1722 = vunpack.c.h.b16 %v1635
        %v1723 = vunpack.c.l.b16 %v1636
        %v1724 = vunpack.c.h.b16 %v1636
        %v1725 = vunpack.c.l.b16 %v1637
        %v1726 = vunpack.c.h.b16 %v1637
        %v1727 = vunpack.c.l.b16 %v1638
        %v1728 = vunpack.c.h.b16 %v1638
        %v1729 = vunpack.c.l.b16 %v1639
        %v1730 = vunpack.c.h.b16 %v1639
        %v1731 = vunpack.c.l.b16 %v1640
        %v1732 = vunpack.c.h.b16 %v1640
        %v1733 = vunpack.c.l.b16 %v1641
        %v1734 = vunpack.c.h.b16 %v1641
        %v1735 = vunpack.c.l.b16 %v1642
        %v1736 = vunpack.c.h.b16 %v1642
        %v1737 = vunpack.c.l.b16 %v1643
        %v1738 = vunpack.c.h.b16 %v1643
        %v1739 = vunpack.c.l.b16 %v1644
        %v1740 = vunpack.c.h.b16 %v1644
        %v1741 = vunpack.c.l.b16 %v1645
        %v1742 = vunpack.c.h.b16 %v1645
        %v1743 = vunpack.c.l.b16 %v1646
        %v1744 = vunpack.c.h.b16 %v1646
        %v1745 = vunpack.c.l.b16 %v1647
        %v1746 = vunpack.c.h.b16 %v1647
        %v1747 = vunpack.c.l.b16 %v1648
        %v1748 = vunpack.c.h.b16 %v1648
        %v1749 = vunpack.c.l.b16 %v1649
        %v1750 = vunpack.c.h.b16 %v1649
        %v1751 = vunpack.c.l.b16 %v1650
        %v1752 = vunpack.c.h.b16 %v1650
        %v1753 = vunpack.c.l.b16 %v1651
        %v1754 = vunpack.c.h.b16 %v1651
        %v1755 = vunpack.c.l.b16 %v1652
        %v1756 = vunpack.c.h.b16 %v1652
        %v1757 = vunpack.c.l.b16 %v1653
        %v1758 = vunpack.c.h.b16 %v1653
        %v1759 = vunpack.c.l.b16 %v1654
        %v1760 = vunpack.c.h.b16 %v1654
        %v1761 = vunpack.c.l.b16 %v1655
        %v1762 = vunpack.c.h.b16 %v1655
        %v1763 = vunpack.c.l.b16 %v1656
        %v1764 = vunpack.c.h.b16 %v1656
        %v1765 = vunpack.c.l.b16 %v1657
        %v1766 = vunpack.c.h.b16 %v1657
        %v1767 = vunpack.c.l.b16 %v1658
        %v1768 = vunpack.c.h.b16 %v1658
        %v1769 = vunpack.c.l.b16 %v1659
        %v1770 = vunpack.c.h.b16 %v1659
        %v1771 = vunpack.c.l.b16 %v1660
        %v1772 = vunpack.c.h.b16 %v1660
        %v1773 = vunpack.c.l.b16 %v1661
        %v1774 = vunpack.c.h.b16 %v1661
        %v1775 = vunpack.c.l.b16 %v1662
        %v1776 = vunpack.c.h.b16 %v1662
        %v1777 = vunpack.c.l.b16 %v1663
        %v1778 = vunpack.c.h.b16 %v1663
        %v1779 = vunpack.c.l.b16 %v1664
        %v1780 = vunpack.c.h.b16 %v1664
        %v1781 = vunpack.c.l.b16 %v1665
        %v1782 = vunpack.c.h.b16 %v1665
        %v1783 = vunpack.c.l.b16 %v1666
        %v1784 = vunpack.c.h.b16 %v1666
        %v1785 = vpack.c.b16 %v1725, %v1721
        %v1786 = vpack.c.b16 %v1726, %v1722
        %v1787 = vpack.c.b16 %v1727, %v1723
        %v1788 = vpack.c.b16 %v1728, %v1724
        %v1789 = vpack.c.b16 %v1733, %v1729
        %v1790 = vpack.c.b16 %v1734, %v1730
        %v1791 = vpack.c.b16 %v1735, %v1731
        %v1792 = vpack.c.b16 %v1736, %v1732
        %v1793 = vpack.c.b16 %v1741, %v1737
        %v1794 = vpack.c.b16 %v1742, %v1738
        %v1795 = vpack.c.b16 %v1743, %v1739
        %v1796 = vpack.c.b16 %v1744, %v1740
        %v1797 = vpack.c.b16 %v1749, %v1745
        %v1798 = vpack.c.b16 %v1750, %v1746
        %v1799 = vpack.c.b16 %v1751, %v1747
        %v1800 = vpack.c.b16 %v1752, %v1748
        %v1801 = vpack.c.b16 %v1757, %v1753
        %v1802 = vpack.c.b16 %v1758, %v1754
        %v1803 = vpack.c.b16 %v1759, %v1755
        %v1804 = vpack.c.b16 %v1760, %v1756
        %v1805 = vpack.c.b16 %v1765, %v1761
        %v1806 = vpack.c.b16 %v1766, %v1762
        %v1807 = vpack.c.b16 %v1767, %v1763
        %v1808 = vpack.c.b16 %v1768, %v1764
        %v1809 = vpack.c.b16 %v1773, %v1769
        %v1810 = vpack.c.b16 %v1774, %v1770
        %v1811 = vpack.c.b16 %v1775, %v1771
        %v1812 = vpack.c.b16 %v1776, %v1772
        %v1813 = vpack.c.b16 %v1781, %v1777
        %v1814 = vpack.c.b16 %v1782, %v1778
        %v1815 = vpack.c.b16 %v1783, %v1779
        %v1816 = vpack.c.b16 %v1784, %v1780
        %1849 = vmatprep.subr.bf16.mxu0 %v1786
        %1850 = vmatpush1.bf16.msra.mxu0 %v1785
        %1851 = vmatprep.subr.bf16.mxu0 %v1790
        %1852 = vmatpush1.bf16.msra.mxu0 %v1789
        %1853 = vmatprep.subr.bf16.mxu0 %v1794
        %1854 = vmatpush1.bf16.msra.mxu0 %v1793
        %1855 = vmatprep.subr.bf16.mxu0 %v1798
        %1856 = vmatpush1.bf16.msra.mxu0 %v1797
        %1857 = vmatprep.subr.bf16.mxu0 %v1802
        %1858 = vmatpush1.bf16.msra.mxu0 %v1801
        %1859 = vmatprep.subr.bf16.mxu0 %v1806
        %1860 = vmatpush1.bf16.msra.mxu0 %v1805
        %1861 = vmatprep.subr.bf16.mxu0 %v1810
        %1862 = vmatpush1.bf16.msra.mxu0 %v1809
        %1863 = vmatprep.subr.bf16.mxu0 %v1814
        %1864 = vmatpush1.bf16.msra.mxu0 %v1813
        %1865 = vmatprep.subr.bf16.mxu0 0
        %1866 = vmatpush1.bf16.msra.mxu0 0
        %1867 = vmatprep.subr.bf16.mxu0 0
        %1868 = vmatpush1.bf16.msra.mxu0 0
        %1869 = vmatprep.subr.bf16.mxu0 0
        %1870 = vmatpush1.bf16.msra.mxu0 0
        %1871 = vmatprep.subr.bf16.mxu0 0
        %1872 = vmatpush1.bf16.msra.mxu0 0
        %1873 = vmatprep.subr.bf16.mxu0 0
        %1874 = vmatpush1.bf16.msra.mxu0 0
        %1875 = vmatprep.subr.bf16.mxu0 0
        %1876 = vmatpush1.bf16.msra.mxu0 0
        %1877 = vmatprep.subr.bf16.mxu0 0
        %1878 = vmatpush1.bf16.msra.mxu0 0
        %1879 = vmatprep.subr.bf16.mxu0 0
        %1880 = vmatpush1.bf16.msra.mxu0 0
        %1881 = vmatprep.mubr.bf16.mxu0 0
        %1882 = vmatmul.mubr.bf16.gmra.mrb[0].mxu0 %v1634
        %v1883 = vpop.f32.mrb[0].mxu0
        %v1884 = vadd.f32 %v1672, %v1883
        %v1885 = vpop.f32.mrb[0].mxu0
        %v1886 = vadd.f32 %v1676, %v1885
        %v1887 = vpop.f32.mrb[0].mxu0
        %v1888 = vpop.f32.mrb[0].mxu0
        %1889 = vdwg.mxu0
        %1890 = vmatprep.subr.bf16.mxu0 %v1788
        %1891 = vmatpush1.bf16.msra.mxu0 %v1787
        %1892 = vmatprep.subr.bf16.mxu0 %v1792
        %1893 = vmatpush1.bf16.msra.mxu0 %v1791
        %1894 = vmatprep.subr.bf16.mxu0 %v1796
        %1895 = vmatpush1.bf16.msra.mxu0 %v1795
        %1896 = vmatprep.subr.bf16.mxu0 %v1800
        %1897 = vmatpush1.bf16.msra.mxu0 %v1799
        %1898 = vmatprep.subr.bf16.mxu0 %v1804
        %1899 = vmatpush1.bf16.msra.mxu0 %v1803
        %1900 = vmatprep.subr.bf16.mxu0 %v1808
        %1901 = vmatpush1.bf16.msra.mxu0 %v1807
        %1902 = vmatprep.subr.bf16.mxu0 %v1812
        %1903 = vmatpush1.bf16.msra.mxu0 %v1811
        %1904 = vmatprep.subr.bf16.mxu0 %v1816
        %1905 = vmatpush1.bf16.msra.mxu0 %v1815
        %1906 = vmatprep.subr.bf16.mxu0 0
        %1907 = vmatpush1.bf16.msra.mxu0 0
        %1908 = vmatprep.subr.bf16.mxu0 0
        %1909 = vmatpush1.bf16.msra.mxu0 0
        %1910 = vmatprep.subr.bf16.mxu0 0
        %1911 = vmatpush1.bf16.msra.mxu0 0
        %1912 = vmatprep.subr.bf16.mxu0 0
        %1913 = vmatpush1.bf16.msra.mxu0 0
        %1914 = vmatprep.subr.bf16.mxu0 0
        %1915 = vmatpush1.bf16.msra.mxu0 0
        %1916 = vmatprep.subr.bf16.mxu0 0
        %1917 = vmatpush1.bf16.msra.mxu0 0
        %1918 = vmatprep.subr.bf16.mxu0 0
        %1919 = vmatpush1.bf16.msra.mxu0 0
        %1920 = vmatprep.subr.bf16.mxu0 0
        %1921 = vmatpush1.bf16.msra.mxu0 0
        %1922 = vmatprep.mubr.bf16.mxu0 0
        %1923 = vmatmul.mubr.bf16.gmra.mrb[0].mxu0 %v1634
        %v1924 = vpop.f32.mrb[0].mxu0
        %v1925 = vadd.f32 %v1680, %v1924
        %v1926 = vpop.f32.mrb[0].mxu0
        %v1927 = vadd.f32 %v1684, %v1926
        %v1928 = vpop.f32.mrb[0].mxu0
        %v1929 = vpop.f32.mrb[0].mxu0
        %1930 = vdwg.mxu0
        %v1931 = vmul.f32 %v1884, 0.5
        %v1932 = vmul.f32 %v1886, 0.5
        %v1933 = vmul.f32 %v1925, 0.5
        %v1934 = vmul.f32 %v1927, 0.5
        %v1935 = vmul.f32 %v1884, 0.044715
        %v1936 = vmul.f32 %v1886, 0.044715
        %v1937 = vmul.f32 %v1925, 0.044715
        %v1938 = vmul.f32 %v1927, 0.044715
        %v1939 = vmul.f32 %v1935, %v1884
        %v1940 = vmul.f32 %v1936, %v1886
        %v1941 = vmul.f32 %v1937, %v1925
        %v1942 = vmul.f32 %v1938, %v1927
        %v1943 = vmul.f32 %v1939, %v1884
        %v1944 = vmul.f32 %v1940, %v1886
        %v1945 = vmul.f32 %v1941, %v1925
        %v1946 = vmul.f32 %v1942, %v1927
        %v1947 = vadd.f32 %v1884, %v1943
        %v1948 = vadd.f32 %v1886, %v1944
        %v1949 = vadd.f32 %v1925, %v1945
        %v1950 = vadd.f32 %v1927, %v1946
        %v1951 = vmul.f32 %v1947, 0.7978846
        %v1952 = vmul.f32 %v1948, 0.7978846
        %v1953 = vmul.f32 %v1949, 0.7978846
        %v1954 = vmul.f32 %v1950, 0.7978846
        %v1955 = vtanh.pop %v1951
        %v1956 = vtanh.pop %v1952
        %v1957 = vtanh.pop %v1953
        %v1958 = vtanh.pop %v1954
        %v1959 = vadd.f32 %v1955, 1.0
        %v1960 = vadd.f32 %v1956, 1.0
        %v1961 = vadd.f32 %v1957, 1.0
        %v1962 = vadd.f32 %v1958, 1.0
        %v1963 = vmul.f32 %v1931, %v1959
        %v1964 = vmul.f32 %v1932, %v1960
        %v1965 = vmul.f32 %v1933, %v1961
        %v1966 = vmul.f32 %v1934, %v1962
        %v1967 = vpack.c.bf16 %v1963, %v1963
        %v1968 = vpack.c.bf16 %v1964, %v1964
        %v1969 = vpack.c.bf16 %v1965, %v1965
        %v1970 = vpack.c.bf16 %v1966, %v1966
        %v1971 = vld [vmem:[#allocation10] sm:$0xf]
        %v1972 = vld [vmem:[#allocation10 + $0x4] sm:$0xf]
        %v1973 = vld [vmem:[#allocation10 + $0x8] sm:$0xf]
        %v1974 = vld [vmem:[#allocation10 + $0xc] sm:$0xf]
        %v1975 = vld [vmem:[#allocation10 + $0x10] sm:$0xf]
        %v1976 = vld [vmem:[#allocation10 + $0x14] sm:$0xf]
        %v1977 = vld [vmem:[#allocation10 + $0x18] sm:$0xf]
        %v1978 = vld [vmem:[#allocation10 + $0x1c] sm:$0xf]
        %v1979 = vld [vmem:[#allocation10 + $0x20] sm:$0xf]
        %v1980 = vld [vmem:[#allocation10 + $0x24] sm:$0xf]
        %v1981 = vld [vmem:[#allocation10 + $0x28] sm:$0xf]
        %v1982 = vld [vmem:[#allocation10 + $0x2c] sm:$0xf]
        %v1983 = vld [vmem:[#allocation10 + $0x30] sm:$0xf]
        %v1984 = vld [vmem:[#allocation10 + $0x34] sm:$0xf]
        %v1985 = vld [vmem:[#allocation10 + $0x38] sm:$0xf]
        %v1986 = vld [vmem:[#allocation10 + $0x3c] sm:$0xf]
        %v1987 = vld [vmem:[#allocation10 + $0x40] sm:$0xf]
        %v1988 = vld [vmem:[#allocation10 + $0x44] sm:$0xf]
        %v1989 = vld [vmem:[#allocation10 + $0x48] sm:$0xf]
        %v1990 = vld [vmem:[#allocation10 + $0x4c] sm:$0xf]
        %v1991 = vld [vmem:[#allocation10 + $0x50] sm:$0xf]
        %v1992 = vld [vmem:[#allocation10 + $0x54] sm:$0xf]
        %v1993 = vld [vmem:[#allocation10 + $0x58] sm:$0xf]
        %v1994 = vld [vmem:[#allocation10 + $0x5c] sm:$0xf]
        %v1995 = vld [vmem:[#allocation10 + $0x60] sm:$0xf]
        %v1996 = vld [vmem:[#allocation10 + $0x64] sm:$0xf]
        %v1997 = vld [vmem:[#allocation10 + $0x68] sm:$0xf]
        %v1998 = vld [vmem:[#allocation10 + $0x6c] sm:$0xf]
        %v1999 = vld [vmem:[#allocation10 + $0x70] sm:$0xf]
        %v2000 = vld [vmem:[#allocation10 + $0x74] sm:$0xf]
        %v2001 = vld [vmem:[#allocation10 + $0x78] sm:$0xf]
        %v2002 = vld [vmem:[#allocation10 + $0x7c] sm:$0xf]
        %v2003 = vld [vmem:[#allocation10 + $0x80] sm:$0xf]
        %v2004 = vld [vmem:[#allocation10 + $0x84] sm:$0xf]
        %v2005 = vld [vmem:[#allocation10 + $0x88] sm:$0xf]
        %v2006 = vld [vmem:[#allocation10 + $0x8c] sm:$0xf]
        %v2007 = vld [vmem:[#allocation10 + $0x90] sm:$0xf]
        %v2008 = vld [vmem:[#allocation10 + $0x94] sm:$0xf]
        %v2009 = vld [vmem:[#allocation10 + $0x98] sm:$0xf]
        %v2010 = vld [vmem:[#allocation10 + $0x9c] sm:$0xf]
        %v2011 = vld [vmem:[#allocation10 + $0xa0] sm:$0xf]
        %v2012 = vld [vmem:[#allocation10 + $0xa4] sm:$0xf]
        %v2013 = vld [vmem:[#allocation10 + $0xa8] sm:$0xf]
        %v2014 = vld [vmem:[#allocation10 + $0xac] sm:$0xf]
        %v2015 = vld [vmem:[#allocation10 + $0xb0] sm:$0xf]
        %v2016 = vld [vmem:[#allocation10 + $0xb4] sm:$0xf]
        %v2017 = vld [vmem:[#allocation10 + $0xb8] sm:$0xf]
        %v2018 = vld [vmem:[#allocation10 + $0xbc] sm:$0xf]
        %v2019 = vld [vmem:[#allocation10 + $0xc0] sm:$0xf]
        %v2020 = vld [vmem:[#allocation10 + $0xc4] sm:$0xf]
        %v2021 = vld [vmem:[#allocation10 + $0xc8] sm:$0xf]
        %v2022 = vld [vmem:[#allocation10 + $0xcc] sm:$0xf]
        %v2023 = vld [vmem:[#allocation10 + $0xd0] sm:$0xf]
        %v2024 = vld [vmem:[#allocation10 + $0xd4] sm:$0xf]
        %v2025 = vld [vmem:[#allocation10 + $0xd8] sm:$0xf]
        %v2026 = vld [vmem:[#allocation10 + $0xdc] sm:$0xf]
        %v2027 = vld [vmem:[#allocation10 + $0xe0] sm:$0xf]
        %v2028 = vld [vmem:[#allocation10 + $0xe4] sm:$0xf]
        %v2029 = vld [vmem:[#allocation10 + $0xe8] sm:$0xf]
        %v2030 = vld [vmem:[#allocation10 + $0xec] sm:$0xf]
        %v2031 = vld [vmem:[#allocation10 + $0xf0] sm:$0xf]
        %v2032 = vld [vmem:[#allocation10 + $0xf4] sm:$0xf]
        %v2033 = vld [vmem:[#allocation10 + $0xf8] sm:$0xf]
        %v2034 = vld [vmem:[#allocation10 + $0xfc] sm:$0xf]
        %v2035 = vld [vmem:[#allocation12] sm:$0x1]
        %v2037 = vlaneseq
        %v2038 = vshrl.u32 %v2037, 7
        %v2039 = vsub.s32 0, %v2038
        %v2040 = vrot.slane %v2035, %v2039
        %v2106 = vunpack.c.l.b16 %v1971
        %v2107 = vunpack.c.l.b16 %v1972
        %v2108 = vunpack.c.l.b16 %v1973
        %v2109 = vunpack.c.l.b16 %v1974
        %v2110 = vunpack.c.l.b16 %v1975
        %v2111 = vunpack.c.l.b16 %v1976
        %v2112 = vunpack.c.l.b16 %v1977
        %v2113 = vunpack.c.l.b16 %v1978
        %v2114 = vunpack.c.l.b16 %v1979
        %v2115 = vunpack.c.l.b16 %v1980
        %v2116 = vunpack.c.l.b16 %v1981
        %v2117 = vunpack.c.l.b16 %v1982
        %v2118 = vunpack.c.l.b16 %v1983
        %v2119 = vunpack.c.l.b16 %v1984
        %v2120 = vunpack.c.l.b16 %v1985
        %v2121 = vunpack.c.l.b16 %v1986
        %v2122 = vunpack.c.l.b16 %v1987
        %v2123 = vunpack.c.l.b16 %v1988
        %v2124 = vunpack.c.l.b16 %v1989
        %v2125 = vunpack.c.l.b16 %v1990
        %v2126 = vunpack.c.l.b16 %v1991
        %v2127 = vunpack.c.l.b16 %v1992
        %v2128 = vunpack.c.l.b16 %v1993
        %v2129 = vunpack.c.l.b16 %v1994
        %v2130 = vunpack.c.l.b16 %v1995
        %v2131 = vunpack.c.l.b16 %v1996
        %v2132 = vunpack.c.l.b16 %v1997
        %v2133 = vunpack.c.l.b16 %v1998
        %v2134 = vunpack.c.l.b16 %v1999
        %v2135 = vunpack.c.l.b16 %v2000
        %v2136 = vunpack.c.l.b16 %v2001
        %v2137 = vunpack.c.l.b16 %v2002
        %v2138 = vunpack.c.l.b16 %v2003
        %v2139 = vunpack.c.l.b16 %v2004
        %v2140 = vunpack.c.l.b16 %v2005
        %v2141 = vunpack.c.l.b16 %v2006
        %v2142 = vunpack.c.l.b16 %v2007
        %v2143 = vunpack.c.l.b16 %v2008
        %v2144 = vunpack.c.l.b16 %v2009
        %v2145 = vunpack.c.l.b16 %v2010
        %v2146 = vunpack.c.l.b16 %v2011
        %v2147 = vunpack.c.l.b16 %v2012
        %v2148 = vunpack.c.l.b16 %v2013
        %v2149 = vunpack.c.l.b16 %v2014
        %v2150 = vunpack.c.l.b16 %v2015
        %v2151 = vunpack.c.l.b16 %v2016
        %v2152 = vunpack.c.l.b16 %v2017
        %v2153 = vunpack.c.l.b16 %v2018
        %v2154 = vunpack.c.l.b16 %v2019
        %v2155 = vunpack.c.l.b16 %v2020
        %v2156 = vunpack.c.l.b16 %v2021
        %v2157 = vunpack.c.l.b16 %v2022
        %v2158 = vunpack.c.l.b16 %v2023
        %v2159 = vunpack.c.l.b16 %v2024
        %v2160 = vunpack.c.l.b16 %v2025
        %v2161 = vunpack.c.l.b16 %v2026
        %v2162 = vunpack.c.l.b16 %v2027
        %v2163 = vunpack.c.l.b16 %v2028
        %v2164 = vunpack.c.l.b16 %v2029
        %v2165 = vunpack.c.l.b16 %v2030
        %v2166 = vunpack.c.l.b16 %v2031
        %v2167 = vunpack.c.l.b16 %v2032
        %v2168 = vunpack.c.l.b16 %v2033
        %v2169 = vunpack.c.l.b16 %v2034
        %v2170 = vpack.c.b16 %v2107, %v2106
        %v2171 = vpack.c.b16 %v2109, %v2108
        %v2172 = vpack.c.b16 %v2111, %v2110
        %v2173 = vpack.c.b16 %v2113, %v2112
        %v2174 = vpack.c.b16 %v2115, %v2114
        %v2175 = vpack.c.b16 %v2117, %v2116
        %v2176 = vpack.c.b16 %v2119, %v2118
        %v2177 = vpack.c.b16 %v2121, %v2120
        %v2178 = vpack.c.b16 %v2123, %v2122
        %v2179 = vpack.c.b16 %v2125, %v2124
        %v2180 = vpack.c.b16 %v2127, %v2126
        %v2181 = vpack.c.b16 %v2129, %v2128
        %v2182 = vpack.c.b16 %v2131, %v2130
        %v2183 = vpack.c.b16 %v2133, %v2132
        %v2184 = vpack.c.b16 %v2135, %v2134
        %v2185 = vpack.c.b16 %v2137, %v2136
        %v2186 = vpack.c.b16 %v2139, %v2138
        %v2187 = vpack.c.b16 %v2141, %v2140
        %v2188 = vpack.c.b16 %v2143, %v2142
        %v2189 = vpack.c.b16 %v2145, %v2144
        %v2190 = vpack.c.b16 %v2147, %v2146
        %v2191 = vpack.c.b16 %v2149, %v2148
        %v2192 = vpack.c.b16 %v2151, %v2150
        %v2193 = vpack.c.b16 %v2153, %v2152
        %v2194 = vpack.c.b16 %v2155, %v2154
        %v2195 = vpack.c.b16 %v2157, %v2156
        %v2196 = vpack.c.b16 %v2159, %v2158
        %v2197 = vpack.c.b16 %v2161, %v2160
        %v2198 = vpack.c.b16 %v2163, %v2162
        %v2199 = vpack.c.b16 %v2165, %v2164
        %v2200 = vpack.c.b16 %v2167, %v2166
        %v2201 = vpack.c.b16 %v2169, %v2168
        %2234 = vmatprep.subr.bf16.mxu0 0
        %2235 = vmatpush1.bf16.msra.mxu0 %v2170
        %2236 = vmatprep.subr.bf16.mxu0 0
        %2237 = vmatpush1.bf16.msra.mxu0 %v2171
        %2238 = vmatprep.subr.bf16.mxu0 0
        %2239 = vmatpush1.bf16.msra.mxu0 %v2172
        %2240 = vmatprep.subr.bf16.mxu0 0
        %2241 = vmatpush1.bf16.msra.mxu0 %v2173
        %2242 = vmatprep.subr.bf16.mxu0 0
        %2243 = vmatpush1.bf16.msra.mxu0 %v2174
        %2244 = vmatprep.subr.bf16.mxu0 0
        %2245 = vmatpush1.bf16.msra.mxu0 %v2175
        %2246 = vmatprep.subr.bf16.mxu0 0
        %2247 = vmatpush1.bf16.msra.mxu0 %v2176
        %2248 = vmatprep.subr.bf16.mxu0 0
        %2249 = vmatpush1.bf16.msra.mxu0 %v2177
        %2250 = vmatprep.subr.bf16.mxu0 0
        %2251 = vmatpush1.bf16.msra.mxu0 %v2178
        %2252 = vmatprep.subr.bf16.mxu0 0
        %2253 = vmatpush1.bf16.msra.mxu0 %v2179
        %2254 = vmatprep.subr.bf16.mxu0 0
        %2255 = vmatpush1.bf16.msra.mxu0 %v2180
        %2256 = vmatprep.subr.bf16.mxu0 0
        %2257 = vmatpush1.bf16.msra.mxu0 %v2181
        %2258 = vmatprep.subr.bf16.mxu0 0
        %2259 = vmatpush1.bf16.msra.mxu0 %v2182
        %2260 = vmatprep.subr.bf16.mxu0 0
        %2261 = vmatpush1.bf16.msra.mxu0 %v2183
        %2262 = vmatprep.subr.bf16.mxu0 0
        %2263 = vmatpush1.bf16.msra.mxu0 %v2184
        %2264 = vmatprep.subr.bf16.mxu0 0
        %2265 = vmatpush1.bf16.msra.mxu0 %v2185
        %2266 = vmatprep.mubr.bf16.mxu0 %v1968
        %2267 = vmatmul.mubr.bf16.gmra.mrb[0].mxu0 %v1967
        %v2268 = vpop.f32.mrb[0].mxu0
        %v2269 = vadd.f32 %v2040, %v2268
        %v2270 = vpop.f32.mrb[0].mxu0
        %v2271 = vpop.f32.mrb[0].mxu0
        %v2272 = vpop.f32.mrb[0].mxu0
        %2273 = vdwg.mxu0
        %2274 = vmatprep.subr.bf16.mxu0 0
        %2275 = vmatpush1.bf16.msra.mxu0 %v2186
        %2276 = vmatprep.subr.bf16.mxu0 0
        %2277 = vmatpush1.bf16.msra.mxu0 %v2187
        %2278 = vmatprep.subr.bf16.mxu0 0
        %2279 = vmatpush1.bf16.msra.mxu0 %v2188
        %2280 = vmatprep.subr.bf16.mxu0 0
        %2281 = vmatpush1.bf16.msra.mxu0 %v2189
        %2282 = vmatprep.subr.bf16.mxu0 0
        %2283 = vmatpush1.bf16.msra.mxu0 %v2190
        %2284 = vmatprep.subr.bf16.mxu0 0
        %2285 = vmatpush1.bf16.msra.mxu0 %v2191
        %2286 = vmatprep.subr.bf16.mxu0 0
        %2287 = vmatpush1.bf16.msra.mxu0 %v2192
        %2288 = vmatprep.subr.bf16.mxu0 0
        %2289 = vmatpush1.bf16.msra.mxu0 %v2193
        %2290 = vmatprep.subr.bf16.mxu0 0
        %2291 = vmatpush1.bf16.msra.mxu0 %v2194
        %2292 = vmatprep.subr.bf16.mxu0 0
        %2293 = vmatpush1.bf16.msra.mxu0 %v2195
        %2294 = vmatprep.subr.bf16.mxu0 0
        %2295 = vmatpush1.bf16.msra.mxu0 %v2196
        %2296 = vmatprep.subr.bf16.mxu0 0
        %2297 = vmatpush1.bf16.msra.mxu0 %v2197
        %2298 = vmatprep.subr.bf16.mxu0 0
        %2299 = vmatpush1.bf16.msra.mxu0 %v2198
        %2300 = vmatprep.subr.bf16.mxu0 0
        %2301 = vmatpush1.bf16.msra.mxu0 %v2199
        %2302 = vmatprep.subr.bf16.mxu0 0
        %2303 = vmatpush1.bf16.msra.mxu0 %v2200
        %2304 = vmatprep.subr.bf16.mxu0 0
        %2305 = vmatpush1.bf16.msra.mxu0 %v2201
        %2306 = vmatprep.mubr.bf16.mxu0 %v1970
        %2307 = vmatmul.mubr.bf16.gmra.mrb[0].mxu0 %v1969
        %v2308 = vpop.f32.mrb[0].mxu0
        %v2309 = vadd.f32 %v2269, %v2308
        %v2310 = vpop.f32.mrb[0].mxu0
        %v2311 = vpop.f32.mrb[0].mxu0
        %v2312 = vpop.f32.mrb[0].mxu0
        %2313 = vdwg.mxu0
        %v2314 = vadd.f32 %v2309, %v1633
        %v2315 = vld [vmem:[#allocation13] sm:$0x1]
        %v2316 = vld [vmem:[#allocation15] sm:$0x1]
        %2317 = vadd.xlane.f32.xlu0 %v2314
        %v2318 = vpop.xlane.xlu0 %2317
        %v2319 = vmul.f32 %v2318, %v1610
        %v2320 = vsub.f32 %v2314, %v2319
        %v2321 = vmul.f32 %v2320, %v2320
        %2322 = vadd.xlane.f32.xlu0 %v2321
        %v2323 = vpop.xlane.xlu0 %2322
        %v2324 = vmul.f32 %v2323, %v1610
        %v2325 = vadd.f32 %v2324, 1e-12
        %v2326 = vrsqrt.pop %v2325
        %v2327 = vmul.f32 %v2320, %v2326
        %v2329 = vlaneseq
        %v2330 = vshrl.u32 %v2329, 7
        %v2331 = vsub.s32 0, %v2330
        %v2332 = vrot.slane %v2315, %v2331
        %v2334 = vmul.f32 %v2327, %v2332
        %v2336 = vlaneseq
        %v2337 = vshrl.u32 %v2336, 7
        %v2338 = vsub.s32 0, %v2337
        %v2339 = vrot.slane %v2316, %v2338
        %v2341 = vadd.f32 %v2334, %v2339
        %v2342 = vpack.c.bf16 %v2341, %v2341
        %2343 = vst [vmem:[%s554] sm:$0xf] %v2342
        %p2344 = scmp.lt.s32.totalorder %s29, 1
        %s2345 = scalar_select %p2344, %s29, 1
        %s2346 = smul.addr %s2345, 4
        %s2347 = scalar_lea.vmem %s13, %s2346
        // Predicated region
        $region109: #{modified_bert_model.2} parent=71 // pred_check
          %p2348 = pneg %p325
        $region110: #{modified_bert_model.2} parent=71 // pred_check_branch
          %2350 = sbr.rel (%p2348) target = $region112
        $region111: #{modified_bert_model.2} parent=71 // pred_region
          _
        $region112: #{modified_bert_model.2} parent=71 // pred_fallthru
          _
      $region72: #{modified_bert_model.2} parent=5 // pred_fallthru
        _
      %p2351 = scmp.le.s32.totalorder 2, %s24
      // Predicated region
      $region113: #{modified_bert_model.2} parent=5 // pred_check
        %p2352 = pneg %p2351
      $region114: #{modified_bert_model.2} parent=5 // pred_check_branch
        %2354 = sbr.rel (%p2352) target = $region116
      $region115: #{modified_bert_model.2} parent=5 // pred_region
        %s2355 = ssub.s32 %s24, 2
        // Predicated region
        $region117: #{modified_bert_model.2} parent=115 // pred_check
          %p2356 = pneg %p331
        $region118: #{modified_bert_model.2} parent=115 // pred_check_branch
          %2358 = sbr.rel (%p2356) target = $region120
        $region119: #{modified_bert_model.2} parent=115 // pred_region
          %p2359 = scmp.lt.s32.totalorder %s30, 1
          %s2360 = scalar_select %p2359, %s30, 1
          %s2361 = smul.addr %s2360, 4
          %s2362 = scalar_lea.vmem %s13, %s2361
        $region120: #{modified_bert_model.2} parent=115 // pred_fallthru
          _
      $region116: #{modified_bert_model.2} parent=5 // pred_fallthru
        _
    $region6: #{modified_bert_model.2} parent=1 // loop_footer
      %s28 = sadd.s32 1, %s24
    $region7: #{modified_bert_model.2} parent=1 // loop_footer_branch
      %23 = sbr.rel target = $region3
    $region8: #{modified_bert_model.2} parent=1 // loop_exit
      _
    %2363 = vsyncpa [#allocation3], 1
    %s2364 = scalar_lea.sflag [#allocation3], 1
    %2365 = vsyncpa %s2364, 1
    %2366 = vsyncpa [#allocation5], 1
    %2367 = vsyncpa [#allocation8], 1
    %2368 = vsyncpa [#allocation11], 1
    %2369 = vsyncpa [#allocation14], 1

</llo_original>
